<compile_context>
chip_gen: v5e
topology: v5e:2x2
jax: 0.10.0
libtpu: 0.0.40
codegen_flags: <defaults>
</compile_context>

<pallas_src>
import functools
from dataclasses import dataclass

import jax
import jax.numpy as jnp
import numpy as np
from jax.experimental import pallas as pl
from jax.experimental.pallas import tpu as pltpu


@dataclass(frozen=True)
class Parameters:
    """GAN parameters (small test-sized configuration)."""
    z_size: int = 16
    batch_size: int = 2
    n_classes: int = 10
    feature_map_size: int = 16
    epochs: int = 10
    lr: float = 0.0002
    beta1: float = 0.5


_EPS = 1e-5
_PAD = 9                 # padded extent of the 7x7 grid (7 + 1 + 1)
_IMG = _PAD * _PAD       # 81 padded-row-major rows per image
_MARGIN = 16             # rows above/below the core so shifted stores stay in range
_NOUT = 128              # lane-dense padded output width (16 real residue columns)
_N_CHAINS = 4            # parallel accumulator chains for conv1's VPU MACs
_SHIFTS = tuple((dy, dx) for dy in (-1, 0, 1) for dx in (-1, 0, 1))
_SHIFT_OFF = tuple(dy * _PAD + dx for dy, dx in _SHIFTS)

# ConvTranspose(k=4, s=2, p=1): output parity q with input shift d uses kernel
# tap k = q - 2*d + 1 (only taps in [0,4) contribute).
_KTAP = {(0, 0): 1, (0, -1): 3, (1, 1): 0, (1, 0): 2}

# Second ConvTranspose(k=4,s=2,p=1) applied to parity-packed input: output
# residue r (mod 4) gets, from input parity q, tap k with sub-row shift dm.
_RTAP = (
    {0: (1, 0), 1: (3, -1)},
    {0: (2, 0), 1: (0, 0)},
    {0: (3, 0), 1: (1, 0)},
    {0: (0, 1), 1: (2, 0)},
)


# ----------------------------- fused Pallas kernel --------------------------

def _make_kernel(B, cin1, c1, c2):
    core = B * _IMG
    cp = 4 * c2                       # parity-packed conv2 channel width

    def kernel(x_ref, w1p_ref, g1_ref, b1_ref, m2_ref, g2_ref, b2_ref,
               m3_ref, mk1_ref, mk2_ref, out_ref, p1_ref, p2_ref):
        # --- zero only the edge bands of the im2col scratches.  Rows of the
        # read range [_MARGIN, _MARGIN+core) that the shifted stores cannot
        # cover (<= 10 at each end per column group) feed masked/discarded
        # border outputs, but must be finite so masking can't produce NaN.
        zb1 = jnp.zeros((_MARGIN, 9 * c1), jnp.float32)
        p1_ref[_MARGIN:2 * _MARGIN, :] = zb1
        p1_ref[core:core + _MARGIN, :] = zb1
        zb2 = jnp.zeros((_MARGIN, 9 * cp), jnp.float32)
        p2_ref[_MARGIN:2 * _MARGIN, :] = zb2
        p2_ref[core:core + _MARGIN, :] = zb2

        # ---- conv1: k=7, s=1, p=0 on a 1x1 input == per-pixel weighted sum.
        # VPU scalar-broadcast MACs in padded row-major layout; the 26-term
        # chain is split into parallel accumulator chains per image.
        acc1 = []
        for b in range(B):
            chains = []
            for c0 in range(_N_CHAINS):
                part = None
                for k in range(c0, cin1, _N_CHAINS):
                    term = x_ref[b, k] * w1p_ref[k]
                    part = term if part is None else part + term
                if part is not None:
                    chains.append(part)
            while len(chains) > 1:
                nxt = [chains[i] + chains[i + 1]
                       for i in range(0, len(chains) - 1, 2)]
                if len(chains) % 2:
                    nxt.append(chains[-1])
                chains = nxt
            acc1.append(chains[0])                        # (81, c1)

        # ---- BN1 (training-mode batch stats, biased var) + ReLU, one pass.
        # Padded-border rows of acc1 are exactly 0 (w1p border rows are zero),
        # so full-row sums equal interior sums.
        n1 = float(B * 7 * 7)
        s1 = jnp.zeros((1, c1), jnp.float32)
        s2 = jnp.zeros((1, c1), jnp.float32)
        for a in acc1:
            s1 = s1 + jnp.sum(a, axis=0, keepdims=True)
            s2 = s2 + jnp.sum(a * a, axis=0, keepdims=True)
        mean = s1 / n1
        var = jnp.maximum(s2 / n1 - mean * mean, 0.0)
        scale = g1_ref[...] * jax.lax.rsqrt(var + _EPS)
        shift = b1_ref[...] - mean * scale
        mask1 = mk1_ref[...]                              # (81, 1)

        # im2col-at-store: write each image's masked BN1/ReLU output into the
        # 9 shift column groups so conv2 becomes ONE wide-K matmul.
        for b in range(B):
            y = jnp.maximum(acc1[b] * scale + shift, 0.0) * mask1     # (81, c1)
            base = _MARGIN + b * _IMG
            for i, s in enumerate(_SHIFT_OFF):
                p1_ref[base - s:base - s + _IMG, i * c1:(i + 1) * c1] = y

        # ---- conv2: single (core, 9*c1) @ (9*c1, 4*c2) bf16 MXU matmul.
        lhs1 = p1_ref[_MARGIN:_MARGIN + core, :].astype(jnp.bfloat16)
        acc2 = jnp.dot(lhs1, m2_ref[...],
                       preferred_element_type=jnp.float32)            # (core, cp)

        # ---- BN2 + ReLU: pool stats over the 4 parity copies of each channel,
        # entirely in vregs (no scratch round-trip, no materialized mask temp).
        maskc = mk2_ref[...]                              # (core, 1)
        n2 = float(B * 14 * 14)
        s1 = jnp.sum(acc2 * maskc, axis=0, keepdims=True)             # (1, cp)
        s2 = jnp.sum(acc2 * acc2 * maskc, axis=0, keepdims=True)      # (1, cp)
        s1p = (s1[:, 0 * c2:1 * c2] + s1[:, 1 * c2:2 * c2]
               + s1[:, 2 * c2:3 * c2] + s1[:, 3 * c2:4 * c2])
        s2p = (s2[:, 0 * c2:1 * c2] + s2[:, 1 * c2:2 * c2]
               + s2[:, 2 * c2:3 * c2] + s2[:, 3 * c2:4 * c2])
        mean = s1p / n2
        var = jnp.maximum(s2p / n2 - mean * mean, 0.0)
        sc2 = g2_ref[...] * jax.lax.rsqrt(var + _EPS)     # (1, c2)
        sh2 = b2_ref[...] - mean * sc2
        scw = jnp.concatenate([sc2, sc2, sc2, sc2], axis=1)   # (1, cp)
        shw = jnp.concatenate([sh2, sh2, sh2, sh2], axis=1)
        y2 = jnp.maximum(acc2 * scw + shw, 0.0) * maskc   # (core, cp), border->0

        # im2col-at-store for conv3: 9 shifted full-core stores.
        for i, s in enumerate(_SHIFT_OFF):
            p2_ref[_MARGIN - s:_MARGIN - s + core, i * cp:(i + 1) * cp] = y2

        # ---- conv3 (Cout=1), residue-packed + zero-padded to 128 lanes:
        # single (core, 9*cp) @ (9*cp, 128) bf16 matmul, fused tanh, dense store.
        lhs2 = p2_ref[_MARGIN:_MARGIN + core, :].astype(jnp.bfloat16)
        acc3 = jnp.dot(lhs2, m3_ref[...],
                       preferred_element_type=jnp.float32)            # (core, 128)
        out_ref[...] = jnp.tanh(acc3)

    return kernel


# ------------------------------ weight preparation --------------------------

def _prep_weights(params):
    """Pure (tiny) parameter re-packing for the fused kernel."""
    w1 = params["W1"]                                  # (cin1, c1, 7, 7)
    cin1, c1 = w1.shape[0], w1.shape[1]
    w1p = jnp.pad(jnp.transpose(w1, (0, 2, 3, 1)),
                  ((0, 0), (1, 1), (1, 1), (0, 0)))    # (cin1, 9, 9, c1)
    w1p = w1p.reshape(cin1, _IMG, c1)                  # f32 (VPU path)

    w2 = params["W2"]                                  # (c1, c2, 4, 4)
    c2 = w2.shape[1]
    m2 = jnp.zeros((9, c1, 4 * c2), jnp.float32)
    for si, (dy, dx) in enumerate(_SHIFTS):
        for qy in (0, 1):
            ky = _KTAP.get((qy, dy))
            if ky is None:
                continue
            for qx in (0, 1):
                kx = _KTAP.get((qx, dx))
                if kx is None:
                    continue
                qi = 2 * qy + qx
                m2 = m2.at[si, :, qi * c2:(qi + 1) * c2].set(w2[:, :, ky, kx])
    m2 = m2.reshape(9 * c1, 4 * c2).astype(jnp.bfloat16)

    w3 = params["W3"]                                  # (c2, 1, 4, 4)
    m3 = jnp.zeros((9, 4 * c2, 16), jnp.float32)
    for si, (dy, dx) in enumerate(_SHIFTS):
        for ry in range(4):
            for qy in (0, 1):
                ky, dmy = _RTAP[ry][qy]
                if dmy != dy:
                    continue
                for rx in range(4):
                    for qx in (0, 1):
                        kx, dmx = _RTAP[rx][qx]
                        if dmx != dx:
                            continue
                        qi = 2 * qy + qx
                        m3 = m3.at[si, qi * c2:(qi + 1) * c2,
                                   ry * 4 + rx].set(w3[:, 0, ky, kx])
    m3 = m3.reshape(9 * 4 * c2, 16)
    m3 = jnp.pad(m3, ((0, 0), (0, _NOUT - 16))).astype(jnp.bfloat16)
    return w1p, m2, m3


def _interior_masks(B):
    idx = np.arange(_IMG)
    hp, wp = idx // _PAD, idx % _PAD
    m = ((hp >= 1) & (hp <= 7) & (wp >= 1) & (wp <= 7)).astype(np.float32)
    m81 = jnp.asarray(m.reshape(_IMG, 1))
    mcore = jnp.asarray(np.tile(m, B).reshape(B * _IMG, 1))
    return m81, mcore


# --------------------------------- forward ----------------------------------

def generator_forward(noise, labels, params, p: Parameters):
    B = noise.shape[0]
    cin1 = p.z_size + p.n_classes
    c1 = p.feature_map_size * 2
    c2 = p.feature_map_size
    core = B * _IMG
    tot = core + 2 * _MARGIN

    one_hot = jax.nn.one_hot(labels, p.n_classes, dtype=noise.dtype)
    x = jnp.concatenate([noise, one_hot], axis=1)      # (B, cin1)

    w1p, m2, m3 = _prep_weights(params)
    m81, mcore = _interior_masks(B)
    g1 = params["gamma1"].reshape(1, c1)
    b1 = params["beta1"].reshape(1, c1)
    g2 = params["gamma2"].reshape(1, c2)
    b2 = params["beta2"].reshape(1, c2)

    vmem = pl.BlockSpec(memory_space=pltpu.MemorySpace.VMEM)
    smem = pl.BlockSpec(memory_space=pltpu.MemorySpace.SMEM)

    z = pl.pallas_call(
        _make_kernel(B, cin1, c1, c2),
        out_shape=jax.ShapeDtypeStruct((core, _NOUT), jnp.float32),
        in_specs=[smem, vmem, vmem, vmem, vmem, vmem, vmem, vmem, vmem, vmem],
        out_specs=vmem,
        scratch_shapes=[
            pltpu.VMEM((tot, 9 * c1), jnp.float32),        # im2col stage-1 acts
            pltpu.VMEM((tot, 9 * 4 * c2), jnp.float32),    # im2col parity-packed acts
        ],
    )(x, w1p, g1, b1, m2, g2, b2, m3, m81, mcore)

    # Drop the zero-padded lanes, then de-interleave the (mod-4, mod-4)
    # residues back to 28x28 pixels (tiny XLA epilogue).
    img = z[:, :16].reshape(B, _PAD, _PAD, 16)[:, 1:8, 1:8, :]      # (B,7,7,16)
    img = img.reshape(B, 7, 7, 4, 4).transpose(0, 1, 3, 2, 4).reshape(B, 28, 28)
    return img[:, None, :, :]                                       # (B,1,28,28)


# ------------------------ pure-JAX reference (check) ------------------------

def _bn_relu_ref(x_nchw, gamma, beta):
    mean = x_nchw.mean(axis=(0, 2, 3), keepdims=True)
    var = ((x_nchw - mean) ** 2).mean(axis=(0, 2, 3), keepdims=True)
    y = (x_nchw - mean) / jnp.sqrt(var + _EPS)
    y = y * gamma[None, :, None, None] + beta[None, :, None, None]
    return jnp.maximum(y, 0.0)


def _convt_ref(x_nchw, w_pt):
    w = jnp.flip(w_pt, axis=(2, 3)).transpose(1, 0, 2, 3)       # OIHW, flipped
    return jax.lax.conv_general_dilated(
        x_nchw, w, window_strides=(1, 1), padding=((2, 2), (2, 2)),
        lhs_dilation=(2, 2), dimension_numbers=("NCHW", "OIHW", "NCHW"),
        precision=jax.lax.Precision.HIGHEST)


def reference_forward(noise, labels, params, p: Parameters):
    one_hot = jax.nn.one_hot(labels, p.n_classes, dtype=noise.dtype)
    x = jnp.concatenate([noise, one_hot], axis=1)
    y = jnp.einsum("bc,cohw->bohw", x, params["W1"],
                   precision=jax.lax.Precision.HIGHEST)
    y = _bn_relu_ref(y, params["gamma1"], params["beta1"])
    y = _bn_relu_ref(_convt_ref(y, params["W2"]), params["gamma2"], params["beta2"])
    return jnp.tanh(_convt_ref(y, params["W3"]))


# ---------------------------------- main ------------------------------------

if __name__ == "__main__":
    p = Parameters()
    B = p.batch_size
    cin1 = p.z_size + p.n_classes
    c1 = p.feature_map_size * 2
    c2 = p.feature_map_size

    key = jax.random.PRNGKey(0)
    ks = jax.random.split(key, 9)
    params = {
        "W1": 0.05 * jax.random.normal(ks[0], (cin1, c1, 7, 7), jnp.float32),
        "gamma1": 1.0 + 0.1 * jax.random.normal(ks[1], (c1,), jnp.float32),
        "beta1": 0.1 * jax.random.normal(ks[2], (c1,), jnp.float32),
        "W2": 0.05 * jax.random.normal(ks[3], (c1, c2, 4, 4), jnp.float32),
        "gamma2": 1.0 + 0.1 * jax.random.normal(ks[4], (c2,), jnp.float32),
        "beta2": 0.1 * jax.random.normal(ks[5], (c2,), jnp.float32),
        "W3": 0.05 * jax.random.normal(ks[6], (c2, 1, 4, 4), jnp.float32),
    }
    noise = jax.random.normal(ks[7], (B, p.z_size), jnp.float32)
    labels = jax.random.randint(ks[8], (B,), 0, p.n_classes)

    fwd = jax.jit(functools.partial(generator_forward, p=p))
    out = jax.block_until_ready(fwd(noise, labels, params))
    assert out.shape == (B, 1, 28, 28), out.shape

    ref = reference_forward(noise, labels, params, p)
    max_err = float(jnp.max(jnp.abs(out - ref)))
    # Kernel matmuls run bf16xbf16 with f32 accumulation (equivalent to the
    # default 1-pass MXU precision) while the reference uses HIGHEST f32, so
    # allow a few 1e-2 absolute error on tanh outputs in [-1, 1].
    assert max_err < 5e-2, max_err
    print("KERNEL_OK")
</pallas_src>

<mosaic_0001>
module attributes {stable_mosaic.version = 11 : i64} {
  func.func @kernel(%arg0: memref<2x26xf32, #tpu.memory_space<smem>>, %arg1: memref<26x81x32xf32, #tpu.memory_space<vmem>>, %arg2: memref<1x32xf32, #tpu.memory_space<vmem>>, %arg3: memref<1x32xf32, #tpu.memory_space<vmem>>, %arg4: memref<288x64xbf16, #tpu.memory_space<vmem>>, %arg5: memref<1x16xf32, #tpu.memory_space<vmem>>, %arg6: memref<1x16xf32, #tpu.memory_space<vmem>>, %arg7: memref<576x128xbf16, #tpu.memory_space<vmem>>, %arg8: memref<81x1xf32, #tpu.memory_space<vmem>>, %arg9: memref<162x1xf32, #tpu.memory_space<vmem>>, %arg10: memref<162x128xf32, #tpu.memory_space<vmem>>, %arg11: memref<194x288xf32, #tpu.memory_space<vmem>>, %arg12: memref<194x576xf32, #tpu.memory_space<vmem>>) attributes {dimension_semantics = [], scalar_prefetch = 0 : i64, scratch_operands = 2 : i64, tpu.core_type = #tpu.core_type<tc>} {
    %cst = arith.constant 0.000000e+00 : f32
    %0 = vector.broadcast %cst : f32 to vector<16x288xf32>
    %c16 = arith.constant 16 : index
    %c0 = arith.constant 0 : index
    %1 = vector.load %arg11[%c16, %c0] : memref<194x288xf32, #tpu.memory_space<vmem>>, vector<16x288xf32>
    tpu.vector_store %arg11[%c16, %c0], %0 {strides = array<i32>} : memref<194x288xf32, #tpu.memory_space<vmem>>, vector<16x288xf32>,
    %c162 = arith.constant 162 : index
    %c0_0 = arith.constant 0 : index
    %2 = vector.load %arg11[%c162, %c0_0] : memref<194x288xf32, #tpu.memory_space<vmem>>, vector<16x288xf32>
    tpu.vector_store %arg11[%c162, %c0_0], %0 {strides = array<i32>} : memref<194x288xf32, #tpu.memory_space<vmem>>, vector<16x288xf32>,
    %cst_1 = arith.constant 0.000000e+00 : f32
    %3 = vector.broadcast %cst_1 : f32 to vector<16x576xf32>
    %c16_2 = arith.constant 16 : index
    %c0_3 = arith.constant 0 : index
    %4 = vector.load %arg12[%c16_2, %c0_3] : memref<194x576xf32, #tpu.memory_space<vmem>>, vector<16x576xf32>
    tpu.vector_store %arg12[%c16_2, %c0_3], %3 {strides = array<i32>} : memref<194x576xf32, #tpu.memory_space<vmem>>, vector<16x576xf32>,
    %c162_4 = arith.constant 162 : index
    %c0_5 = arith.constant 0 : index
    %5 = vector.load %arg12[%c162_4, %c0_5] : memref<194x576xf32, #tpu.memory_space<vmem>>, vector<16x576xf32>
    tpu.vector_store %arg12[%c162_4, %c0_5], %3 {strides = array<i32>} : memref<194x576xf32, #tpu.memory_space<vmem>>, vector<16x576xf32>,
    %c0_6 = arith.constant 0 : index
    %c0_7 = arith.constant 0 : index
    %6 = memref.load %arg0[%c0_6, %c0_7] : memref<2x26xf32, #tpu.memory_space<smem>>
    %c0_8 = arith.constant 0 : index
    %c0_9 = arith.constant 0 : index
    %c0_10 = arith.constant 0 : index
    %7 = vector.load %arg1[%c0_8, %c0_9, %c0_10] : memref<26x81x32xf32, #tpu.memory_space<vmem>>, vector<1x81x32xf32>
    %8 = vector.shape_cast %7 : vector<1x81x32xf32> to vector<81x32xf32>
    %9 = vector.broadcast %6 : f32 to vector<81x32xf32>
    %10 = arith.mulf %9, %8 : vector<81x32xf32>
    %c0_11 = arith.constant 0 : index
    %c4 = arith.constant 4 : index
    %11 = memref.load %arg0[%c0_11, %c4] : memref<2x26xf32, #tpu.memory_space<smem>>
    %c4_12 = arith.constant 4 : index
    %c0_13 = arith.constant 0 : index
    %c0_14 = arith.constant 0 : index
    %12 = vector.load %arg1[%c4_12, %c0_13, %c0_14] : memref<26x81x32xf32, #tpu.memory_space<vmem>>, vector<1x81x32xf32>
    %13 = vector.shape_cast %12 : vector<1x81x32xf32> to vector<81x32xf32>
    %14 = vector.broadcast %11 : f32 to vector<81x32xf32>
    %15 = arith.mulf %14, %13 : vector<81x32xf32>
    %16 = arith.addf %10, %15 : vector<81x32xf32>
    %c0_15 = arith.constant 0 : index
    %c8 = arith.constant 8 : index
    %17 = memref.load %arg0[%c0_15, %c8] : memref<2x26xf32, #tpu.memory_space<smem>>
    %c8_16 = arith.constant 8 : index
    %c0_17 = arith.constant 0 : index
    %c0_18 = arith.constant 0 : index
    %18 = vector.load %arg1[%c8_16, %c0_17, %c0_18] : memref<26x81x32xf32, #tpu.memory_space<vmem>>, vector<1x81x32xf32>
    %19 = vector.shape_cast %18 : vector<1x81x32xf32> to vector<81x32xf32>
    %20 = vector.broadcast %17 : f32 to vector<81x32xf32>
    %21 = arith.mulf %20, %19 : vector<81x32xf32>
    %22 = arith.addf %16, %21 : vector<81x32xf32>
    %c0_19 = arith.constant 0 : index
    %c12 = arith.constant 12 : index
    %23 = memref.load %arg0[%c0_19, %c12] : memref<2x26xf32, #tpu.memory_space<smem>>
    %c12_20 = arith.constant 12 : index
    %c0_21 = arith.constant 0 : index
    %c0_22 = arith.constant 0 : index
    %24 = vector.load %arg1[%c12_20, %c0_21, %c0_22] : memref<26x81x32xf32, #tpu.memory_space<vmem>>, vector<1x81x32xf32>
    %25 = vector.shape_cast %24 : vector<1x81x32xf32> to vector<81x32xf32>
    %26 = vector.broadcast %23 : f32 to vector<81x32xf32>
    %27 = arith.mulf %26, %25 : vector<81x32xf32>
    %28 = arith.addf %22, %27 : vector<81x32xf32>
    %c0_23 = arith.constant 0 : index
    %c16_24 = arith.constant 16 : index
    %29 = memref.load %arg0[%c0_23, %c16_24] : memref<2x26xf32, #tpu.memory_space<smem>>
    %c16_25 = arith.constant 16 : index
    %c0_26 = arith.constant 0 : index
    %c0_27 = arith.constant 0 : index
    %30 = vector.load %arg1[%c16_25, %c0_26, %c0_27] : memref<26x81x32xf32, #tpu.memory_space<vmem>>, vector<1x81x32xf32>
    %31 = vector.shape_cast %30 : vector<1x81x32xf32> to vector<81x32xf32>
    %32 = vector.broadcast %29 : f32 to vector<81x32xf32>
    %33 = arith.mulf %32, %31 : vector<81x32xf32>
    %34 = arith.addf %28, %33 : vector<81x32xf32>
    %c0_28 = arith.constant 0 : index
    %c20 = arith.constant 20 : index
    %35 = memref.load %arg0[%c0_28, %c20] : memref<2x26xf32, #tpu.memory_space<smem>>
    %c20_29 = arith.constant 20 : index
    %c0_30 = arith.constant 0 : index
    %c0_31 = arith.constant 0 : index
    %36 = vector.load %arg1[%c20_29, %c0_30, %c0_31] : memref<26x81x32xf32, #tpu.memory_space<vmem>>, vector<1x81x32xf32>
    %37 = vector.shape_cast %36 : vector<1x81x32xf32> to vector<81x32xf32>
    %38 = vector.broadcast %35 : f32 to vector<81x32xf32>
    %39 = arith.mulf %38, %37 : vector<81x32xf32>
    %40 = arith.addf %34, %39 : vector<81x32xf32>
    %c0_32 = arith.constant 0 : index
    %c24 = arith.constant 24 : index
    %41 = memref.load %arg0[%c0_32, %c24] : memref<2x26xf32, #tpu.memory_space<smem>>
    %c24_33 = arith.constant 24 : index
    %c0_34 = arith.constant 0 : index
    %c0_35 = arith.constant 0 : index
    %42 = vector.load %arg1[%c24_33, %c0_34, %c0_35] : memref<26x81x32xf32, #tpu.memory_space<vmem>>, vector<1x81x32xf32>
    %43 = vector.shape_cast %42 : vector<1x81x32xf32> to vector<81x32xf32>
    %44 = vector.broadcast %41 : f32 to vector<81x32xf32>
    %45 = arith.mulf %44, %43 : vector<81x32xf32>
    %46 = arith.addf %40, %45 : vector<81x32xf32>
    %c0_36 = arith.constant 0 : index
    %c1 = arith.constant 1 : index
    %47 = memref.load %arg0[%c0_36, %c1] : memref<2x26xf32, #tpu.memory_space<smem>>
    %c1_37 = arith.constant 1 : index
    %c0_38 = arith.constant 0 : index
    %c0_39 = arith.constant 0 : index
    %48 = vector.load %arg1[%c1_37, %c0_38, %c0_39] : memref<26x81x32xf32, #tpu.memory_space<vmem>>, vector<1x81x32xf32>
    %49 = vector.shape_cast %48 : vector<1x81x32xf32> to vector<81x32xf32>
    %50 = vector.broadcast %47 : f32 to vector<81x32xf32>
    %51 = arith.mulf %50, %49 : vector<81x32xf32>
    %c0_40 = arith.constant 0 : index
    %c5 = arith.constant 5 : index
    %52 = memref.load %arg0[%c0_40, %c5] : memref<2x26xf32, #tpu.memory_space<smem>>
    %c5_41 = arith.constant 5 : index
    %c0_42 = arith.constant 0 : index
    %c0_43 = arith.constant 0 : index
    %53 = vector.load %arg1[%c5_41, %c0_42, %c0_43] : memref<26x81x32xf32, #tpu.memory_space<vmem>>, vector<1x81x32xf32>
    %54 = vector.shape_cast %53 : vector<1x81x32xf32> to vector<81x32xf32>
    %55 = vector.broadcast %52 : f32 to vector<81x32xf32>
    %56 = arith.mulf %55, %54 : vector<81x32xf32>
    %57 = arith.addf %51, %56 : vector<81x32xf32>
    %c0_44 = arith.constant 0 : index
    %c9 = arith.constant 9 : index
    %58 = memref.load %arg0[%c0_44, %c9] : memref<2x26xf32, #tpu.memory_space<smem>>
    %c9_45 = arith.constant 9 : index
    %c0_46 = arith.constant 0 : index
    %c0_47 = arith.constant 0 : index
    %59 = vector.load %arg1[%c9_45, %c0_46, %c0_47] : memref<26x81x32xf32, #tpu.memory_space<vmem>>, vector<1x81x32xf32>
    %60 = vector.shape_cast %59 : vector<1x81x32xf32> to vector<81x32xf32>
    %61 = vector.broadcast %58 : f32 to vector<81x32xf32>
    %62 = arith.mulf %61, %60 : vector<81x32xf32>
    %63 = arith.addf %57, %62 : vector<81x32xf32>
    %c0_48 = arith.constant 0 : index
    %c13 = arith.constant 13 : index
    %64 = memref.load %arg0[%c0_48, %c13] : memref<2x26xf32, #tpu.memory_space<smem>>
    %c13_49 = arith.constant 13 : index
    %c0_50 = arith.constant 0 : index
    %c0_51 = arith.constant 0 : index
    %65 = vector.load %arg1[%c13_49, %c0_50, %c0_51] : memref<26x81x32xf32, #tpu.memory_space<vmem>>, vector<1x81x32xf32>
    %66 = vector.shape_cast %65 : vector<1x81x32xf32> to vector<81x32xf32>
    %67 = vector.broadcast %64 : f32 to vector<81x32xf32>
    %68 = arith.mulf %67, %66 : vector<81x32xf32>
    %69 = arith.addf %63, %68 : vector<81x32xf32>
    %c0_52 = arith.constant 0 : index
    %c17 = arith.constant 17 : index
    %70 = memref.load %arg0[%c0_52, %c17] : memref<2x26xf32, #tpu.memory_space<smem>>
    %c17_53 = arith.constant 17 : index
    %c0_54 = arith.constant 0 : index
    %c0_55 = arith.constant 0 : index
    %71 = vector.load %arg1[%c17_53, %c0_54, %c0_55] : memref<26x81x32xf32, #tpu.memory_space<vmem>>, vector<1x81x32xf32>
    %72 = vector.shape_cast %71 : vector<1x81x32xf32> to vector<81x32xf32>
    %73 = vector.broadcast %70 : f32 to vector<81x32xf32>
    %74 = arith.mulf %73, %72 : vector<81x32xf32>
    %75 = arith.addf %69, %74 : vector<81x32xf32>
    %c0_56 = arith.constant 0 : index
    %c21 = arith.constant 21 : index
    %76 = memref.load %arg0[%c0_56, %c21] : memref<2x26xf32, #tpu.memory_space<smem>>
    %c21_57 = arith.constant 21 : index
    %c0_58 = arith.constant 0 : index
    %c0_59 = arith.constant 0 : index
    %77 = vector.load %arg1[%c21_57, %c0_58, %c0_59] : memref<26x81x32xf32, #tpu.memory_space<vmem>>, vector<1x81x32xf32>
    %78 = vector.shape_cast %77 : vector<1x81x32xf32> to vector<81x32xf32>
    %79 = vector.broadcast %76 : f32 to vector<81x32xf32>
    %80 = arith.mulf %79, %78 : vector<81x32xf32>
    %81 = arith.addf %75, %80 : vector<81x32xf32>
    %c0_60 = arith.constant 0 : index
    %c25 = arith.constant 25 : index
    %82 = memref.load %arg0[%c0_60, %c25] : memref<2x26xf32, #tpu.memory_space<smem>>
    %c25_61 = arith.constant 25 : index
    %c0_62 = arith.constant 0 : index
    %c0_63 = arith.constant 0 : index
    %83 = vector.load %arg1[%c25_61, %c0_62, %c0_63] : memref<26x81x32xf32, #tpu.memory_space<vmem>>, vector<1x81x32xf32>
    %84 = vector.shape_cast %83 : vector<1x81x32xf32> to vector<81x32xf32>
    %85 = vector.broadcast %82 : f32 to vector<81x32xf32>
    %86 = arith.mulf %85, %84 : vector<81x32xf32>
    %87 = arith.addf %81, %86 : vector<81x32xf32>
    %c0_64 = arith.constant 0 : index
    %c2 = arith.constant 2 : index
    %88 = memref.load %arg0[%c0_64, %c2] : memref<2x26xf32, #tpu.memory_space<smem>>
    %c2_65 = arith.constant 2 : index
    %c0_66 = arith.constant 0 : index
    %c0_67 = arith.constant 0 : index
    %89 = vector.load %arg1[%c2_65, %c0_66, %c0_67] : memref<26x81x32xf32, #tpu.memory_space<vmem>>, vector<1x81x32xf32>
    %90 = vector.shape_cast %89 : vector<1x81x32xf32> to vector<81x32xf32>
    %91 = vector.broadcast %88 : f32 to vector<81x32xf32>
    %92 = arith.mulf %91, %90 : vector<81x32xf32>
    %c0_68 = arith.constant 0 : index
    %c6 = arith.constant 6 : index
    %93 = memref.load %arg0[%c0_68, %c6] : memref<2x26xf32, #tpu.memory_space<smem>>
    %c6_69 = arith.constant 6 : index
    %c0_70 = arith.constant 0 : index
    %c0_71 = arith.constant 0 : index
    %94 = vector.load %arg1[%c6_69, %c0_70, %c0_71] : memref<26x81x32xf32, #tpu.memory_space<vmem>>, vector<1x81x32xf32>
    %95 = vector.shape_cast %94 : vector<1x81x32xf32> to vector<81x32xf32>
    %96 = vector.broadcast %93 : f32 to vector<81x32xf32>
    %97 = arith.mulf %96, %95 : vector<81x32xf32>
    %98 = arith.addf %92, %97 : vector<81x32xf32>
    %c0_72 = arith.constant 0 : index
    %c10 = arith.constant 10 : index
    %99 = memref.load %arg0[%c0_72, %c10] : memref<2x26xf32, #tpu.memory_space<smem>>
    %c10_73 = arith.constant 10 : index
    %c0_74 = arith.constant 0 : index
    %c0_75 = arith.constant 0 : index
    %100 = vector.load %arg1[%c10_73, %c0_74, %c0_75] : memref<26x81x32xf32, #tpu.memory_space<vmem>>, vector<1x81x32xf32>
    %101 = vector.shape_cast %100 : vector<1x81x32xf32> to vector<81x32xf32>
    %102 = vector.broadcast %99 : f32 to vector<81x32xf32>
    %103 = arith.mulf %102, %101 : vector<81x32xf32>
    %104 = arith.addf %98, %103 : vector<81x32xf32>
    %c0_76 = arith.constant 0 : index
    %c14 = arith.constant 14 : index
    %105 = memref.load %arg0[%c0_76, %c14] : memref<2x26xf32, #tpu.memory_space<smem>>
    %c14_77 = arith.constant 14 : index
    %c0_78 = arith.constant 0 : index
    %c0_79 = arith.constant 0 : index
    %106 = vector.load %arg1[%c14_77, %c0_78, %c0_79] : memref<26x81x32xf32, #tpu.memory_space<vmem>>, vector<1x81x32xf32>
    %107 = vector.shape_cast %106 : vector<1x81x32xf32> to vector<81x32xf32>
    %108 = vector.broadcast %105 : f32 to vector<81x32xf32>
    %109 = arith.mulf %108, %107 : vector<81x32xf32>
    %110 = arith.addf %104, %109 : vector<81x32xf32>
    %c0_80 = arith.constant 0 : index
    %c18 = arith.constant 18 : index
    %111 = memref.load %arg0[%c0_80, %c18] : memref<2x26xf32, #tpu.memory_space<smem>>
    %c18_81 = arith.constant 18 : index
    %c0_82 = arith.constant 0 : index
    %c0_83 = arith.constant 0 : index
    %112 = vector.load %arg1[%c18_81, %c0_82, %c0_83] : memref<26x81x32xf32, #tpu.memory_space<vmem>>, vector<1x81x32xf32>
    %113 = vector.shape_cast %112 : vector<1x81x32xf32> to vector<81x32xf32>
    %114 = vector.broadcast %111 : f32 to vector<81x32xf32>
    %115 = arith.mulf %114, %113 : vector<81x32xf32>
    %116 = arith.addf %110, %115 : vector<81x32xf32>
    %c0_84 = arith.constant 0 : index
    %c22 = arith.constant 22 : index
    %117 = memref.load %arg0[%c0_84, %c22] : memref<2x26xf32, #tpu.memory_space<smem>>
    %c22_85 = arith.constant 22 : index
    %c0_86 = arith.constant 0 : index
    %c0_87 = arith.constant 0 : index
    %118 = vector.load %arg1[%c22_85, %c0_86, %c0_87] : memref<26x81x32xf32, #tpu.memory_space<vmem>>, vector<1x81x32xf32>
    %119 = vector.shape_cast %118 : vector<1x81x32xf32> to vector<81x32xf32>
    %120 = vector.broadcast %117 : f32 to vector<81x32xf32>
    %121 = arith.mulf %120, %119 : vector<81x32xf32>
    %122 = arith.addf %116, %121 : vector<81x32xf32>
    %c0_88 = arith.constant 0 : index
    %c3 = arith.constant 3 : index
    %123 = memref.load %arg0[%c0_88, %c3] : memref<2x26xf32, #tpu.memory_space<smem>>
    %c3_89 = arith.constant 3 : index
    %c0_90 = arith.constant 0 : index
    %c0_91 = arith.constant 0 : index
    %124 = vector.load %arg1[%c3_89, %c0_90, %c0_91] : memref<26x81x32xf32, #tpu.memory_space<vmem>>, vector<1x81x32xf32>
    %125 = vector.shape_cast %124 : vector<1x81x32xf32> to vector<81x32xf32>
    %126 = vector.broadcast %123 : f32 to vector<81x32xf32>
    %127 = arith.mulf %126, %125 : vector<81x32xf32>
    %c0_92 = arith.constant 0 : index
    %c7 = arith.constant 7 : index
    %128 = memref.load %arg0[%c0_92, %c7] : memref<2x26xf32, #tpu.memory_space<smem>>
    %c7_93 = arith.constant 7 : index
    %c0_94 = arith.constant 0 : index
    %c0_95 = arith.constant 0 : index
    %129 = vector.load %arg1[%c7_93, %c0_94, %c0_95] : memref<26x81x32xf32, #tpu.memory_space<vmem>>, vector<1x81x32xf32>
    %130 = vector.shape_cast %129 : vector<1x81x32xf32> to vector<81x32xf32>
    %131 = vector.broadcast %128 : f32 to vector<81x32xf32>
    %132 = arith.mulf %131, %130 : vector<81x32xf32>
    %133 = arith.addf %127, %132 : vector<81x32xf32>
    %c0_96 = arith.constant 0 : index
    %c11 = arith.constant 11 : index
    %134 = memref.load %arg0[%c0_96, %c11] : memref<2x26xf32, #tpu.memory_space<smem>>
    %c11_97 = arith.constant 11 : index
    %c0_98 = arith.constant 0 : index
    %c0_99 = arith.constant 0 : index
    %135 = vector.load %arg1[%c11_97, %c0_98, %c0_99] : memref<26x81x32xf32, #tpu.memory_space<vmem>>, vector<1x81x32xf32>
    %136 = vector.shape_cast %135 : vector<1x81x32xf32> to vector<81x32xf32>
    %137 = vector.broadcast %134 : f32 to vector<81x32xf32>
    %138 = arith.mulf %137, %136 : vector<81x32xf32>
    %139 = arith.addf %133, %138 : vector<81x32xf32>
    %c0_100 = arith.constant 0 : index
    %c15 = arith.constant 15 : index
    %140 = memref.load %arg0[%c0_100, %c15] : memref<2x26xf32, #tpu.memory_space<smem>>
    %c15_101 = arith.constant 15 : index
    %c0_102 = arith.constant 0 : index
    %c0_103 = arith.constant 0 : index
    %141 = vector.load %arg1[%c15_101, %c0_102, %c0_103] : memref<26x81x32xf32, #tpu.memory_space<vmem>>, vector<1x81x32xf32>
    %142 = vector.shape_cast %141 : vector<1x81x32xf32> to vector<81x32xf32>
    %143 = vector.broadcast %140 : f32 to vector<81x32xf32>
    %144 = arith.mulf %143, %142 : vector<81x32xf32>
    %145 = arith.addf %139, %144 : vector<81x32xf32>
    %c0_104 = arith.constant 0 : index
    %c19 = arith.constant 19 : index
    %146 = memref.load %arg0[%c0_104, %c19] : memref<2x26xf32, #tpu.memory_space<smem>>
    %c19_105 = arith.constant 19 : index
    %c0_106 = arith.constant 0 : index
    %c0_107 = arith.constant 0 : index
    %147 = vector.load %arg1[%c19_105, %c0_106, %c0_107] : memref<26x81x32xf32, #tpu.memory_space<vmem>>, vector<1x81x32xf32>
    %148 = vector.shape_cast %147 : vector<1x81x32xf32> to vector<81x32xf32>
    %149 = vector.broadcast %146 : f32 to vector<81x32xf32>
    %150 = arith.mulf %149, %148 : vector<81x32xf32>
    %151 = arith.addf %145, %150 : vector<81x32xf32>
    %c0_108 = arith.constant 0 : index
    %c23 = arith.constant 23 : index
    %152 = memref.load %arg0[%c0_108, %c23] : memref<2x26xf32, #tpu.memory_space<smem>>
    %c23_109 = arith.constant 23 : index
    %c0_110 = arith.constant 0 : index
    %c0_111 = arith.constant 0 : index
    %153 = vector.load %arg1[%c23_109, %c0_110, %c0_111] : memref<26x81x32xf32, #tpu.memory_space<vmem>>, vector<1x81x32xf32>
    %154 = vector.shape_cast %153 : vector<1x81x32xf32> to vector<81x32xf32>
    %155 = vector.broadcast %152 : f32 to vector<81x32xf32>
    %156 = arith.mulf %155, %154 : vector<81x32xf32>
    %157 = arith.addf %151, %156 : vector<81x32xf32>
    %158 = arith.addf %46, %87 : vector<81x32xf32>
    %159 = arith.addf %122, %157 : vector<81x32xf32>
    %160 = arith.addf %158, %159 : vector<81x32xf32>
    %c1_112 = arith.constant 1 : index
    %c0_113 = arith.constant 0 : index
    %161 = memref.load %arg0[%c1_112, %c0_113] : memref<2x26xf32, #tpu.memory_space<smem>>
    %c0_114 = arith.constant 0 : index
    %c0_115 = arith.constant 0 : index
    %c0_116 = arith.constant 0 : index
    %162 = vector.load %arg1[%c0_114, %c0_115, %c0_116] : memref<26x81x32xf32, #tpu.memory_space<vmem>>, vector<1x81x32xf32>
    %163 = vector.shape_cast %162 : vector<1x81x32xf32> to vector<81x32xf32>
    %164 = vector.broadcast %161 : f32 to vector<81x32xf32>
    %165 = arith.mulf %164, %163 : vector<81x32xf32>
    %c1_117 = arith.constant 1 : index
    %c4_118 = arith.constant 4 : index
    %166 = memref.load %arg0[%c1_117, %c4_118] : memref<2x26xf32, #tpu.memory_space<smem>>
    %c4_119 = arith.constant 4 : index
    %c0_120 = arith.constant 0 : index
    %c0_121 = arith.constant 0 : index
    %167 = vector.load %arg1[%c4_119, %c0_120, %c0_121] : memref<26x81x32xf32, #tpu.memory_space<vmem>>, vector<1x81x32xf32>
    %168 = vector.shape_cast %167 : vector<1x81x32xf32> to vector<81x32xf32>
    %169 = vector.broadcast %166 : f32 to vector<81x32xf32>
    %170 = arith.mulf %169, %168 : vector<81x32xf32>
    %171 = arith.addf %165, %170 : vector<81x32xf32>
    %c1_122 = arith.constant 1 : index
    %c8_123 = arith.constant 8 : index
    %172 = memref.load %arg0[%c1_122, %c8_123] : memref<2x26xf32, #tpu.memory_space<smem>>
    %c8_124 = arith.constant 8 : index
    %c0_125 = arith.constant 0 : index
    %c0_126 = arith.constant 0 : index
    %173 = vector.load %arg1[%c8_124, %c0_125, %c0_126] : memref<26x81x32xf32, #tpu.memory_space<vmem>>, vector<1x81x32xf32>
    %174 = vector.shape_cast %173 : vector<1x81x32xf32> to vector<81x32xf32>
    %175 = vector.broadcast %172 : f32 to vector<81x32xf32>
    %176 = arith.mulf %175, %174 : vector<81x32xf32>
    %177 = arith.addf %171, %176 : vector<81x32xf32>
    %c1_127 = arith.constant 1 : index
    %c12_128 = arith.constant 12 : index
    %178 = memref.load %arg0[%c1_127, %c12_128] : memref<2x26xf32, #tpu.memory_space<smem>>
    %c12_129 = arith.constant 12 : index
    %c0_130 = arith.constant 0 : index
    %c0_131 = arith.constant 0 : index
    %179 = vector.load %arg1[%c12_129, %c0_130, %c0_131] : memref<26x81x32xf32, #tpu.memory_space<vmem>>, vector<1x81x32xf32>
    %180 = vector.shape_cast %179 : vector<1x81x32xf32> to vector<81x32xf32>
    %181 = vector.broadcast %178 : f32 to vector<81x32xf32>
    %182 = arith.mulf %181, %180 : vector<81x32xf32>
    %183 = arith.addf %177, %182 : vector<81x32xf32>
    %c1_132 = arith.constant 1 : index
    %c16_133 = arith.constant 16 : index
    %184 = memref.load %arg0[%c1_132, %c16_133] : memref<2x26xf32, #tpu.memory_space<smem>>
    %c16_134 = arith.constant 16 : index
    %c0_135 = arith.constant 0 : index
    %c0_136 = arith.constant 0 : index
    %185 = vector.load %arg1[%c16_134, %c0_135, %c0_136] : memref<26x81x32xf32, #tpu.memory_space<vmem>>, vector<1x81x32xf32>
    %186 = vector.shape_cast %185 : vector<1x81x32xf32> to vector<81x32xf32>
    %187 = vector.broadcast %184 : f32 to vector<81x32xf32>
    %188 = arith.mulf %187, %186 : vector<81x32xf32>
    %189 = arith.addf %183, %188 : vector<81x32xf32>
    %c1_137 = arith.constant 1 : index
    %c20_138 = arith.constant 20 : index
    %190 = memref.load %arg0[%c1_137, %c20_138] : memref<2x26xf32, #tpu.memory_space<smem>>
    %c20_139 = arith.constant 20 : index
    %c0_140 = arith.constant 0 : index
    %c0_141 = arith.constant 0 : index
    %191 = vector.load %arg1[%c20_139, %c0_140, %c0_141] : memref<26x81x32xf32, #tpu.memory_space<vmem>>, vector<1x81x32xf32>
    %192 = vector.shape_cast %191 : vector<1x81x32xf32> to vector<81x32xf32>
    %193 = vector.broadcast %190 : f32 to vector<81x32xf32>
    %194 = arith.mulf %193, %192 : vector<81x32xf32>
    %195 = arith.addf %189, %194 : vector<81x32xf32>
    %c1_142 = arith.constant 1 : index
    %c24_143 = arith.constant 24 : index
    %196 = memref.load %arg0[%c1_142, %c24_143] : memref<2x26xf32, #tpu.memory_space<smem>>
    %c24_144 = arith.constant 24 : index
    %c0_145 = arith.constant 0 : index
    %c0_146 = arith.constant 0 : index
    %197 = vector.load %arg1[%c24_144, %c0_145, %c0_146] : memref<26x81x32xf32, #tpu.memory_space<vmem>>, vector<1x81x32xf32>
    %198 = vector.shape_cast %197 : vector<1x81x32xf32> to vector<81x32xf32>
    %199 = vector.broadcast %196 : f32 to vector<81x32xf32>
    %200 = arith.mulf %199, %198 : vector<81x32xf32>
    %201 = arith.addf %195, %200 : vector<81x32xf32>
    %c1_147 = arith.constant 1 : index
    %c1_148 = arith.constant 1 : index
    %202 = memref.load %arg0[%c1_147, %c1_148] : memref<2x26xf32, #tpu.memory_space<smem>>
    %c1_149 = arith.constant 1 : index
    %c0_150 = arith.constant 0 : index
    %c0_151 = arith.constant 0 : index
    %203 = vector.load %arg1[%c1_149, %c0_150, %c0_151] : memref<26x81x32xf32, #tpu.memory_space<vmem>>, vector<1x81x32xf32>
    %204 = vector.shape_cast %203 : vector<1x81x32xf32> to vector<81x32xf32>
    %205 = vector.broadcast %202 : f32 to vector<81x32xf32>
    %206 = arith.mulf %205, %204 : vector<81x32xf32>
    %c1_152 = arith.constant 1 : index
    %c5_153 = arith.constant 5 : index
    %207 = memref.load %arg0[%c1_152, %c5_153] : memref<2x26xf32, #tpu.memory_space<smem>>
    %c5_154 = arith.constant 5 : index
    %c0_155 = arith.constant 0 : index
    %c0_156 = arith.constant 0 : index
    %208 = vector.load %arg1[%c5_154, %c0_155, %c0_156] : memref<26x81x32xf32, #tpu.memory_space<vmem>>, vector<1x81x32xf32>
    %209 = vector.shape_cast %208 : vector<1x81x32xf32> to vector<81x32xf32>
    %210 = vector.broadcast %207 : f32 to vector<81x32xf32>
    %211 = arith.mulf %210, %209 : vector<81x32xf32>
    %212 = arith.addf %206, %211 : vector<81x32xf32>
    %c1_157 = arith.constant 1 : index
    %c9_158 = arith.constant 9 : index
    %213 = memref.load %arg0[%c1_157, %c9_158] : memref<2x26xf32, #tpu.memory_space<smem>>
    %c9_159 = arith.constant 9 : index
    %c0_160 = arith.constant 0 : index
    %c0_161 = arith.constant 0 : index
    %214 = vector.load %arg1[%c9_159, %c0_160, %c0_161] : memref<26x81x32xf32, #tpu.memory_space<vmem>>, vector<1x81x32xf32>
    %215 = vector.shape_cast %214 : vector<1x81x32xf32> to vector<81x32xf32>
    %216 = vector.broadcast %213 : f32 to vector<81x32xf32>
    %217 = arith.mulf %216, %215 : vector<81x32xf32>
    %218 = arith.addf %212, %217 : vector<81x32xf32>
    %c1_162 = arith.constant 1 : index
    %c13_163 = arith.constant 13 : index
    %219 = memref.load %arg0[%c1_162, %c13_163] : memref<2x26xf32, #tpu.memory_space<smem>>
    %c13_164 = arith.constant 13 : index
    %c0_165 = arith.constant 0 : index
    %c0_166 = arith.constant 0 : index
    %220 = vector.load %arg1[%c13_164, %c0_165, %c0_166] : memref<26x81x32xf32, #tpu.memory_space<vmem>>, vector<1x81x32xf32>
    %221 = vector.shape_cast %220 : vector<1x81x32xf32> to vector<81x32xf32>
    %222 = vector.broadcast %219 : f32 to vector<81x32xf32>
    %223 = arith.mulf %222, %221 : vector<81x32xf32>
    %224 = arith.addf %218, %223 : vector<81x32xf32>
    %c1_167 = arith.constant 1 : index
    %c17_168 = arith.constant 17 : index
    %225 = memref.load %arg0[%c1_167, %c17_168] : memref<2x26xf32, #tpu.memory_space<smem>>
    %c17_169 = arith.constant 17 : index
    %c0_170 = arith.constant 0 : index
    %c0_171 = arith.constant 0 : index
    %226 = vector.load %arg1[%c17_169, %c0_170, %c0_171] : memref<26x81x32xf32, #tpu.memory_space<vmem>>, vector<1x81x32xf32>
    %227 = vector.shape_cast %226 : vector<1x81x32xf32> to vector<81x32xf32>
    %228 = vector.broadcast %225 : f32 to vector<81x32xf32>
    %229 = arith.mulf %228, %227 : vector<81x32xf32>
    %230 = arith.addf %224, %229 : vector<81x32xf32>
    %c1_172 = arith.constant 1 : index
    %c21_173 = arith.constant 21 : index
    %231 = memref.load %arg0[%c1_172, %c21_173] : memref<2x26xf32, #tpu.memory_space<smem>>
    %c21_174 = arith.constant 21 : index
    %c0_175 = arith.constant 0 : index
    %c0_176 = arith.constant 0 : index
    %232 = vector.load %arg1[%c21_174, %c0_175, %c0_176] : memref<26x81x32xf32, #tpu.memory_space<vmem>>, vector<1x81x32xf32>
    %233 = vector.shape_cast %232 : vector<1x81x32xf32> to vector<81x32xf32>
    %234 = vector.broadcast %231 : f32 to vector<81x32xf32>
    %235 = arith.mulf %234, %233 : vector<81x32xf32>
    %236 = arith.addf %230, %235 : vector<81x32xf32>
    %c1_177 = arith.constant 1 : index
    %c25_178 = arith.constant 25 : index
    %237 = memref.load %arg0[%c1_177, %c25_178] : memref<2x26xf32, #tpu.memory_space<smem>>
    %c25_179 = arith.constant 25 : index
    %c0_180 = arith.constant 0 : index
    %c0_181 = arith.constant 0 : index
    %238 = vector.load %arg1[%c25_179, %c0_180, %c0_181] : memref<26x81x32xf32, #tpu.memory_space<vmem>>, vector<1x81x32xf32>
    %239 = vector.shape_cast %238 : vector<1x81x32xf32> to vector<81x32xf32>
    %240 = vector.broadcast %237 : f32 to vector<81x32xf32>
    %241 = arith.mulf %240, %239 : vector<81x32xf32>
    %242 = arith.addf %236, %241 : vector<81x32xf32>
    %c1_182 = arith.constant 1 : index
    %c2_183 = arith.constant 2 : index
    %243 = memref.load %arg0[%c1_182, %c2_183] : memref<2x26xf32, #tpu.memory_space<smem>>
    %c2_184 = arith.constant 2 : index
    %c0_185 = arith.constant 0 : index
    %c0_186 = arith.constant 0 : index
    %244 = vector.load %arg1[%c2_184, %c0_185, %c0_186] : memref<26x81x32xf32, #tpu.memory_space<vmem>>, vector<1x81x32xf32>
    %245 = vector.shape_cast %244 : vector<1x81x32xf32> to vector<81x32xf32>
    %246 = vector.broadcast %243 : f32 to vector<81x32xf32>
    %247 = arith.mulf %246, %245 : vector<81x32xf32>
    %c1_187 = arith.constant 1 : index
    %c6_188 = arith.constant 6 : index
    %248 = memref.load %arg0[%c1_187, %c6_188] : memref<2x26xf32, #tpu.memory_space<smem>>
    %c6_189 = arith.constant 6 : index
    %c0_190 = arith.constant 0 : index
    %c0_191 = arith.constant 0 : index
    %249 = vector.load %arg1[%c6_189, %c0_190, %c0_191] : memref<26x81x32xf32, #tpu.memory_space<vmem>>, vector<1x81x32xf32>
    %250 = vector.shape_cast %249 : vector<1x81x32xf32> to vector<81x32xf32>
    %251 = vector.broadcast %248 : f32 to vector<81x32xf32>
    %252 = arith.mulf %251, %250 : vector<81x32xf32>
    %253 = arith.addf %247, %252 : vector<81x32xf32>
    %c1_192 = arith.constant 1 : index
    %c10_193 = arith.constant 10 : index
    %254 = memref.load %arg0[%c1_192, %c10_193] : memref<2x26xf32, #tpu.memory_space<smem>>
    %c10_194 = arith.constant 10 : index
    %c0_195 = arith.constant 0 : index
    %c0_196 = arith.constant 0 : index
    %255 = vector.load %arg1[%c10_194, %c0_195, %c0_196] : memref<26x81x32xf32, #tpu.memory_space<vmem>>, vector<1x81x32xf32>
    %256 = vector.shape_cast %255 : vector<1x81x32xf32> to vector<81x32xf32>
    %257 = vector.broadcast %254 : f32 to vector<81x32xf32>
    %258 = arith.mulf %257, %256 : vector<81x32xf32>
    %259 = arith.addf %253, %258 : vector<81x32xf32>
    %c1_197 = arith.constant 1 : index
    %c14_198 = arith.constant 14 : index
    %260 = memref.load %arg0[%c1_197, %c14_198] : memref<2x26xf32, #tpu.memory_space<smem>>
    %c14_199 = arith.constant 14 : index
    %c0_200 = arith.constant 0 : index
    %c0_201 = arith.constant 0 : index
    %261 = vector.load %arg1[%c14_199, %c0_200, %c0_201] : memref<26x81x32xf32, #tpu.memory_space<vmem>>, vector<1x81x32xf32>
    %262 = vector.shape_cast %261 : vector<1x81x32xf32> to vector<81x32xf32>
    %263 = vector.broadcast %260 : f32 to vector<81x32xf32>
    %264 = arith.mulf %263, %262 : vector<81x32xf32>
    %265 = arith.addf %259, %264 : vector<81x32xf32>
    %c1_202 = arith.constant 1 : index
    %c18_203 = arith.constant 18 : index
    %266 = memref.load %arg0[%c1_202, %c18_203] : memref<2x26xf32, #tpu.memory_space<smem>>
    %c18_204 = arith.constant 18 : index
    %c0_205 = arith.constant 0 : index
    %c0_206 = arith.constant 0 : index
    %267 = vector.load %arg1[%c18_204, %c0_205, %c0_206] : memref<26x81x32xf32, #tpu.memory_space<vmem>>, vector<1x81x32xf32>
    %268 = vector.shape_cast %267 : vector<1x81x32xf32> to vector<81x32xf32>
    %269 = vector.broadcast %266 : f32 to vector<81x32xf32>
    %270 = arith.mulf %269, %268 : vector<81x32xf32>
    %271 = arith.addf %265, %270 : vector<81x32xf32>
    %c1_207 = arith.constant 1 : index
    %c22_208 = arith.constant 22 : index
    %272 = memref.load %arg0[%c1_207, %c22_208] : memref<2x26xf32, #tpu.memory_space<smem>>
    %c22_209 = arith.constant 22 : index
    %c0_210 = arith.constant 0 : index
    %c0_211 = arith.constant 0 : index
    %273 = vector.load %arg1[%c22_209, %c0_210, %c0_211] : memref<26x81x32xf32, #tpu.memory_space<vmem>>, vector<1x81x32xf32>
    %274 = vector.shape_cast %273 : vector<1x81x32xf32> to vector<81x32xf32>
    %275 = vector.broadcast %272 : f32 to vector<81x32xf32>
    %276 = arith.mulf %275, %274 : vector<81x32xf32>
    %277 = arith.addf %271, %276 : vector<81x32xf32>
    %c1_212 = arith.constant 1 : index
    %c3_213 = arith.constant 3 : index
    %278 = memref.load %arg0[%c1_212, %c3_213] : memref<2x26xf32, #tpu.memory_space<smem>>
    %c3_214 = arith.constant 3 : index
    %c0_215 = arith.constant 0 : index
    %c0_216 = arith.constant 0 : index
    %279 = vector.load %arg1[%c3_214, %c0_215, %c0_216] : memref<26x81x32xf32, #tpu.memory_space<vmem>>, vector<1x81x32xf32>
    %280 = vector.shape_cast %279 : vector<1x81x32xf32> to vector<81x32xf32>
    %281 = vector.broadcast %278 : f32 to vector<81x32xf32>
    %282 = arith.mulf %281, %280 : vector<81x32xf32>
    %c1_217 = arith.constant 1 : index
    %c7_218 = arith.constant 7 : index
    %283 = memref.load %arg0[%c1_217, %c7_218] : memref<2x26xf32, #tpu.memory_space<smem>>
    %c7_219 = arith.constant 7 : index
    %c0_220 = arith.constant 0 : index
    %c0_221 = arith.constant 0 : index
    %284 = vector.load %arg1[%c7_219, %c0_220, %c0_221] : memref<26x81x32xf32, #tpu.memory_space<vmem>>, vector<1x81x32xf32>
    %285 = vector.shape_cast %284 : vector<1x81x32xf32> to vector<81x32xf32>
    %286 = vector.broadcast %283 : f32 to vector<81x32xf32>
    %287 = arith.mulf %286, %285 : vector<81x32xf32>
    %288 = arith.addf %282, %287 : vector<81x32xf32>
    %c1_222 = arith.constant 1 : index
    %c11_223 = arith.constant 11 : index
    %289 = memref.load %arg0[%c1_222, %c11_223] : memref<2x26xf32, #tpu.memory_space<smem>>
    %c11_224 = arith.constant 11 : index
    %c0_225 = arith.constant 0 : index
    %c0_226 = arith.constant 0 : index
    %290 = vector.load %arg1[%c11_224, %c0_225, %c0_226] : memref<26x81x32xf32, #tpu.memory_space<vmem>>, vector<1x81x32xf32>
    %291 = vector.shape_cast %290 : vector<1x81x32xf32> to vector<81x32xf32>
    %292 = vector.broadcast %289 : f32 to vector<81x32xf32>
    %293 = arith.mulf %292, %291 : vector<81x32xf32>
    %294 = arith.addf %288, %293 : vector<81x32xf32>
    %c1_227 = arith.constant 1 : index
    %c15_228 = arith.constant 15 : index
    %295 = memref.load %arg0[%c1_227, %c15_228] : memref<2x26xf32, #tpu.memory_space<smem>>
    %c15_229 = arith.constant 15 : index
    %c0_230 = arith.constant 0 : index
    %c0_231 = arith.constant 0 : index
    %296 = vector.load %arg1[%c15_229, %c0_230, %c0_231] : memref<26x81x32xf32, #tpu.memory_space<vmem>>, vector<1x81x32xf32>
    %297 = vector.shape_cast %296 : vector<1x81x32xf32> to vector<81x32xf32>
    %298 = vector.broadcast %295 : f32 to vector<81x32xf32>
    %299 = arith.mulf %298, %297 : vector<81x32xf32>
    %300 = arith.addf %294, %299 : vector<81x32xf32>
    %c1_232 = arith.constant 1 : index
    %c19_233 = arith.constant 19 : index
    %301 = memref.load %arg0[%c1_232, %c19_233] : memref<2x26xf32, #tpu.memory_space<smem>>
    %c19_234 = arith.constant 19 : index
    %c0_235 = arith.constant 0 : index
    %c0_236 = arith.constant 0 : index
    %302 = vector.load %arg1[%c19_234, %c0_235, %c0_236] : memref<26x81x32xf32, #tpu.memory_space<vmem>>, vector<1x81x32xf32>
    %303 = vector.shape_cast %302 : vector<1x81x32xf32> to vector<81x32xf32>
    %304 = vector.broadcast %301 : f32 to vector<81x32xf32>
    %305 = arith.mulf %304, %303 : vector<81x32xf32>
    %306 = arith.addf %300, %305 : vector<81x32xf32>
    %c1_237 = arith.constant 1 : index
    %c23_238 = arith.constant 23 : index
    %307 = memref.load %arg0[%c1_237, %c23_238] : memref<2x26xf32, #tpu.memory_space<smem>>
    %c23_239 = arith.constant 23 : index
    %c0_240 = arith.constant 0 : index
    %c0_241 = arith.constant 0 : index
    %308 = vector.load %arg1[%c23_239, %c0_240, %c0_241] : memref<26x81x32xf32, #tpu.memory_space<vmem>>, vector<1x81x32xf32>
    %309 = vector.shape_cast %308 : vector<1x81x32xf32> to vector<81x32xf32>
    %310 = vector.broadcast %307 : f32 to vector<81x32xf32>
    %311 = arith.mulf %310, %309 : vector<81x32xf32>
    %312 = arith.addf %306, %311 : vector<81x32xf32>
    %313 = arith.addf %201, %242 : vector<81x32xf32>
    %314 = arith.addf %277, %312 : vector<81x32xf32>
    %315 = arith.addf %313, %314 : vector<81x32xf32>
    %cst_242 = arith.constant 0.000000e+00 : f32
    %316 = vector.broadcast %cst_242 : f32 to vector<1x32xf32>
    %cst_243 = arith.constant 0.000000e+00 : f32
    %317 = vector.broadcast %cst_243 : f32 to vector<1x32xf32>
    %cst_244 = arith.constant dense<0.000000e+00> : vector<32xf32>
    %318 = vector.multi_reduction <add>, %160, %cst_244 [0] : vector<81x32xf32> to vector<32xf32>
    %319 = vector.shape_cast %318 : vector<32xf32> to vector<1x32xf32>
    %320 = arith.addf %316, %319 : vector<1x32xf32>
    %321 = arith.mulf %160, %160 : vector<81x32xf32>
    %cst_245 = arith.constant dense<0.000000e+00> : vector<32xf32>
    %322 = vector.multi_reduction <add>, %321, %cst_245 [0] : vector<81x32xf32> to vector<32xf32>
    %323 = vector.shape_cast %322 : vector<32xf32> to vector<1x32xf32>
    %324 = arith.addf %317, %323 : vector<1x32xf32>
    %cst_246 = arith.constant dense<0.000000e+00> : vector<32xf32>
    %325 = vector.multi_reduction <add>, %315, %cst_246 [0] : vector<81x32xf32> to vector<32xf32>
    %326 = vector.shape_cast %325 : vector<32xf32> to vector<1x32xf32>
    %327 = arith.addf %320, %326 : vector<1x32xf32>
    %328 = arith.mulf %315, %315 : vector<81x32xf32>
    %cst_247 = arith.constant dense<0.000000e+00> : vector<32xf32>
    %329 = vector.multi_reduction <add>, %328, %cst_247 [0] : vector<81x32xf32> to vector<32xf32>
    %330 = vector.shape_cast %329 : vector<32xf32> to vector<1x32xf32>
    %331 = arith.addf %324, %330 : vector<1x32xf32>
    %cst_248 = arith.constant 9.800000e+01 : f32
    %332 = vector.broadcast %cst_248 : f32 to vector<1x32xf32>
    %333 = arith.divf %327, %332 : vector<1x32xf32>
    %cst_249 = arith.constant 9.800000e+01 : f32
    %334 = vector.broadcast %cst_249 : f32 to vector<1x32xf32>
    %335 = arith.divf %331, %334 : vector<1x32xf32>
    %336 = arith.mulf %333, %333 : vector<1x32xf32>
    %337 = arith.subf %335, %336 : vector<1x32xf32>
    %cst_250 = arith.constant 0.000000e+00 : f32
    %338 = vector.broadcast %cst_250 : f32 to vector<1x32xf32>
    %339 = arith.maximumf %337, %338 : vector<1x32xf32>
    %c0_251 = arith.constant 0 : index
    %c0_252 = arith.constant 0 : index
    %340 = vector.load %arg2[%c0_251, %c0_252] : memref<1x32xf32, #tpu.memory_space<vmem>>, vector<1x32xf32>
    %cst_253 = arith.constant 9.99999974E-6 : f32
    %341 = vector.broadcast %cst_253 : f32 to vector<1x32xf32>
    %342 = arith.addf %339, %341 : vector<1x32xf32>
    %343 = math.rsqrt %342 : vector<1x32xf32>
    %344 = arith.mulf %340, %343 : vector<1x32xf32>
    %c0_254 = arith.constant 0 : index
    %c0_255 = arith.constant 0 : index
    %345 = vector.load %arg3[%c0_254, %c0_255] : memref<1x32xf32, #tpu.memory_space<vmem>>, vector<1x32xf32>
    %346 = arith.mulf %333, %344 : vector<1x32xf32>
    %347 = arith.subf %345, %346 : vector<1x32xf32>
    %c0_256 = arith.constant 0 : index
    %c0_257 = arith.constant 0 : index
    %348 = vector.load %arg8[%c0_256, %c0_257] : memref<81x1xf32, #tpu.memory_space<vmem>>, vector<81x1xf32>
    %349 = vector.broadcast %344 : vector<1x32xf32> to vector<81x32xf32>
    %350 = arith.mulf %160, %349 : vector<81x32xf32>
    %351 = vector.broadcast %347 : vector<1x32xf32> to vector<81x32xf32>
    %352 = arith.addf %350, %351 : vector<81x32xf32>
    %cst_258 = arith.constant 0.000000e+00 : f32
    %353 = vector.broadcast %cst_258 : f32 to vector<81x32xf32>
    %354 = arith.maximumf %352, %353 : vector<81x32xf32>
    %355 = vector.broadcast %348 : vector<81x1xf32> to vector<81x32xf32>
    %356 = arith.mulf %354, %355 : vector<81x32xf32>
    %c26 = arith.constant 26 : index
    %c0_259 = arith.constant 0 : index
    %357 = vector.load %arg11[%c26, %c0_259] : memref<194x288xf32, #tpu.memory_space<vmem>>, vector<81x32xf32>
    tpu.vector_store %arg11[%c26, %c0_259], %356 {strides = array<i32>} : memref<194x288xf32, #tpu.memory_space<vmem>>, vector<81x32xf32>,
    %c25_260 = arith.constant 25 : index
    %c32 = arith.constant 32 : index
    %358 = vector.load %arg11[%c25_260, %c32] : memref<194x288xf32, #tpu.memory_space<vmem>>, vector<81x32xf32>
    tpu.vector_store %arg11[%c25_260, %c32], %356 {strides = array<i32>} : memref<194x288xf32, #tpu.memory_space<vmem>>, vector<81x32xf32>,
    %c24_261 = arith.constant 24 : index
    %c64 = arith.constant 64 : index
    %359 = vector.load %arg11[%c24_261, %c64] : memref<194x288xf32, #tpu.memory_space<vmem>>, vector<81x32xf32>
    tpu.vector_store %arg11[%c24_261, %c64], %356 {strides = array<i32>} : memref<194x288xf32, #tpu.memory_space<vmem>>, vector<81x32xf32>,
    %c17_262 = arith.constant 17 : index
    %c96 = arith.constant 96 : index
    %360 = vector.load %arg11[%c17_262, %c96] : memref<194x288xf32, #tpu.memory_space<vmem>>, vector<81x32xf32>
    tpu.vector_store %arg11[%c17_262, %c96], %356 {strides = array<i32>} : memref<194x288xf32, #tpu.memory_space<vmem>>, vector<81x32xf32>,
    %c16_263 = arith.constant 16 : index
    %c128 = arith.constant 128 : index
    %361 = vector.load %arg11[%c16_263, %c128] : memref<194x288xf32, #tpu.memory_space<vmem>>, vector<81x32xf32>
    tpu.vector_store %arg11[%c16_263, %c128], %356 {strides = array<i32>} : memref<194x288xf32, #tpu.memory_space<vmem>>, vector<81x32xf32>,
    %c15_264 = arith.constant 15 : index
    %c160 = arith.constant 160 : index
    %362 = vector.load %arg11[%c15_264, %c160] : memref<194x288xf32, #tpu.memory_space<vmem>>, vector<81x32xf32>
    tpu.vector_store %arg11[%c15_264, %c160], %356 {strides = array<i32>} : memref<194x288xf32, #tpu.memory_space<vmem>>, vector<81x32xf32>,
    %c8_265 = arith.constant 8 : index
    %c192 = arith.constant 192 : index
    %363 = vector.load %arg11[%c8_265, %c192] : memref<194x288xf32, #tpu.memory_space<vmem>>, vector<81x32xf32>
    tpu.vector_store %arg11[%c8_265, %c192], %356 {strides = array<i32>} : memref<194x288xf32, #tpu.memory_space<vmem>>, vector<81x32xf32>,
    %c7_266 = arith.constant 7 : index
    %c224 = arith.constant 224 : index
    %364 = vector.load %arg11[%c7_266, %c224] : memref<194x288xf32, #tpu.memory_space<vmem>>, vector<81x32xf32>
    tpu.vector_store %arg11[%c7_266, %c224], %356 {strides = array<i32>} : memref<194x288xf32, #tpu.memory_space<vmem>>, vector<81x32xf32>,
    %c6_267 = arith.constant 6 : index
    %c256 = arith.constant 256 : index
    %365 = vector.load %arg11[%c6_267, %c256] : memref<194x288xf32, #tpu.memory_space<vmem>>, vector<81x32xf32>
    tpu.vector_store %arg11[%c6_267, %c256], %356 {strides = array<i32>} : memref<194x288xf32, #tpu.memory_space<vmem>>, vector<81x32xf32>,
    %366 = vector.broadcast %344 : vector<1x32xf32> to vector<81x32xf32>
    %367 = arith.mulf %315, %366 : vector<81x32xf32>
    %368 = vector.broadcast %347 : vector<1x32xf32> to vector<81x32xf32>
    %369 = arith.addf %367, %368 : vector<81x32xf32>
    %cst_268 = arith.constant 0.000000e+00 : f32
    %370 = vector.broadcast %cst_268 : f32 to vector<81x32xf32>
    %371 = arith.maximumf %369, %370 : vector<81x32xf32>
    %372 = vector.broadcast %348 : vector<81x1xf32> to vector<81x32xf32>
    %373 = arith.mulf %371, %372 : vector<81x32xf32>
    %c107 = arith.constant 107 : index
    %c0_269 = arith.constant 0 : index
    %374 = vector.load %arg11[%c107, %c0_269] : memref<194x288xf32, #tpu.memory_space<vmem>>, vector<81x32xf32>
    tpu.vector_store %arg11[%c107, %c0_269], %373 {strides = array<i32>} : memref<194x288xf32, #tpu.memory_space<vmem>>, vector<81x32xf32>,
    %c106 = arith.constant 106 : index
    %c32_270 = arith.constant 32 : index
    %375 = vector.load %arg11[%c106, %c32_270] : memref<194x288xf32, #tpu.memory_space<vmem>>, vector<81x32xf32>
    tpu.vector_store %arg11[%c106, %c32_270], %373 {strides = array<i32>} : memref<194x288xf32, #tpu.memory_space<vmem>>, vector<81x32xf32>,
    %c105 = arith.constant 105 : index
    %c64_271 = arith.constant 64 : index
    %376 = vector.load %arg11[%c105, %c64_271] : memref<194x288xf32, #tpu.memory_space<vmem>>, vector<81x32xf32>
    tpu.vector_store %arg11[%c105, %c64_271], %373 {strides = array<i32>} : memref<194x288xf32, #tpu.memory_space<vmem>>, vector<81x32xf32>,
    %c98 = arith.constant 98 : index
    %c96_272 = arith.constant 96 : index
    %377 = vector.load %arg11[%c98, %c96_272] : memref<194x288xf32, #tpu.memory_space<vmem>>, vector<81x32xf32>
    tpu.vector_store %arg11[%c98, %c96_272], %373 {strides = array<i32>} : memref<194x288xf32, #tpu.memory_space<vmem>>, vector<81x32xf32>,
    %c97 = arith.constant 97 : index
    %c128_273 = arith.constant 128 : index
    %378 = vector.load %arg11[%c97, %c128_273] : memref<194x288xf32, #tpu.memory_space<vmem>>, vector<81x32xf32>
    tpu.vector_store %arg11[%c97, %c128_273], %373 {strides = array<i32>} : memref<194x288xf32, #tpu.memory_space<vmem>>, vector<81x32xf32>,
    %c96_274 = arith.constant 96 : index
    %c160_275 = arith.constant 160 : index
    %379 = vector.load %arg11[%c96_274, %c160_275] : memref<194x288xf32, #tpu.memory_space<vmem>>, vector<81x32xf32>
    tpu.vector_store %arg11[%c96_274, %c160_275], %373 {strides = array<i32>} : memref<194x288xf32, #tpu.memory_space<vmem>>, vector<81x32xf32>,
    %c89 = arith.constant 89 : index
    %c192_276 = arith.constant 192 : index
    %380 = vector.load %arg11[%c89, %c192_276] : memref<194x288xf32, #tpu.memory_space<vmem>>, vector<81x32xf32>
    tpu.vector_store %arg11[%c89, %c192_276], %373 {strides = array<i32>} : memref<194x288xf32, #tpu.memory_space<vmem>>, vector<81x32xf32>,
    %c88 = arith.constant 88 : index
    %c224_277 = arith.constant 224 : index
    %381 = vector.load %arg11[%c88, %c224_277] : memref<194x288xf32, #tpu.memory_space<vmem>>, vector<81x32xf32>
    tpu.vector_store %arg11[%c88, %c224_277], %373 {strides = array<i32>} : memref<194x288xf32, #tpu.memory_space<vmem>>, vector<81x32xf32>,
    %c87 = arith.constant 87 : index
    %c256_278 = arith.constant 256 : index
    %382 = vector.load %arg11[%c87, %c256_278] : memref<194x288xf32, #tpu.memory_space<vmem>>, vector<81x32xf32>
    tpu.vector_store %arg11[%c87, %c256_278], %373 {strides = array<i32>} : memref<194x288xf32, #tpu.memory_space<vmem>>, vector<81x32xf32>,
    %c16_279 = arith.constant 16 : index
    %c0_280 = arith.constant 0 : index
    %383 = vector.load %arg11[%c16_279, %c0_280] : memref<194x288xf32, #tpu.memory_space<vmem>>, vector<162x288xf32>
    %384 = arith.truncf %383 : vector<162x288xf32> to vector<162x288xbf16>
    %c0_281 = arith.constant 0 : index
    %c0_282 = arith.constant 0 : index
    %385 = vector.load %arg4[%c0_281, %c0_282] : memref<288x64xbf16, #tpu.memory_space<vmem>>, vector<288x64xbf16>
    %cst_283 = arith.constant dense<0.000000e+00> : vector<162x64xf32>
    %386 = tpu.matmul %384, %385, %cst_283 {dimension_numbers = #tpu.dot_dimension_numbers<[1], [0], [0], [1], [0, 0, 1, 1], [], []>} : vector<162x288xbf16>, vector<288x64xbf16>, vector<162x64xf32> -> vector<162x64xf32>
    %c0_284 = arith.constant 0 : index
    %c0_285 = arith.constant 0 : index
    %387 = vector.load %arg9[%c0_284, %c0_285] : memref<162x1xf32, #tpu.memory_space<vmem>>, vector<162x1xf32>
    %388 = vector.broadcast %387 : vector<162x1xf32> to vector<162x64xf32>
    %389 = arith.mulf %386, %388 : vector<162x64xf32>
    %cst_286 = arith.constant dense<0.000000e+00> : vector<64xf32>
    %390 = vector.multi_reduction <add>, %389, %cst_286 [0] : vector<162x64xf32> to vector<64xf32>
    %391 = vector.shape_cast %390 : vector<64xf32> to vector<1x64xf32>
    %392 = arith.mulf %386, %386 : vector<162x64xf32>
    %393 = vector.broadcast %387 : vector<162x1xf32> to vector<162x64xf32>
    %394 = arith.mulf %392, %393 : vector<162x64xf32>
    %cst_287 = arith.constant dense<0.000000e+00> : vector<64xf32>
    %395 = vector.multi_reduction <add>, %394, %cst_287 [0] : vector<162x64xf32> to vector<64xf32>
    %396 = vector.shape_cast %395 : vector<64xf32> to vector<1x64xf32>
    %397 = vector.extract_strided_slice %391 {offsets = [0, 0], sizes = [1, 16], strides = [1, 1]} : vector<1x64xf32> to vector<1x16xf32>
    %398 = vector.extract_strided_slice %391 {offsets = [0, 16], sizes = [1, 16], strides = [1, 1]} : vector<1x64xf32> to vector<1x16xf32>
    %399 = arith.addf %397, %398 : vector<1x16xf32>
    %400 = vector.extract_strided_slice %391 {offsets = [0, 32], sizes = [1, 16], strides = [1, 1]} : vector<1x64xf32> to vector<1x16xf32>
    %401 = arith.addf %399, %400 : vector<1x16xf32>
    %402 = vector.extract_strided_slice %391 {offsets = [0, 48], sizes = [1, 16], strides = [1, 1]} : vector<1x64xf32> to vector<1x16xf32>
    %403 = arith.addf %401, %402 : vector<1x16xf32>
    %404 = vector.extract_strided_slice %396 {offsets = [0, 0], sizes = [1, 16], strides = [1, 1]} : vector<1x64xf32> to vector<1x16xf32>
    %405 = vector.extract_strided_slice %396 {offsets = [0, 16], sizes = [1, 16], strides = [1, 1]} : vector<1x64xf32> to vector<1x16xf32>
    %406 = arith.addf %404, %405 : vector<1x16xf32>
    %407 = vector.extract_strided_slice %396 {offsets = [0, 32], sizes = [1, 16], strides = [1, 1]} : vector<1x64xf32> to vector<1x16xf32>
    %408 = arith.addf %406, %407 : vector<1x16xf32>
    %409 = vector.extract_strided_slice %396 {offsets = [0, 48], sizes = [1, 16], strides = [1, 1]} : vector<1x64xf32> to vector<1x16xf32>
    %410 = arith.addf %408, %409 : vector<1x16xf32>
    %cst_288 = arith.constant 3.920000e+02 : f32
    %411 = vector.broadcast %cst_288 : f32 to vector<1x16xf32>
    %412 = arith.divf %403, %411 : vector<1x16xf32>
    %cst_289 = arith.constant 3.920000e+02 : f32
    %413 = vector.broadcast %cst_289 : f32 to vector<1x16xf32>
    %414 = arith.divf %410, %413 : vector<1x16xf32>
    %415 = arith.mulf %412, %412 : vector<1x16xf32>
    %416 = arith.subf %414, %415 : vector<1x16xf32>
    %cst_290 = arith.constant 0.000000e+00 : f32
    %417 = vector.broadcast %cst_290 : f32 to vector<1x16xf32>
    %418 = arith.maximumf %416, %417 : vector<1x16xf32>
    %c0_291 = arith.constant 0 : index
    %c0_292 = arith.constant 0 : index
    %419 = vector.load %arg5[%c0_291, %c0_292] : memref<1x16xf32, #tpu.memory_space<vmem>>, vector<1x16xf32>
    %cst_293 = arith.constant 9.99999974E-6 : f32
    %420 = vector.broadcast %cst_293 : f32 to vector<1x16xf32>
    %421 = arith.addf %418, %420 : vector<1x16xf32>
    %422 = math.rsqrt %421 : vector<1x16xf32>
    %423 = arith.mulf %419, %422 : vector<1x16xf32>
    %c0_294 = arith.constant 0 : index
    %c0_295 = arith.constant 0 : index
    %424 = vector.load %arg6[%c0_294, %c0_295] : memref<1x16xf32, #tpu.memory_space<vmem>>, vector<1x16xf32>
    %425 = arith.mulf %412, %423 : vector<1x16xf32>
    %426 = arith.subf %424, %425 : vector<1x16xf32>
    %427 = tpu.concatenate %423, %423, %423, %423 in 1 : vector<1x16xf32>, vector<1x16xf32>, vector<1x16xf32>, vector<1x16xf32> -> vector<1x64xf32>
    %428 = tpu.concatenate %426, %426, %426, %426 in 1 : vector<1x16xf32>, vector<1x16xf32>, vector<1x16xf32>, vector<1x16xf32> -> vector<1x64xf32>
    %429 = vector.broadcast %427 : vector<1x64xf32> to vector<162x64xf32>
    %430 = arith.mulf %386, %429 : vector<162x64xf32>
    %431 = vector.broadcast %428 : vector<1x64xf32> to vector<162x64xf32>
    %432 = arith.addf %430, %431 : vector<162x64xf32>
    %cst_296 = arith.constant 0.000000e+00 : f32
    %433 = vector.broadcast %cst_296 : f32 to vector<162x64xf32>
    %434 = arith.maximumf %432, %433 : vector<162x64xf32>
    %435 = vector.broadcast %387 : vector<162x1xf32> to vector<162x64xf32>
    %436 = arith.mulf %434, %435 : vector<162x64xf32>
    %c26_297 = arith.constant 26 : index
    %c0_298 = arith.constant 0 : index
    %437 = vector.load %arg12[%c26_297, %c0_298] : memref<194x576xf32, #tpu.memory_space<vmem>>, vector<162x64xf32>
    tpu.vector_store %arg12[%c26_297, %c0_298], %436 {strides = array<i32>} : memref<194x576xf32, #tpu.memory_space<vmem>>, vector<162x64xf32>,
    %c25_299 = arith.constant 25 : index
    %c64_300 = arith.constant 64 : index
    %438 = vector.load %arg12[%c25_299, %c64_300] : memref<194x576xf32, #tpu.memory_space<vmem>>, vector<162x64xf32>
    tpu.vector_store %arg12[%c25_299, %c64_300], %436 {strides = array<i32>} : memref<194x576xf32, #tpu.memory_space<vmem>>, vector<162x64xf32>,
    %c24_301 = arith.constant 24 : index
    %c128_302 = arith.constant 128 : index
    %439 = vector.load %arg12[%c24_301, %c128_302] : memref<194x576xf32, #tpu.memory_space<vmem>>, vector<162x64xf32>
    tpu.vector_store %arg12[%c24_301, %c128_302], %436 {strides = array<i32>} : memref<194x576xf32, #tpu.memory_space<vmem>>, vector<162x64xf32>,
    %c17_303 = arith.constant 17 : index
    %c192_304 = arith.constant 192 : index
    %440 = vector.load %arg12[%c17_303, %c192_304] : memref<194x576xf32, #tpu.memory_space<vmem>>, vector<162x64xf32>
    tpu.vector_store %arg12[%c17_303, %c192_304], %436 {strides = array<i32>} : memref<194x576xf32, #tpu.memory_space<vmem>>, vector<162x64xf32>,
    %c16_305 = arith.constant 16 : index
    %c256_306 = arith.constant 256 : index
    %441 = vector.load %arg12[%c16_305, %c256_306] : memref<194x576xf32, #tpu.memory_space<vmem>>, vector<162x64xf32>
    tpu.vector_store %arg12[%c16_305, %c256_306], %436 {strides = array<i32>} : memref<194x576xf32, #tpu.memory_space<vmem>>, vector<162x64xf32>,
    %c15_307 = arith.constant 15 : index
    %c320 = arith.constant 320 : index
    %442 = vector.load %arg12[%c15_307, %c320] : memref<194x576xf32, #tpu.memory_space<vmem>>, vector<162x64xf32>
    tpu.vector_store %arg12[%c15_307, %c320], %436 {strides = array<i32>} : memref<194x576xf32, #tpu.memory_space<vmem>>, vector<162x64xf32>,
    %c8_308 = arith.constant 8 : index
    %c384 = arith.constant 384 : index
    %443 = vector.load %arg12[%c8_308, %c384] : memref<194x576xf32, #tpu.memory_space<vmem>>, vector<162x64xf32>
    tpu.vector_store %arg12[%c8_308, %c384], %436 {strides = array<i32>} : memref<194x576xf32, #tpu.memory_space<vmem>>, vector<162x64xf32>,
    %c7_309 = arith.constant 7 : index
    %c448 = arith.constant 448 : index
    %444 = vector.load %arg12[%c7_309, %c448] : memref<194x576xf32, #tpu.memory_space<vmem>>, vector<162x64xf32>
    tpu.vector_store %arg12[%c7_309, %c448], %436 {strides = array<i32>} : memref<194x576xf32, #tpu.memory_space<vmem>>, vector<162x64xf32>,
    %c6_310 = arith.constant 6 : index
    %c512 = arith.constant 512 : index
    %445 = vector.load %arg12[%c6_310, %c512] : memref<194x576xf32, #tpu.memory_space<vmem>>, vector<162x64xf32>
    tpu.vector_store %arg12[%c6_310, %c512], %436 {strides = array<i32>} : memref<194x576xf32, #tpu.memory_space<vmem>>, vector<162x64xf32>,
    %c16_311 = arith.constant 16 : index
    %c0_312 = arith.constant 0 : index
    %446 = vector.load %arg12[%c16_311, %c0_312] : memref<194x576xf32, #tpu.memory_space<vmem>>, vector<162x576xf32>
    %447 = arith.truncf %446 : vector<162x576xf32> to vector<162x576xbf16>
    %c0_313 = arith.constant 0 : index
    %c0_314 = arith.constant 0 : index
    %448 = vector.load %arg7[%c0_313, %c0_314] : memref<576x128xbf16, #tpu.memory_space<vmem>>, vector<576x128xbf16>
    %cst_315 = arith.constant dense<0.000000e+00> : vector<162x128xf32>
    %449 = tpu.matmul %447, %448, %cst_315 {dimension_numbers = #tpu.dot_dimension_numbers<[1], [0], [0], [1], [0, 0, 1, 1], [], []>} : vector<162x576xbf16>, vector<576x128xbf16>, vector<162x128xf32> -> vector<162x128xf32>
    %450 = math.tanh %449 : vector<162x128xf32>
    %c0_316 = arith.constant 0 : index
    %c0_317 = arith.constant 0 : index
    %451 = vector.load %arg10[%c0_316, %c0_317] : memref<162x128xf32, #tpu.memory_space<vmem>>, vector<162x128xf32>
    tpu.vector_store %arg10[%c0_316, %c0_317], %450 {strides = array<i32>} : memref<162x128xf32, #tpu.memory_space<vmem>>, vector<162x128xf32>,
    return
  }
}

</mosaic_0001>

<llo_original>
// kernel: generator_forward.1
$region0: #{generator_forward.1}
  #allocation0 [shape = 'u32[]', space=smem, size = 0x4, offset = 0x4, fixed_abs, tag = 'smem constant byte address 0x4 - core index']
  #allocation1 [shape = 'u32[72,128]{1,0:T(1,128)}', space=vmem, size = 0x9000, scoped, tag = 'internal scratch']
  #allocation2 [shape = 'f32[194,288]{1,0:T(8,128)}', space=vmem, size = 0x4b000, scoped, tag = 'scratch operand']
  #allocation3 [shape = 'f32[194,576]{1,0:T(8,128)}', space=vmem, size = 0x7d000, scoped, tag = 'scratch operand']
  %s0 = inlined_call_operand.vmem [shape: f32[2,26], index: 0, kind: input, shape index: {}]
  %s1 = inlined_call_operand.vmem [shape: f32[26,81,32], index: 1, kind: input, shape index: {}]
  %s2 = inlined_call_operand.vmem [shape: f32[1,32], index: 2, kind: input, shape index: {}]
  %s3 = inlined_call_operand.vmem [shape: f32[1,32], index: 3, kind: input, shape index: {}]
  %s4 = inlined_call_operand.vmem [shape: bf16[288,64], index: 4, kind: input, shape index: {}]
  %s5 = inlined_call_operand.vmem [shape: f32[1,16], index: 5, kind: input, shape index: {}]
  %s6 = inlined_call_operand.vmem [shape: f32[1,16], index: 6, kind: input, shape index: {}]
  %s7 = inlined_call_operand.vmem [shape: bf16[576,128], index: 7, kind: input, shape index: {}]
  %s8 = inlined_call_operand.vmem [shape: f32[81,1], index: 8, kind: input, shape index: {}]
  %s9 = inlined_call_operand.vmem [shape: f32[162,1], index: 9, kind: input, shape index: {}]
  %s10 = inlined_call_operand.vmem [shape: f32[162,128], index: 10, kind: output, shape index: {}]
  %s11 = sld [smem:[#allocation0]]
  $region54: #{generator_forward.1} parent=0
    _
  %s13 = ssub.s32 1, %s11
  %s14 = scalar_select 0, %s13, %s11
  $region1: #{generator_forward.1} parent=0
    #allocation4 [shape = 'u8[1024]{0}', space=smem, size = 0x400, scoped, tag = 'input window, operand 0, single buffered']
    #allocation5 [shape = 's32[1]{0}', space=sflag, size = 0x4, scoped, tag = 'scoped memory for generator_forward.1']
    %15 = vsyncpa [#allocation5], 0
    // Predicated region
    $region2: #{generator_forward.1} parent=1 // pred_check
      _
    $region3: #{generator_forward.1} parent=1 // pred_check_branch
      %17 = sbr.rel (0) target = $region5
    $region4: #{generator_forward.1} parent=1 // pred_region
      %19 = vsyncadd [#allocation5], 0
      %s21 = sshll.u32 %s0, 4
      %s22 = int_to_ptr.vmem [resolvable:$true] %s21
      %24 = dma.vmem_to_smem %s22, 32, [#allocation4], [#allocation5]
    $region5: #{generator_forward.1} parent=1 // pred_fallthru
      _
    // Predicated region
    $region6: #{generator_forward.1} parent=1 // pred_check
      _
    $region7: #{generator_forward.1} parent=1 // pred_check_branch
      %26 = sbr.rel (0) target = $region9
    $region8: #{generator_forward.1} parent=1 // pred_region
      _
    $region9: #{generator_forward.1} parent=1 // pred_fallthru
      _
    // Predicated region
    $region10: #{generator_forward.1} parent=1 // pred_check
      _
    $region11: #{generator_forward.1} parent=1 // pred_check_branch
      %28 = sbr.rel (0) target = $region13
    $region12: #{generator_forward.1} parent=1 // pred_region
      _
    $region13: #{generator_forward.1} parent=1 // pred_fallthru
      _
    // Predicated region
    $region14: #{generator_forward.1} parent=1 // pred_check
      _
    $region15: #{generator_forward.1} parent=1 // pred_check_branch
      %30 = sbr.rel (0) target = $region17
    $region16: #{generator_forward.1} parent=1 // pred_region
      _
    $region17: #{generator_forward.1} parent=1 // pred_fallthru
      _
    // Predicated region
    $region18: #{generator_forward.1} parent=1 // pred_check
      _
    $region19: #{generator_forward.1} parent=1 // pred_check_branch
      %32 = sbr.rel (0) target = $region21
    $region20: #{generator_forward.1} parent=1 // pred_region
      _
    $region21: #{generator_forward.1} parent=1 // pred_fallthru
      _
    // Predicated region
    $region22: #{generator_forward.1} parent=1 // pred_check
      _
    $region23: #{generator_forward.1} parent=1 // pred_check_branch
      %34 = sbr.rel (0) target = $region25
    $region24: #{generator_forward.1} parent=1 // pred_region
      _
    $region25: #{generator_forward.1} parent=1 // pred_fallthru
      _
    // Predicated region
    $region26: #{generator_forward.1} parent=1 // pred_check
      _
    $region27: #{generator_forward.1} parent=1 // pred_check_branch
      %36 = sbr.rel (0) target = $region29
    $region28: #{generator_forward.1} parent=1 // pred_region
      _
    $region29: #{generator_forward.1} parent=1 // pred_fallthru
      _
    // Predicated region
    $region30: #{generator_forward.1} parent=1 // pred_check
      _
    $region31: #{generator_forward.1} parent=1 // pred_check_branch
      %38 = sbr.rel (0) target = $region33
    $region32: #{generator_forward.1} parent=1 // pred_region
      _
    $region33: #{generator_forward.1} parent=1 // pred_fallthru
      _
    // Predicated region
    $region34: #{generator_forward.1} parent=1 // pred_check
      _
    $region35: #{generator_forward.1} parent=1 // pred_check_branch
      %40 = sbr.rel (0) target = $region37
    $region36: #{generator_forward.1} parent=1 // pred_region
      _
    $region37: #{generator_forward.1} parent=1 // pred_fallthru
      _
    // Predicated region
    $region38: #{generator_forward.1} parent=1 // pred_check
      _
    $region39: #{generator_forward.1} parent=1 // pred_check_branch
      %42 = sbr.rel (0) target = $region41
    $region40: #{generator_forward.1} parent=1 // pred_region
      _
    $region41: #{generator_forward.1} parent=1 // pred_fallthru
      _
    // Predicated region
    $region42: #{generator_forward.1} parent=1 // pred_check
      _
    $region43: #{generator_forward.1} parent=1 // pred_check_branch
      %44 = sbr.rel (0) target = $region45
    $region44: #{generator_forward.1} parent=1 // pred_region
      %46 = dma.done [#allocation5], 32
    $region45: #{generator_forward.1} parent=1 // pred_fallthru
      _
    %47 = sfence
    %49 = vst [vmem:[#allocation2 + $0x30] sm:$0xff] 0.0
    %50 = vst [vmem:[#allocation2 + $0x38] sm:$0xff] 0.0
    %vm51 = vcmask 261120
    %52 = vst.msk [vmem:[#allocation2 + $0x40] sm:$0xff] %vm51, 0.0
    %53 = vst [vmem:[#allocation2 + $0x48] sm:$0xff] 0.0
    %54 = vst [vmem:[#allocation2 + $0x50] sm:$0xff] 0.0
    %55 = vst.msk [vmem:[#allocation2 + $0x58] sm:$0xff] %vm51, 0.0
    %56 = vst [vmem:[#allocation2 + $0x1e0] sm:$0xfc] 0.0
    %57 = vst [vmem:[#allocation2 + $0x1e8] sm:$0xfc] 0.0
    %vm58 = vcmask 261122
    %59 = vst.msk [vmem:[#allocation2 + $0x1f0] sm:$0xfc] %vm58, 0.0
    %60 = vst [vmem:[#allocation2 + $0x1f8] sm:$0xff] 0.0
    %61 = vst [vmem:[#allocation2 + $0x200] sm:$0xff] 0.0
    %62 = vst.msk [vmem:[#allocation2 + $0x208] sm:$0xff] %vm51, 0.0
    %63 = vst [vmem:[#allocation2 + $0x210] sm:$0x3] 0.0
    %64 = vst [vmem:[#allocation2 + $0x218] sm:$0x3] 0.0
    %vm65 = vcmask 254976
    %66 = vst.msk [vmem:[#allocation2 + $0x220] sm:$0x3] %vm65, 0.0
    %67 = vst [vmem:[#allocation3 + $0x50] sm:$0xff] 0.0
    %68 = vst [vmem:[#allocation3 + $0x58] sm:$0xff] 0.0
    %69 = vst [vmem:[#allocation3 + $0x60] sm:$0xff] 0.0
    %70 = vst [vmem:[#allocation3 + $0x68] sm:$0xff] 0.0
    %vm71 = vcmask 523264
    %72 = vst.msk [vmem:[#allocation3 + $0x70] sm:$0xff] %vm71, 0.0
    %73 = vst [vmem:[#allocation3 + $0x78] sm:$0xff] 0.0
    %74 = vst [vmem:[#allocation3 + $0x80] sm:$0xff] 0.0
    %75 = vst [vmem:[#allocation3 + $0x88] sm:$0xff] 0.0
    %76 = vst [vmem:[#allocation3 + $0x90] sm:$0xff] 0.0
    %77 = vst.msk [vmem:[#allocation3 + $0x98] sm:$0xff] %vm71, 0.0
    %78 = vst [vmem:[#allocation3 + $0x320] sm:$0xfc] 0.0
    %79 = vst [vmem:[#allocation3 + $0x328] sm:$0xfc] 0.0
    %80 = vst [vmem:[#allocation3 + $0x330] sm:$0xfc] 0.0
    %81 = vst [vmem:[#allocation3 + $0x338] sm:$0xfc] 0.0
    %vm82 = vcmask 523266
    %83 = vst.msk [vmem:[#allocation3 + $0x340] sm:$0xfc] %vm82, 0.0
    %84 = vst [vmem:[#allocation3 + $0x348] sm:$0xff] 0.0
    %85 = vst [vmem:[#allocation3 + $0x350] sm:$0xff] 0.0
    %86 = vst [vmem:[#allocation3 + $0x358] sm:$0xff] 0.0
    %87 = vst [vmem:[#allocation3 + $0x360] sm:$0xff] 0.0
    %88 = vst.msk [vmem:[#allocation3 + $0x368] sm:$0xff] %vm71, 0.0
    %89 = vst [vmem:[#allocation3 + $0x370] sm:$0x3] 0.0
    %90 = vst [vmem:[#allocation3 + $0x378] sm:$0x3] 0.0
    %91 = vst [vmem:[#allocation3 + $0x380] sm:$0x3] 0.0
    %92 = vst [vmem:[#allocation3 + $0x388] sm:$0x3] 0.0
    %vm93 = vcmask 517120
    %94 = vst.msk [vmem:[#allocation3 + $0x390] sm:$0x3] %vm93, 0.0
    %s95 = sld [smem:[#allocation4]]
    %v96 = vld [vmem:[%s1] sm:$0xff]
    %v97 = vld [vmem:[%s1 + $0x8] sm:$0xff]
    %v98 = vld [vmem:[%s1 + $0x10] sm:$0xff]
    %v99 = vld [vmem:[%s1 + $0x18] sm:$0xff]
    %v100 = vld [vmem:[%s1 + $0x20] sm:$0xff]
    %v101 = vld [vmem:[%s1 + $0x28] sm:$0xff]
    %v102 = vld [vmem:[%s1 + $0x30] sm:$0xff]
    %v103 = vld [vmem:[%s1 + $0x38] sm:$0xff]
    %v104 = vld [vmem:[%s1 + $0x40] sm:$0xff]
    %v105 = vld [vmem:[%s1 + $0x48] sm:$0xff]
    %v106 = vld [vmem:[%s1 + $0x50] sm:$0x1]
    %v107 = vstv %s95
    %v108 = vmul.f32 %v107, %v96
    %v109 = vmul.f32 %v107, %v97
    %v110 = vmul.f32 %v107, %v98
    %v111 = vmul.f32 %v107, %v99
    %v112 = vmul.f32 %v107, %v100
    %v113 = vmul.f32 %v107, %v101
    %v114 = vmul.f32 %v107, %v102
    %v115 = vmul.f32 %v107, %v103
    %v116 = vmul.f32 %v107, %v104
    %v117 = vmul.f32 %v107, %v105
    %v118 = vmul.f32 %v107, %v106
    %s119 = sld [smem:[#allocation4 + $0x4]]
    %s120 = scalar_lea.vmem %s1, 352
    %v121 = vld [vmem:[%s120] sm:$0xff]
    %v122 = vld [vmem:[%s120 + $0x8] sm:$0xff]
    %v123 = vld [vmem:[%s120 + $0x10] sm:$0xff]
    %v124 = vld [vmem:[%s120 + $0x18] sm:$0xff]
    %v125 = vld [vmem:[%s120 + $0x20] sm:$0xff]
    %v126 = vld [vmem:[%s120 + $0x28] sm:$0xff]
    %v127 = vld [vmem:[%s120 + $0x30] sm:$0xff]
    %v128 = vld [vmem:[%s120 + $0x38] sm:$0xff]
    %v129 = vld [vmem:[%s120 + $0x40] sm:$0xff]
    %v130 = vld [vmem:[%s120 + $0x48] sm:$0xff]
    %v131 = vld [vmem:[%s120 + $0x50] sm:$0x1]
    %v132 = vstv %s119
    %v133 = vmul.f32 %v132, %v121
    %v134 = vmul.f32 %v132, %v122
    %v135 = vmul.f32 %v132, %v123
    %v136 = vmul.f32 %v132, %v124
    %v137 = vmul.f32 %v132, %v125
    %v138 = vmul.f32 %v132, %v126
    %v139 = vmul.f32 %v132, %v127
    %v140 = vmul.f32 %v132, %v128
    %v141 = vmul.f32 %v132, %v129
    %v142 = vmul.f32 %v132, %v130
    %v143 = vmul.f32 %v132, %v131
    %v144 = vadd.f32 %v108, %v133
    %v145 = vadd.f32 %v109, %v134
    %v146 = vadd.f32 %v110, %v135
    %v147 = vadd.f32 %v111, %v136
    %v148 = vadd.f32 %v112, %v137
    %v149 = vadd.f32 %v113, %v138
    %v150 = vadd.f32 %v114, %v139
    %v151 = vadd.f32 %v115, %v140
    %v152 = vadd.f32 %v116, %v141
    %v153 = vadd.f32 %v117, %v142
    %v154 = vadd.f32 %v118, %v143
    %s155 = sld [smem:[#allocation4 + $0x8]]
    %s156 = scalar_lea.vmem %s1, 704
    %v157 = vld [vmem:[%s156] sm:$0xff]
    %v158 = vld [vmem:[%s156 + $0x8] sm:$0xff]
    %v159 = vld [vmem:[%s156 + $0x10] sm:$0xff]
    %v160 = vld [vmem:[%s156 + $0x18] sm:$0xff]
    %v161 = vld [vmem:[%s156 + $0x20] sm:$0xff]
    %v162 = vld [vmem:[%s156 + $0x28] sm:$0xff]
    %v163 = vld [vmem:[%s156 + $0x30] sm:$0xff]
    %v164 = vld [vmem:[%s156 + $0x38] sm:$0xff]
    %v165 = vld [vmem:[%s156 + $0x40] sm:$0xff]
    %v166 = vld [vmem:[%s156 + $0x48] sm:$0xff]
    %v167 = vld [vmem:[%s156 + $0x50] sm:$0x1]
    %v168 = vstv %s155
    %v169 = vmul.f32 %v168, %v157
    %v170 = vmul.f32 %v168, %v158
    %v171 = vmul.f32 %v168, %v159
    %v172 = vmul.f32 %v168, %v160
    %v173 = vmul.f32 %v168, %v161
    %v174 = vmul.f32 %v168, %v162
    %v175 = vmul.f32 %v168, %v163
    %v176 = vmul.f32 %v168, %v164
    %v177 = vmul.f32 %v168, %v165
    %v178 = vmul.f32 %v168, %v166
    %v179 = vmul.f32 %v168, %v167
    %v180 = vadd.f32 %v144, %v169
    %v181 = vadd.f32 %v145, %v170
    %v182 = vadd.f32 %v146, %v171
    %v183 = vadd.f32 %v147, %v172
    %v184 = vadd.f32 %v148, %v173
    %v185 = vadd.f32 %v149, %v174
    %v186 = vadd.f32 %v150, %v175
    %v187 = vadd.f32 %v151, %v176
    %v188 = vadd.f32 %v152, %v177
    %v189 = vadd.f32 %v153, %v178
    %v190 = vadd.f32 %v154, %v179
    %s191 = sld [smem:[#allocation4 + $0xc]]
    %s192 = scalar_lea.vmem %s1, 1056
    %v193 = vld [vmem:[%s192] sm:$0xff]
    %v194 = vld [vmem:[%s192 + $0x8] sm:$0xff]
    %v195 = vld [vmem:[%s192 + $0x10] sm:$0xff]
    %v196 = vld [vmem:[%s192 + $0x18] sm:$0xff]
    %v197 = vld [vmem:[%s192 + $0x20] sm:$0xff]
    %v198 = vld [vmem:[%s192 + $0x28] sm:$0xff]
    %v199 = vld [vmem:[%s192 + $0x30] sm:$0xff]
    %v200 = vld [vmem:[%s192 + $0x38] sm:$0xff]
    %v201 = vld [vmem:[%s192 + $0x40] sm:$0xff]
    %v202 = vld [vmem:[%s192 + $0x48] sm:$0xff]
    %v203 = vld [vmem:[%s192 + $0x50] sm:$0x1]
    %v204 = vstv %s191
    %v205 = vmul.f32 %v204, %v193
    %v206 = vmul.f32 %v204, %v194
    %v207 = vmul.f32 %v204, %v195
    %v208 = vmul.f32 %v204, %v196
    %v209 = vmul.f32 %v204, %v197
    %v210 = vmul.f32 %v204, %v198
    %v211 = vmul.f32 %v204, %v199
    %v212 = vmul.f32 %v204, %v200
    %v213 = vmul.f32 %v204, %v201
    %v214 = vmul.f32 %v204, %v202
    %v215 = vmul.f32 %v204, %v203
    %v216 = vadd.f32 %v180, %v205
    %v217 = vadd.f32 %v181, %v206
    %v218 = vadd.f32 %v182, %v207
    %v219 = vadd.f32 %v183, %v208
    %v220 = vadd.f32 %v184, %v209
    %v221 = vadd.f32 %v185, %v210
    %v222 = vadd.f32 %v186, %v211
    %v223 = vadd.f32 %v187, %v212
    %v224 = vadd.f32 %v188, %v213
    %v225 = vadd.f32 %v189, %v214
    %v226 = vadd.f32 %v190, %v215
    %s227 = sld [smem:[#allocation4 + $0x10]]
    %s228 = scalar_lea.vmem %s1, 1408
    %v229 = vld [vmem:[%s228] sm:$0xff]
    %v230 = vld [vmem:[%s228 + $0x8] sm:$0xff]
    %v231 = vld [vmem:[%s228 + $0x10] sm:$0xff]
    %v232 = vld [vmem:[%s228 + $0x18] sm:$0xff]
    %v233 = vld [vmem:[%s228 + $0x20] sm:$0xff]
    %v234 = vld [vmem:[%s228 + $0x28] sm:$0xff]
    %v235 = vld [vmem:[%s228 + $0x30] sm:$0xff]
    %v236 = vld [vmem:[%s228 + $0x38] sm:$0xff]
    %v237 = vld [vmem:[%s228 + $0x40] sm:$0xff]
    %v238 = vld [vmem:[%s228 + $0x48] sm:$0xff]
    %v239 = vld [vmem:[%s228 + $0x50] sm:$0x1]
    %v240 = vstv %s227
    %v241 = vmul.f32 %v240, %v229
    %v242 = vmul.f32 %v240, %v230
    %v243 = vmul.f32 %v240, %v231
    %v244 = vmul.f32 %v240, %v232
    %v245 = vmul.f32 %v240, %v233
    %v246 = vmul.f32 %v240, %v234
    %v247 = vmul.f32 %v240, %v235
    %v248 = vmul.f32 %v240, %v236
    %v249 = vmul.f32 %v240, %v237
    %v250 = vmul.f32 %v240, %v238
    %v251 = vmul.f32 %v240, %v239
    %v252 = vadd.f32 %v216, %v241
    %v253 = vadd.f32 %v217, %v242
    %v254 = vadd.f32 %v218, %v243
    %v255 = vadd.f32 %v219, %v244
    %v256 = vadd.f32 %v220, %v245
    %v257 = vadd.f32 %v221, %v246
    %v258 = vadd.f32 %v222, %v247
    %v259 = vadd.f32 %v223, %v248
    %v260 = vadd.f32 %v224, %v249
    %v261 = vadd.f32 %v225, %v250
    %v262 = vadd.f32 %v226, %v251
    %s263 = sld [smem:[#allocation4 + $0x14]]
    %s264 = scalar_lea.vmem %s1, 1760
    %v265 = vld [vmem:[%s264] sm:$0xff]
    %v266 = vld [vmem:[%s264 + $0x8] sm:$0xff]
    %v267 = vld [vmem:[%s264 + $0x10] sm:$0xff]
    %v268 = vld [vmem:[%s264 + $0x18] sm:$0xff]
    %v269 = vld [vmem:[%s264 + $0x20] sm:$0xff]
    %v270 = vld [vmem:[%s264 + $0x28] sm:$0xff]
    %v271 = vld [vmem:[%s264 + $0x30] sm:$0xff]
    %v272 = vld [vmem:[%s264 + $0x38] sm:$0xff]
    %v273 = vld [vmem:[%s264 + $0x40] sm:$0xff]
    %v274 = vld [vmem:[%s264 + $0x48] sm:$0xff]
    %v275 = vld [vmem:[%s264 + $0x50] sm:$0x1]
    %v276 = vstv %s263
    %v277 = vmul.f32 %v276, %v265
    %v278 = vmul.f32 %v276, %v266
    %v279 = vmul.f32 %v276, %v267
    %v280 = vmul.f32 %v276, %v268
    %v281 = vmul.f32 %v276, %v269
    %v282 = vmul.f32 %v276, %v270
    %v283 = vmul.f32 %v276, %v271
    %v284 = vmul.f32 %v276, %v272
    %v285 = vmul.f32 %v276, %v273
    %v286 = vmul.f32 %v276, %v274
    %v287 = vmul.f32 %v276, %v275
    %v288 = vadd.f32 %v252, %v277
    %v289 = vadd.f32 %v253, %v278
    %v290 = vadd.f32 %v254, %v279
    %v291 = vadd.f32 %v255, %v280
    %v292 = vadd.f32 %v256, %v281
    %v293 = vadd.f32 %v257, %v282
    %v294 = vadd.f32 %v258, %v283
    %v295 = vadd.f32 %v259, %v284
    %v296 = vadd.f32 %v260, %v285
    %v297 = vadd.f32 %v261, %v286
    %v298 = vadd.f32 %v262, %v287
    %s299 = sld [smem:[#allocation4 + $0x18]]
    %s300 = scalar_lea.vmem %s1, 2112
    %v301 = vld [vmem:[%s300] sm:$0xff]
    %v302 = vld [vmem:[%s300 + $0x8] sm:$0xff]
    %v303 = vld [vmem:[%s300 + $0x10] sm:$0xff]
    %v304 = vld [vmem:[%s300 + $0x18] sm:$0xff]
    %v305 = vld [vmem:[%s300 + $0x20] sm:$0xff]
    %v306 = vld [vmem:[%s300 + $0x28] sm:$0xff]
    %v307 = vld [vmem:[%s300 + $0x30] sm:$0xff]
    %v308 = vld [vmem:[%s300 + $0x38] sm:$0xff]
    %v309 = vld [vmem:[%s300 + $0x40] sm:$0xff]
    %v310 = vld [vmem:[%s300 + $0x48] sm:$0xff]
    %v311 = vld [vmem:[%s300 + $0x50] sm:$0x1]
    %v312 = vstv %s299
    %v313 = vmul.f32 %v312, %v301
    %v314 = vmul.f32 %v312, %v302
    %v315 = vmul.f32 %v312, %v303
    %v316 = vmul.f32 %v312, %v304
    %v317 = vmul.f32 %v312, %v305
    %v318 = vmul.f32 %v312, %v306
    %v319 = vmul.f32 %v312, %v307
    %v320 = vmul.f32 %v312, %v308
    %v321 = vmul.f32 %v312, %v309
    %v322 = vmul.f32 %v312, %v310
    %v323 = vmul.f32 %v312, %v311
    %v324 = vadd.f32 %v288, %v313
    %v325 = vadd.f32 %v289, %v314
    %v326 = vadd.f32 %v290, %v315
    %v327 = vadd.f32 %v291, %v316
    %v328 = vadd.f32 %v292, %v317
    %v329 = vadd.f32 %v293, %v318
    %v330 = vadd.f32 %v294, %v319
    %v331 = vadd.f32 %v295, %v320
    %v332 = vadd.f32 %v296, %v321
    %v333 = vadd.f32 %v297, %v322
    %v334 = vadd.f32 %v298, %v323
    %s335 = sld [smem:[#allocation4 + $0x1]]
    %s336 = scalar_lea.vmem %s1, 88
    %v337 = vld [vmem:[%s336] sm:$0xff]
    %v338 = vld [vmem:[%s336 + $0x8] sm:$0xff]
    %v339 = vld [vmem:[%s336 + $0x10] sm:$0xff]
    %v340 = vld [vmem:[%s336 + $0x18] sm:$0xff]
    %v341 = vld [vmem:[%s336 + $0x20] sm:$0xff]
    %v342 = vld [vmem:[%s336 + $0x28] sm:$0xff]
    %v343 = vld [vmem:[%s336 + $0x30] sm:$0xff]
    %v344 = vld [vmem:[%s336 + $0x38] sm:$0xff]
    %v345 = vld [vmem:[%s336 + $0x40] sm:$0xff]
    %v346 = vld [vmem:[%s336 + $0x48] sm:$0xff]
    %v347 = vld [vmem:[%s336 + $0x50] sm:$0x1]
    %v348 = vstv %s335
    %v349 = vmul.f32 %v348, %v337
    %v350 = vmul.f32 %v348, %v338
    %v351 = vmul.f32 %v348, %v339
    %v352 = vmul.f32 %v348, %v340
    %v353 = vmul.f32 %v348, %v341
    %v354 = vmul.f32 %v348, %v342
    %v355 = vmul.f32 %v348, %v343
    %v356 = vmul.f32 %v348, %v344
    %v357 = vmul.f32 %v348, %v345
    %v358 = vmul.f32 %v348, %v346
    %v359 = vmul.f32 %v348, %v347
    %s360 = sld [smem:[#allocation4 + $0x5]]
    %s361 = scalar_lea.vmem %s1, 440
    %v362 = vld [vmem:[%s361] sm:$0xff]
    %v363 = vld [vmem:[%s361 + $0x8] sm:$0xff]
    %v364 = vld [vmem:[%s361 + $0x10] sm:$0xff]
    %v365 = vld [vmem:[%s361 + $0x18] sm:$0xff]
    %v366 = vld [vmem:[%s361 + $0x20] sm:$0xff]
    %v367 = vld [vmem:[%s361 + $0x28] sm:$0xff]
    %v368 = vld [vmem:[%s361 + $0x30] sm:$0xff]
    %v369 = vld [vmem:[%s361 + $0x38] sm:$0xff]
    %v370 = vld [vmem:[%s361 + $0x40] sm:$0xff]
    %v371 = vld [vmem:[%s361 + $0x48] sm:$0xff]
    %v372 = vld [vmem:[%s361 + $0x50] sm:$0x1]
    %v373 = vstv %s360
    %v374 = vmul.f32 %v373, %v362
    %v375 = vmul.f32 %v373, %v363
    %v376 = vmul.f32 %v373, %v364
    %v377 = vmul.f32 %v373, %v365
    %v378 = vmul.f32 %v373, %v366
    %v379 = vmul.f32 %v373, %v367
    %v380 = vmul.f32 %v373, %v368
    %v381 = vmul.f32 %v373, %v369
    %v382 = vmul.f32 %v373, %v370
    %v383 = vmul.f32 %v373, %v371
    %v384 = vmul.f32 %v373, %v372
    %v385 = vadd.f32 %v349, %v374
    %v386 = vadd.f32 %v350, %v375
    %v387 = vadd.f32 %v351, %v376
    %v388 = vadd.f32 %v352, %v377
    %v389 = vadd.f32 %v353, %v378
    %v390 = vadd.f32 %v354, %v379
    %v391 = vadd.f32 %v355, %v380
    %v392 = vadd.f32 %v356, %v381
    %v393 = vadd.f32 %v357, %v382
    %v394 = vadd.f32 %v358, %v383
    %v395 = vadd.f32 %v359, %v384
    %s396 = sld [smem:[#allocation4 + $0x9]]
    %s397 = scalar_lea.vmem %s1, 792
    %v398 = vld [vmem:[%s397] sm:$0xff]
    %v399 = vld [vmem:[%s397 + $0x8] sm:$0xff]
    %v400 = vld [vmem:[%s397 + $0x10] sm:$0xff]
    %v401 = vld [vmem:[%s397 + $0x18] sm:$0xff]
    %v402 = vld [vmem:[%s397 + $0x20] sm:$0xff]
    %v403 = vld [vmem:[%s397 + $0x28] sm:$0xff]
    %v404 = vld [vmem:[%s397 + $0x30] sm:$0xff]
    %v405 = vld [vmem:[%s397 + $0x38] sm:$0xff]
    %v406 = vld [vmem:[%s397 + $0x40] sm:$0xff]
    %v407 = vld [vmem:[%s397 + $0x48] sm:$0xff]
    %v408 = vld [vmem:[%s397 + $0x50] sm:$0x1]
    %v409 = vstv %s396
    %v410 = vmul.f32 %v409, %v398
    %v411 = vmul.f32 %v409, %v399
    %v412 = vmul.f32 %v409, %v400
    %v413 = vmul.f32 %v409, %v401
    %v414 = vmul.f32 %v409, %v402
    %v415 = vmul.f32 %v409, %v403
    %v416 = vmul.f32 %v409, %v404
    %v417 = vmul.f32 %v409, %v405
    %v418 = vmul.f32 %v409, %v406
    %v419 = vmul.f32 %v409, %v407
    %v420 = vmul.f32 %v409, %v408
    %v421 = vadd.f32 %v385, %v410
    %v422 = vadd.f32 %v386, %v411
    %v423 = vadd.f32 %v387, %v412
    %v424 = vadd.f32 %v388, %v413
    %v425 = vadd.f32 %v389, %v414
    %v426 = vadd.f32 %v390, %v415
    %v427 = vadd.f32 %v391, %v416
    %v428 = vadd.f32 %v392, %v417
    %v429 = vadd.f32 %v393, %v418
    %v430 = vadd.f32 %v394, %v419
    %v431 = vadd.f32 %v395, %v420
    %s432 = sld [smem:[#allocation4 + $0xd]]
    %s433 = scalar_lea.vmem %s1, 1144
    %v434 = vld [vmem:[%s433] sm:$0xff]
    %v435 = vld [vmem:[%s433 + $0x8] sm:$0xff]
    %v436 = vld [vmem:[%s433 + $0x10] sm:$0xff]
    %v437 = vld [vmem:[%s433 + $0x18] sm:$0xff]
    %v438 = vld [vmem:[%s433 + $0x20] sm:$0xff]
    %v439 = vld [vmem:[%s433 + $0x28] sm:$0xff]
    %v440 = vld [vmem:[%s433 + $0x30] sm:$0xff]
    %v441 = vld [vmem:[%s433 + $0x38] sm:$0xff]
    %v442 = vld [vmem:[%s433 + $0x40] sm:$0xff]
    %v443 = vld [vmem:[%s433 + $0x48] sm:$0xff]
    %v444 = vld [vmem:[%s433 + $0x50] sm:$0x1]
    %v445 = vstv %s432
    %v446 = vmul.f32 %v445, %v434
    %v447 = vmul.f32 %v445, %v435
    %v448 = vmul.f32 %v445, %v436
    %v449 = vmul.f32 %v445, %v437
    %v450 = vmul.f32 %v445, %v438
    %v451 = vmul.f32 %v445, %v439
    %v452 = vmul.f32 %v445, %v440
    %v453 = vmul.f32 %v445, %v441
    %v454 = vmul.f32 %v445, %v442
    %v455 = vmul.f32 %v445, %v443
    %v456 = vmul.f32 %v445, %v444
    %v457 = vadd.f32 %v421, %v446
    %v458 = vadd.f32 %v422, %v447
    %v459 = vadd.f32 %v423, %v448
    %v460 = vadd.f32 %v424, %v449
    %v461 = vadd.f32 %v425, %v450
    %v462 = vadd.f32 %v426, %v451
    %v463 = vadd.f32 %v427, %v452
    %v464 = vadd.f32 %v428, %v453
    %v465 = vadd.f32 %v429, %v454
    %v466 = vadd.f32 %v430, %v455
    %v467 = vadd.f32 %v431, %v456
    %s468 = sld [smem:[#allocation4 + $0x11]]
    %s469 = scalar_lea.vmem %s1, 1496
    %v470 = vld [vmem:[%s469] sm:$0xff]
    %v471 = vld [vmem:[%s469 + $0x8] sm:$0xff]
    %v472 = vld [vmem:[%s469 + $0x10] sm:$0xff]
    %v473 = vld [vmem:[%s469 + $0x18] sm:$0xff]
    %v474 = vld [vmem:[%s469 + $0x20] sm:$0xff]
    %v475 = vld [vmem:[%s469 + $0x28] sm:$0xff]
    %v476 = vld [vmem:[%s469 + $0x30] sm:$0xff]
    %v477 = vld [vmem:[%s469 + $0x38] sm:$0xff]
    %v478 = vld [vmem:[%s469 + $0x40] sm:$0xff]
    %v479 = vld [vmem:[%s469 + $0x48] sm:$0xff]
    %v480 = vld [vmem:[%s469 + $0x50] sm:$0x1]
    %v481 = vstv %s468
    %v482 = vmul.f32 %v481, %v470
    %v483 = vmul.f32 %v481, %v471
    %v484 = vmul.f32 %v481, %v472
    %v485 = vmul.f32 %v481, %v473
    %v486 = vmul.f32 %v481, %v474
    %v487 = vmul.f32 %v481, %v475
    %v488 = vmul.f32 %v481, %v476
    %v489 = vmul.f32 %v481, %v477
    %v490 = vmul.f32 %v481, %v478
    %v491 = vmul.f32 %v481, %v479
    %v492 = vmul.f32 %v481, %v480
    %v493 = vadd.f32 %v457, %v482
    %v494 = vadd.f32 %v458, %v483
    %v495 = vadd.f32 %v459, %v484
    %v496 = vadd.f32 %v460, %v485
    %v497 = vadd.f32 %v461, %v486
    %v498 = vadd.f32 %v462, %v487
    %v499 = vadd.f32 %v463, %v488
    %v500 = vadd.f32 %v464, %v489
    %v501 = vadd.f32 %v465, %v490
    %v502 = vadd.f32 %v466, %v491
    %v503 = vadd.f32 %v467, %v492
    %s504 = sld [smem:[#allocation4 + $0x15]]
    %s505 = scalar_lea.vmem %s1, 1848
    %v506 = vld [vmem:[%s505] sm:$0xff]
    %v507 = vld [vmem:[%s505 + $0x8] sm:$0xff]
    %v508 = vld [vmem:[%s505 + $0x10] sm:$0xff]
    %v509 = vld [vmem:[%s505 + $0x18] sm:$0xff]
    %v510 = vld [vmem:[%s505 + $0x20] sm:$0xff]
    %v511 = vld [vmem:[%s505 + $0x28] sm:$0xff]
    %v512 = vld [vmem:[%s505 + $0x30] sm:$0xff]
    %v513 = vld [vmem:[%s505 + $0x38] sm:$0xff]
    %v514 = vld [vmem:[%s505 + $0x40] sm:$0xff]
    %v515 = vld [vmem:[%s505 + $0x48] sm:$0xff]
    %v516 = vld [vmem:[%s505 + $0x50] sm:$0x1]
    %v517 = vstv %s504
    %v518 = vmul.f32 %v517, %v506
    %v519 = vmul.f32 %v517, %v507
    %v520 = vmul.f32 %v517, %v508
    %v521 = vmul.f32 %v517, %v509
    %v522 = vmul.f32 %v517, %v510
    %v523 = vmul.f32 %v517, %v511
    %v524 = vmul.f32 %v517, %v512
    %v525 = vmul.f32 %v517, %v513
    %v526 = vmul.f32 %v517, %v514
    %v527 = vmul.f32 %v517, %v515
    %v528 = vmul.f32 %v517, %v516
    %v529 = vadd.f32 %v493, %v518
    %v530 = vadd.f32 %v494, %v519
    %v531 = vadd.f32 %v495, %v520
    %v532 = vadd.f32 %v496, %v521
    %v533 = vadd.f32 %v497, %v522
    %v534 = vadd.f32 %v498, %v523
    %v535 = vadd.f32 %v499, %v524
    %v536 = vadd.f32 %v500, %v525
    %v537 = vadd.f32 %v501, %v526
    %v538 = vadd.f32 %v502, %v527
    %v539 = vadd.f32 %v503, %v528
    %s540 = sld [smem:[#allocation4 + $0x19]]
    %s541 = scalar_lea.vmem %s1, 2200
    %v542 = vld [vmem:[%s541] sm:$0xff]
    %v543 = vld [vmem:[%s541 + $0x8] sm:$0xff]
    %v544 = vld [vmem:[%s541 + $0x10] sm:$0xff]
    %v545 = vld [vmem:[%s541 + $0x18] sm:$0xff]
    %v546 = vld [vmem:[%s541 + $0x20] sm:$0xff]
    %v547 = vld [vmem:[%s541 + $0x28] sm:$0xff]
    %v548 = vld [vmem:[%s541 + $0x30] sm:$0xff]
    %v549 = vld [vmem:[%s541 + $0x38] sm:$0xff]
    %v550 = vld [vmem:[%s541 + $0x40] sm:$0xff]
    %v551 = vld [vmem:[%s541 + $0x48] sm:$0xff]
    %v552 = vld [vmem:[%s541 + $0x50] sm:$0x1]
    %v553 = vstv %s540
    %v554 = vmul.f32 %v553, %v542
    %v555 = vmul.f32 %v553, %v543
    %v556 = vmul.f32 %v553, %v544
    %v557 = vmul.f32 %v553, %v545
    %v558 = vmul.f32 %v553, %v546
    %v559 = vmul.f32 %v553, %v547
    %v560 = vmul.f32 %v553, %v548
    %v561 = vmul.f32 %v553, %v549
    %v562 = vmul.f32 %v553, %v550
    %v563 = vmul.f32 %v553, %v551
    %v564 = vmul.f32 %v553, %v552
    %v565 = vadd.f32 %v529, %v554
    %v566 = vadd.f32 %v530, %v555
    %v567 = vadd.f32 %v531, %v556
    %v568 = vadd.f32 %v532, %v557
    %v569 = vadd.f32 %v533, %v558
    %v570 = vadd.f32 %v534, %v559
    %v571 = vadd.f32 %v535, %v560
    %v572 = vadd.f32 %v536, %v561
    %v573 = vadd.f32 %v537, %v562
    %v574 = vadd.f32 %v538, %v563
    %v575 = vadd.f32 %v539, %v564
    %s576 = sld [smem:[#allocation4 + $0x2]]
    %s577 = scalar_lea.vmem %s1, 176
    %v578 = vld [vmem:[%s577] sm:$0xff]
    %v579 = vld [vmem:[%s577 + $0x8] sm:$0xff]
    %v580 = vld [vmem:[%s577 + $0x10] sm:$0xff]
    %v581 = vld [vmem:[%s577 + $0x18] sm:$0xff]
    %v582 = vld [vmem:[%s577 + $0x20] sm:$0xff]
    %v583 = vld [vmem:[%s577 + $0x28] sm:$0xff]
    %v584 = vld [vmem:[%s577 + $0x30] sm:$0xff]
    %v585 = vld [vmem:[%s577 + $0x38] sm:$0xff]
    %v586 = vld [vmem:[%s577 + $0x40] sm:$0xff]
    %v587 = vld [vmem:[%s577 + $0x48] sm:$0xff]
    %v588 = vld [vmem:[%s577 + $0x50] sm:$0x1]
    %v589 = vstv %s576
    %v590 = vmul.f32 %v589, %v578
    %v591 = vmul.f32 %v589, %v579
    %v592 = vmul.f32 %v589, %v580
    %v593 = vmul.f32 %v589, %v581
    %v594 = vmul.f32 %v589, %v582
    %v595 = vmul.f32 %v589, %v583
    %v596 = vmul.f32 %v589, %v584
    %v597 = vmul.f32 %v589, %v585
    %v598 = vmul.f32 %v589, %v586
    %v599 = vmul.f32 %v589, %v587
    %v600 = vmul.f32 %v589, %v588
    %s601 = sld [smem:[#allocation4 + $0x6]]
    %s602 = scalar_lea.vmem %s1, 528
    %v603 = vld [vmem:[%s602] sm:$0xff]
    %v604 = vld [vmem:[%s602 + $0x8] sm:$0xff]
    %v605 = vld [vmem:[%s602 + $0x10] sm:$0xff]
    %v606 = vld [vmem:[%s602 + $0x18] sm:$0xff]
    %v607 = vld [vmem:[%s602 + $0x20] sm:$0xff]
    %v608 = vld [vmem:[%s602 + $0x28] sm:$0xff]
    %v609 = vld [vmem:[%s602 + $0x30] sm:$0xff]
    %v610 = vld [vmem:[%s602 + $0x38] sm:$0xff]
    %v611 = vld [vmem:[%s602 + $0x40] sm:$0xff]
    %v612 = vld [vmem:[%s602 + $0x48] sm:$0xff]
    %v613 = vld [vmem:[%s602 + $0x50] sm:$0x1]
    %v614 = vstv %s601
    %v615 = vmul.f32 %v614, %v603
    %v616 = vmul.f32 %v614, %v604
    %v617 = vmul.f32 %v614, %v605
    %v618 = vmul.f32 %v614, %v606
    %v619 = vmul.f32 %v614, %v607
    %v620 = vmul.f32 %v614, %v608
    %v621 = vmul.f32 %v614, %v609
    %v622 = vmul.f32 %v614, %v610
    %v623 = vmul.f32 %v614, %v611
    %v624 = vmul.f32 %v614, %v612
    %v625 = vmul.f32 %v614, %v613
    %v626 = vadd.f32 %v590, %v615
    %v627 = vadd.f32 %v591, %v616
    %v628 = vadd.f32 %v592, %v617
    %v629 = vadd.f32 %v593, %v618
    %v630 = vadd.f32 %v594, %v619
    %v631 = vadd.f32 %v595, %v620
    %v632 = vadd.f32 %v596, %v621
    %v633 = vadd.f32 %v597, %v622
    %v634 = vadd.f32 %v598, %v623
    %v635 = vadd.f32 %v599, %v624
    %v636 = vadd.f32 %v600, %v625
    %s637 = sld [smem:[#allocation4 + $0xa]]
    %s638 = scalar_lea.vmem %s1, 880
    %v639 = vld [vmem:[%s638] sm:$0xff]
    %v640 = vld [vmem:[%s638 + $0x8] sm:$0xff]
    %v641 = vld [vmem:[%s638 + $0x10] sm:$0xff]
    %v642 = vld [vmem:[%s638 + $0x18] sm:$0xff]
    %v643 = vld [vmem:[%s638 + $0x20] sm:$0xff]
    %v644 = vld [vmem:[%s638 + $0x28] sm:$0xff]
    %v645 = vld [vmem:[%s638 + $0x30] sm:$0xff]
    %v646 = vld [vmem:[%s638 + $0x38] sm:$0xff]
    %v647 = vld [vmem:[%s638 + $0x40] sm:$0xff]
    %v648 = vld [vmem:[%s638 + $0x48] sm:$0xff]
    %v649 = vld [vmem:[%s638 + $0x50] sm:$0x1]
    %v650 = vstv %s637
    %v651 = vmul.f32 %v650, %v639
    %v652 = vmul.f32 %v650, %v640
    %v653 = vmul.f32 %v650, %v641
    %v654 = vmul.f32 %v650, %v642
    %v655 = vmul.f32 %v650, %v643
    %v656 = vmul.f32 %v650, %v644
    %v657 = vmul.f32 %v650, %v645
    %v658 = vmul.f32 %v650, %v646
    %v659 = vmul.f32 %v650, %v647
    %v660 = vmul.f32 %v650, %v648
    %v661 = vmul.f32 %v650, %v649
    %v662 = vadd.f32 %v626, %v651
    %v663 = vadd.f32 %v627, %v652
    %v664 = vadd.f32 %v628, %v653
    %v665 = vadd.f32 %v629, %v654
    %v666 = vadd.f32 %v630, %v655
    %v667 = vadd.f32 %v631, %v656
    %v668 = vadd.f32 %v632, %v657
    %v669 = vadd.f32 %v633, %v658
    %v670 = vadd.f32 %v634, %v659
    %v671 = vadd.f32 %v635, %v660
    %v672 = vadd.f32 %v636, %v661
    %s673 = sld [smem:[#allocation4 + $0xe]]
    %s674 = scalar_lea.vmem %s1, 1232
    %v675 = vld [vmem:[%s674] sm:$0xff]
    %v676 = vld [vmem:[%s674 + $0x8] sm:$0xff]
    %v677 = vld [vmem:[%s674 + $0x10] sm:$0xff]
    %v678 = vld [vmem:[%s674 + $0x18] sm:$0xff]
    %v679 = vld [vmem:[%s674 + $0x20] sm:$0xff]
    %v680 = vld [vmem:[%s674 + $0x28] sm:$0xff]
    %v681 = vld [vmem:[%s674 + $0x30] sm:$0xff]
    %v682 = vld [vmem:[%s674 + $0x38] sm:$0xff]
    %v683 = vld [vmem:[%s674 + $0x40] sm:$0xff]
    %v684 = vld [vmem:[%s674 + $0x48] sm:$0xff]
    %v685 = vld [vmem:[%s674 + $0x50] sm:$0x1]
    %v686 = vstv %s673
    %v687 = vmul.f32 %v686, %v675
    %v688 = vmul.f32 %v686, %v676
    %v689 = vmul.f32 %v686, %v677
    %v690 = vmul.f32 %v686, %v678
    %v691 = vmul.f32 %v686, %v679
    %v692 = vmul.f32 %v686, %v680
    %v693 = vmul.f32 %v686, %v681
    %v694 = vmul.f32 %v686, %v682
    %v695 = vmul.f32 %v686, %v683
    %v696 = vmul.f32 %v686, %v684
    %v697 = vmul.f32 %v686, %v685
    %v698 = vadd.f32 %v662, %v687
    %v699 = vadd.f32 %v663, %v688
    %v700 = vadd.f32 %v664, %v689
    %v701 = vadd.f32 %v665, %v690
    %v702 = vadd.f32 %v666, %v691
    %v703 = vadd.f32 %v667, %v692
    %v704 = vadd.f32 %v668, %v693
    %v705 = vadd.f32 %v669, %v694
    %v706 = vadd.f32 %v670, %v695
    %v707 = vadd.f32 %v671, %v696
    %v708 = vadd.f32 %v672, %v697
    %s709 = sld [smem:[#allocation4 + $0x12]]
    %s710 = scalar_lea.vmem %s1, 1584
    %v711 = vld [vmem:[%s710] sm:$0xff]
    %v712 = vld [vmem:[%s710 + $0x8] sm:$0xff]
    %v713 = vld [vmem:[%s710 + $0x10] sm:$0xff]
    %v714 = vld [vmem:[%s710 + $0x18] sm:$0xff]
    %v715 = vld [vmem:[%s710 + $0x20] sm:$0xff]
    %v716 = vld [vmem:[%s710 + $0x28] sm:$0xff]
    %v717 = vld [vmem:[%s710 + $0x30] sm:$0xff]
    %v718 = vld [vmem:[%s710 + $0x38] sm:$0xff]
    %v719 = vld [vmem:[%s710 + $0x40] sm:$0xff]
    %v720 = vld [vmem:[%s710 + $0x48] sm:$0xff]
    %v721 = vld [vmem:[%s710 + $0x50] sm:$0x1]
    %v722 = vstv %s709
    %v723 = vmul.f32 %v722, %v711
    %v724 = vmul.f32 %v722, %v712
    %v725 = vmul.f32 %v722, %v713
    %v726 = vmul.f32 %v722, %v714
    %v727 = vmul.f32 %v722, %v715
    %v728 = vmul.f32 %v722, %v716
    %v729 = vmul.f32 %v722, %v717
    %v730 = vmul.f32 %v722, %v718
    %v731 = vmul.f32 %v722, %v719
    %v732 = vmul.f32 %v722, %v720
    %v733 = vmul.f32 %v722, %v721
    %v734 = vadd.f32 %v698, %v723
    %v735 = vadd.f32 %v699, %v724
    %v736 = vadd.f32 %v700, %v725
    %v737 = vadd.f32 %v701, %v726
    %v738 = vadd.f32 %v702, %v727
    %v739 = vadd.f32 %v703, %v728
    %v740 = vadd.f32 %v704, %v729
    %v741 = vadd.f32 %v705, %v730
    %v742 = vadd.f32 %v706, %v731
    %v743 = vadd.f32 %v707, %v732
    %v744 = vadd.f32 %v708, %v733
    %s745 = sld [smem:[#allocation4 + $0x16]]
    %s746 = scalar_lea.vmem %s1, 1936
    %v747 = vld [vmem:[%s746] sm:$0xff]
    %v748 = vld [vmem:[%s746 + $0x8] sm:$0xff]
    %v749 = vld [vmem:[%s746 + $0x10] sm:$0xff]
    %v750 = vld [vmem:[%s746 + $0x18] sm:$0xff]
    %v751 = vld [vmem:[%s746 + $0x20] sm:$0xff]
    %v752 = vld [vmem:[%s746 + $0x28] sm:$0xff]
    %v753 = vld [vmem:[%s746 + $0x30] sm:$0xff]
    %v754 = vld [vmem:[%s746 + $0x38] sm:$0xff]
    %v755 = vld [vmem:[%s746 + $0x40] sm:$0xff]
    %v756 = vld [vmem:[%s746 + $0x48] sm:$0xff]
    %v757 = vld [vmem:[%s746 + $0x50] sm:$0x1]
    %v758 = vstv %s745
    %v759 = vmul.f32 %v758, %v747
    %v760 = vmul.f32 %v758, %v748
    %v761 = vmul.f32 %v758, %v749
    %v762 = vmul.f32 %v758, %v750
    %v763 = vmul.f32 %v758, %v751
    %v764 = vmul.f32 %v758, %v752
    %v765 = vmul.f32 %v758, %v753
    %v766 = vmul.f32 %v758, %v754
    %v767 = vmul.f32 %v758, %v755
    %v768 = vmul.f32 %v758, %v756
    %v769 = vmul.f32 %v758, %v757
    %v770 = vadd.f32 %v734, %v759
    %v771 = vadd.f32 %v735, %v760
    %v772 = vadd.f32 %v736, %v761
    %v773 = vadd.f32 %v737, %v762
    %v774 = vadd.f32 %v738, %v763
    %v775 = vadd.f32 %v739, %v764
    %v776 = vadd.f32 %v740, %v765
    %v777 = vadd.f32 %v741, %v766
    %v778 = vadd.f32 %v742, %v767
    %v779 = vadd.f32 %v743, %v768
    %v780 = vadd.f32 %v744, %v769
    %s781 = sld [smem:[#allocation4 + $0x3]]
    %s782 = scalar_lea.vmem %s1, 264
    %v783 = vld [vmem:[%s782] sm:$0xff]
    %v784 = vld [vmem:[%s782 + $0x8] sm:$0xff]
    %v785 = vld [vmem:[%s782 + $0x10] sm:$0xff]
    %v786 = vld [vmem:[%s782 + $0x18] sm:$0xff]
    %v787 = vld [vmem:[%s782 + $0x20] sm:$0xff]
    %v788 = vld [vmem:[%s782 + $0x28] sm:$0xff]
    %v789 = vld [vmem:[%s782 + $0x30] sm:$0xff]
    %v790 = vld [vmem:[%s782 + $0x38] sm:$0xff]
    %v791 = vld [vmem:[%s782 + $0x40] sm:$0xff]
    %v792 = vld [vmem:[%s782 + $0x48] sm:$0xff]
    %v793 = vld [vmem:[%s782 + $0x50] sm:$0x1]
    %v794 = vstv %s781
    %v795 = vmul.f32 %v794, %v783
    %v796 = vmul.f32 %v794, %v784
    %v797 = vmul.f32 %v794, %v785
    %v798 = vmul.f32 %v794, %v786
    %v799 = vmul.f32 %v794, %v787
    %v800 = vmul.f32 %v794, %v788
    %v801 = vmul.f32 %v794, %v789
    %v802 = vmul.f32 %v794, %v790
    %v803 = vmul.f32 %v794, %v791
    %v804 = vmul.f32 %v794, %v792
    %v805 = vmul.f32 %v794, %v793
    %s806 = sld [smem:[#allocation4 + $0x7]]
    %s807 = scalar_lea.vmem %s1, 616
    %v808 = vld [vmem:[%s807] sm:$0xff]
    %v809 = vld [vmem:[%s807 + $0x8] sm:$0xff]
    %v810 = vld [vmem:[%s807 + $0x10] sm:$0xff]
    %v811 = vld [vmem:[%s807 + $0x18] sm:$0xff]
    %v812 = vld [vmem:[%s807 + $0x20] sm:$0xff]
    %v813 = vld [vmem:[%s807 + $0x28] sm:$0xff]
    %v814 = vld [vmem:[%s807 + $0x30] sm:$0xff]
    %v815 = vld [vmem:[%s807 + $0x38] sm:$0xff]
    %v816 = vld [vmem:[%s807 + $0x40] sm:$0xff]
    %v817 = vld [vmem:[%s807 + $0x48] sm:$0xff]
    %v818 = vld [vmem:[%s807 + $0x50] sm:$0x1]
    %v819 = vstv %s806
    %v820 = vmul.f32 %v819, %v808
    %v821 = vmul.f32 %v819, %v809
    %v822 = vmul.f32 %v819, %v810
    %v823 = vmul.f32 %v819, %v811
    %v824 = vmul.f32 %v819, %v812
    %v825 = vmul.f32 %v819, %v813
    %v826 = vmul.f32 %v819, %v814
    %v827 = vmul.f32 %v819, %v815
    %v828 = vmul.f32 %v819, %v816
    %v829 = vmul.f32 %v819, %v817
    %v830 = vmul.f32 %v819, %v818
    %v831 = vadd.f32 %v795, %v820
    %v832 = vadd.f32 %v796, %v821
    %v833 = vadd.f32 %v797, %v822
    %v834 = vadd.f32 %v798, %v823
    %v835 = vadd.f32 %v799, %v824
    %v836 = vadd.f32 %v800, %v825
    %v837 = vadd.f32 %v801, %v826
    %v838 = vadd.f32 %v802, %v827
    %v839 = vadd.f32 %v803, %v828
    %v840 = vadd.f32 %v804, %v829
    %v841 = vadd.f32 %v805, %v830
    %s842 = sld [smem:[#allocation4 + $0xb]]
    %s843 = scalar_lea.vmem %s1, 968
    %v844 = vld [vmem:[%s843] sm:$0xff]
    %v845 = vld [vmem:[%s843 + $0x8] sm:$0xff]
    %v846 = vld [vmem:[%s843 + $0x10] sm:$0xff]
    %v847 = vld [vmem:[%s843 + $0x18] sm:$0xff]
    %v848 = vld [vmem:[%s843 + $0x20] sm:$0xff]
    %v849 = vld [vmem:[%s843 + $0x28] sm:$0xff]
    %v850 = vld [vmem:[%s843 + $0x30] sm:$0xff]
    %v851 = vld [vmem:[%s843 + $0x38] sm:$0xff]
    %v852 = vld [vmem:[%s843 + $0x40] sm:$0xff]
    %v853 = vld [vmem:[%s843 + $0x48] sm:$0xff]
    %v854 = vld [vmem:[%s843 + $0x50] sm:$0x1]
    %v855 = vstv %s842
    %v856 = vmul.f32 %v855, %v844
    %v857 = vmul.f32 %v855, %v845
    %v858 = vmul.f32 %v855, %v846
    %v859 = vmul.f32 %v855, %v847
    %v860 = vmul.f32 %v855, %v848
    %v861 = vmul.f32 %v855, %v849
    %v862 = vmul.f32 %v855, %v850
    %v863 = vmul.f32 %v855, %v851
    %v864 = vmul.f32 %v855, %v852
    %v865 = vmul.f32 %v855, %v853
    %v866 = vmul.f32 %v855, %v854
    %v867 = vadd.f32 %v831, %v856
    %v868 = vadd.f32 %v832, %v857
    %v869 = vadd.f32 %v833, %v858
    %v870 = vadd.f32 %v834, %v859
    %v871 = vadd.f32 %v835, %v860
    %v872 = vadd.f32 %v836, %v861
    %v873 = vadd.f32 %v837, %v862
    %v874 = vadd.f32 %v838, %v863
    %v875 = vadd.f32 %v839, %v864
    %v876 = vadd.f32 %v840, %v865
    %v877 = vadd.f32 %v841, %v866
    %s878 = sld [smem:[#allocation4 + $0xf]]
    %s879 = scalar_lea.vmem %s1, 1320
    %v880 = vld [vmem:[%s879] sm:$0xff]
    %v881 = vld [vmem:[%s879 + $0x8] sm:$0xff]
    %v882 = vld [vmem:[%s879 + $0x10] sm:$0xff]
    %v883 = vld [vmem:[%s879 + $0x18] sm:$0xff]
    %v884 = vld [vmem:[%s879 + $0x20] sm:$0xff]
    %v885 = vld [vmem:[%s879 + $0x28] sm:$0xff]
    %v886 = vld [vmem:[%s879 + $0x30] sm:$0xff]
    %v887 = vld [vmem:[%s879 + $0x38] sm:$0xff]
    %v888 = vld [vmem:[%s879 + $0x40] sm:$0xff]
    %v889 = vld [vmem:[%s879 + $0x48] sm:$0xff]
    %v890 = vld [vmem:[%s879 + $0x50] sm:$0x1]
    %v891 = vstv %s878
    %v892 = vmul.f32 %v891, %v880
    %v893 = vmul.f32 %v891, %v881
    %v894 = vmul.f32 %v891, %v882
    %v895 = vmul.f32 %v891, %v883
    %v896 = vmul.f32 %v891, %v884
    %v897 = vmul.f32 %v891, %v885
    %v898 = vmul.f32 %v891, %v886
    %v899 = vmul.f32 %v891, %v887
    %v900 = vmul.f32 %v891, %v888
    %v901 = vmul.f32 %v891, %v889
    %v902 = vmul.f32 %v891, %v890
    %v903 = vadd.f32 %v867, %v892
    %v904 = vadd.f32 %v868, %v893
    %v905 = vadd.f32 %v869, %v894
    %v906 = vadd.f32 %v870, %v895
    %v907 = vadd.f32 %v871, %v896
    %v908 = vadd.f32 %v872, %v897
    %v909 = vadd.f32 %v873, %v898
    %v910 = vadd.f32 %v874, %v899
    %v911 = vadd.f32 %v875, %v900
    %v912 = vadd.f32 %v876, %v901
    %v913 = vadd.f32 %v877, %v902
    %s914 = sld [smem:[#allocation4 + $0x13]]
    %s915 = scalar_lea.vmem %s1, 1672
    %v916 = vld [vmem:[%s915] sm:$0xff]
    %v917 = vld [vmem:[%s915 + $0x8] sm:$0xff]
    %v918 = vld [vmem:[%s915 + $0x10] sm:$0xff]
    %v919 = vld [vmem:[%s915 + $0x18] sm:$0xff]
    %v920 = vld [vmem:[%s915 + $0x20] sm:$0xff]
    %v921 = vld [vmem:[%s915 + $0x28] sm:$0xff]
    %v922 = vld [vmem:[%s915 + $0x30] sm:$0xff]
    %v923 = vld [vmem:[%s915 + $0x38] sm:$0xff]
    %v924 = vld [vmem:[%s915 + $0x40] sm:$0xff]
    %v925 = vld [vmem:[%s915 + $0x48] sm:$0xff]
    %v926 = vld [vmem:[%s915 + $0x50] sm:$0x1]
    %v927 = vstv %s914
    %v928 = vmul.f32 %v927, %v916
    %v929 = vmul.f32 %v927, %v917
    %v930 = vmul.f32 %v927, %v918
    %v931 = vmul.f32 %v927, %v919
    %v932 = vmul.f32 %v927, %v920
    %v933 = vmul.f32 %v927, %v921
    %v934 = vmul.f32 %v927, %v922
    %v935 = vmul.f32 %v927, %v923
    %v936 = vmul.f32 %v927, %v924
    %v937 = vmul.f32 %v927, %v925
    %v938 = vmul.f32 %v927, %v926
    %v939 = vadd.f32 %v903, %v928
    %v940 = vadd.f32 %v904, %v929
    %v941 = vadd.f32 %v905, %v930
    %v942 = vadd.f32 %v906, %v931
    %v943 = vadd.f32 %v907, %v932
    %v944 = vadd.f32 %v908, %v933
    %v945 = vadd.f32 %v909, %v934
    %v946 = vadd.f32 %v910, %v935
    %v947 = vadd.f32 %v911, %v936
    %v948 = vadd.f32 %v912, %v937
    %v949 = vadd.f32 %v913, %v938
    %s950 = sld [smem:[#allocation4 + $0x17]]
    %s951 = scalar_lea.vmem %s1, 2024
    %v952 = vld [vmem:[%s951] sm:$0xff]
    %v953 = vld [vmem:[%s951 + $0x8] sm:$0xff]
    %v954 = vld [vmem:[%s951 + $0x10] sm:$0xff]
    %v955 = vld [vmem:[%s951 + $0x18] sm:$0xff]
    %v956 = vld [vmem:[%s951 + $0x20] sm:$0xff]
    %v957 = vld [vmem:[%s951 + $0x28] sm:$0xff]
    %v958 = vld [vmem:[%s951 + $0x30] sm:$0xff]
    %v959 = vld [vmem:[%s951 + $0x38] sm:$0xff]
    %v960 = vld [vmem:[%s951 + $0x40] sm:$0xff]
    %v961 = vld [vmem:[%s951 + $0x48] sm:$0xff]
    %v962 = vld [vmem:[%s951 + $0x50] sm:$0x1]
    %v963 = vstv %s950
    %v964 = vmul.f32 %v963, %v952
    %v965 = vmul.f32 %v963, %v953
    %v966 = vmul.f32 %v963, %v954
    %v967 = vmul.f32 %v963, %v955
    %v968 = vmul.f32 %v963, %v956
    %v969 = vmul.f32 %v963, %v957
    %v970 = vmul.f32 %v963, %v958
    %v971 = vmul.f32 %v963, %v959
    %v972 = vmul.f32 %v963, %v960
    %v973 = vmul.f32 %v963, %v961
    %v974 = vmul.f32 %v963, %v962
    %v975 = vadd.f32 %v939, %v964
    %v976 = vadd.f32 %v940, %v965
    %v977 = vadd.f32 %v941, %v966
    %v978 = vadd.f32 %v942, %v967
    %v979 = vadd.f32 %v943, %v968
    %v980 = vadd.f32 %v944, %v969
    %v981 = vadd.f32 %v945, %v970
    %v982 = vadd.f32 %v946, %v971
    %v983 = vadd.f32 %v947, %v972
    %v984 = vadd.f32 %v948, %v973
    %v985 = vadd.f32 %v949, %v974
    %v986 = vadd.f32 %v324, %v565
    %v987 = vadd.f32 %v325, %v566
    %v988 = vadd.f32 %v326, %v567
    %v989 = vadd.f32 %v327, %v568
    %v990 = vadd.f32 %v328, %v569
    %v991 = vadd.f32 %v329, %v570
    %v992 = vadd.f32 %v330, %v571
    %v993 = vadd.f32 %v331, %v572
    %v994 = vadd.f32 %v332, %v573
    %v995 = vadd.f32 %v333, %v574
    %v996 = vadd.f32 %v334, %v575
    %v997 = vadd.f32 %v770, %v975
    %v998 = vadd.f32 %v771, %v976
    %v999 = vadd.f32 %v772, %v977
    %v1000 = vadd.f32 %v773, %v978
    %v1001 = vadd.f32 %v774, %v979
    %v1002 = vadd.f32 %v775, %v980
    %v1003 = vadd.f32 %v776, %v981
    %v1004 = vadd.f32 %v777, %v982
    %v1005 = vadd.f32 %v778, %v983
    %v1006 = vadd.f32 %v779, %v984
    %v1007 = vadd.f32 %v780, %v985
    %v1008 = vadd.f32 %v986, %v997
    %v1009 = vadd.f32 %v987, %v998
    %v1010 = vadd.f32 %v988, %v999
    %v1011 = vadd.f32 %v989, %v1000
    %v1012 = vadd.f32 %v990, %v1001
    %v1013 = vadd.f32 %v991, %v1002
    %v1014 = vadd.f32 %v992, %v1003
    %v1015 = vadd.f32 %v993, %v1004
    %v1016 = vadd.f32 %v994, %v1005
    %v1017 = vadd.f32 %v995, %v1006
    %v1018 = vadd.f32 %v996, %v1007
    %s1019 = sld [smem:[#allocation4 + $0x80]]
    %v1020 = vstv %s1019
    %v1021 = vmul.f32 %v1020, %v96
    %v1022 = vmul.f32 %v1020, %v97
    %v1023 = vmul.f32 %v1020, %v98
    %v1024 = vmul.f32 %v1020, %v99
    %v1025 = vmul.f32 %v1020, %v100
    %v1026 = vmul.f32 %v1020, %v101
    %v1027 = vmul.f32 %v1020, %v102
    %v1028 = vmul.f32 %v1020, %v103
    %v1029 = vmul.f32 %v1020, %v104
    %v1030 = vmul.f32 %v1020, %v105
    %v1031 = vmul.f32 %v1020, %v106
    %s1032 = sld [smem:[#allocation4 + $0x84]]
    %v1033 = vstv %s1032
    %v1034 = vmul.f32 %v1033, %v121
    %v1035 = vmul.f32 %v1033, %v122
    %v1036 = vmul.f32 %v1033, %v123
    %v1037 = vmul.f32 %v1033, %v124
    %v1038 = vmul.f32 %v1033, %v125
    %v1039 = vmul.f32 %v1033, %v126
    %v1040 = vmul.f32 %v1033, %v127
    %v1041 = vmul.f32 %v1033, %v128
    %v1042 = vmul.f32 %v1033, %v129
    %v1043 = vmul.f32 %v1033, %v130
    %v1044 = vmul.f32 %v1033, %v131
    %v1045 = vadd.f32 %v1021, %v1034
    %v1046 = vadd.f32 %v1022, %v1035
    %v1047 = vadd.f32 %v1023, %v1036
    %v1048 = vadd.f32 %v1024, %v1037
    %v1049 = vadd.f32 %v1025, %v1038
    %v1050 = vadd.f32 %v1026, %v1039
    %v1051 = vadd.f32 %v1027, %v1040
    %v1052 = vadd.f32 %v1028, %v1041
    %v1053 = vadd.f32 %v1029, %v1042
    %v1054 = vadd.f32 %v1030, %v1043
    %v1055 = vadd.f32 %v1031, %v1044
    %s1056 = sld [smem:[#allocation4 + $0x88]]
    %v1057 = vstv %s1056
    %v1058 = vmul.f32 %v1057, %v157
    %v1059 = vmul.f32 %v1057, %v158
    %v1060 = vmul.f32 %v1057, %v159
    %v1061 = vmul.f32 %v1057, %v160
    %v1062 = vmul.f32 %v1057, %v161
    %v1063 = vmul.f32 %v1057, %v162
    %v1064 = vmul.f32 %v1057, %v163
    %v1065 = vmul.f32 %v1057, %v164
    %v1066 = vmul.f32 %v1057, %v165
    %v1067 = vmul.f32 %v1057, %v166
    %v1068 = vmul.f32 %v1057, %v167
    %v1069 = vadd.f32 %v1045, %v1058
    %v1070 = vadd.f32 %v1046, %v1059
    %v1071 = vadd.f32 %v1047, %v1060
    %v1072 = vadd.f32 %v1048, %v1061
    %v1073 = vadd.f32 %v1049, %v1062
    %v1074 = vadd.f32 %v1050, %v1063
    %v1075 = vadd.f32 %v1051, %v1064
    %v1076 = vadd.f32 %v1052, %v1065
    %v1077 = vadd.f32 %v1053, %v1066
    %v1078 = vadd.f32 %v1054, %v1067
    %v1079 = vadd.f32 %v1055, %v1068
    %s1080 = sld [smem:[#allocation4 + $0x8c]]
    %v1081 = vstv %s1080
    %v1082 = vmul.f32 %v1081, %v193
    %v1083 = vmul.f32 %v1081, %v194
    %v1084 = vmul.f32 %v1081, %v195
    %v1085 = vmul.f32 %v1081, %v196
    %v1086 = vmul.f32 %v1081, %v197
    %v1087 = vmul.f32 %v1081, %v198
    %v1088 = vmul.f32 %v1081, %v199
    %v1089 = vmul.f32 %v1081, %v200
    %v1090 = vmul.f32 %v1081, %v201
    %v1091 = vmul.f32 %v1081, %v202
    %v1092 = vmul.f32 %v1081, %v203
    %v1093 = vadd.f32 %v1069, %v1082
    %v1094 = vadd.f32 %v1070, %v1083
    %v1095 = vadd.f32 %v1071, %v1084
    %v1096 = vadd.f32 %v1072, %v1085
    %v1097 = vadd.f32 %v1073, %v1086
    %v1098 = vadd.f32 %v1074, %v1087
    %v1099 = vadd.f32 %v1075, %v1088
    %v1100 = vadd.f32 %v1076, %v1089
    %v1101 = vadd.f32 %v1077, %v1090
    %v1102 = vadd.f32 %v1078, %v1091
    %v1103 = vadd.f32 %v1079, %v1092
    %s1104 = sld [smem:[#allocation4 + $0x90]]
    %v1105 = vstv %s1104
    %v1106 = vmul.f32 %v1105, %v229
    %v1107 = vmul.f32 %v1105, %v230
    %v1108 = vmul.f32 %v1105, %v231
    %v1109 = vmul.f32 %v1105, %v232
    %v1110 = vmul.f32 %v1105, %v233
    %v1111 = vmul.f32 %v1105, %v234
    %v1112 = vmul.f32 %v1105, %v235
    %v1113 = vmul.f32 %v1105, %v236
    %v1114 = vmul.f32 %v1105, %v237
    %v1115 = vmul.f32 %v1105, %v238
    %v1116 = vmul.f32 %v1105, %v239
    %v1117 = vadd.f32 %v1093, %v1106
    %v1118 = vadd.f32 %v1094, %v1107
    %v1119 = vadd.f32 %v1095, %v1108
    %v1120 = vadd.f32 %v1096, %v1109
    %v1121 = vadd.f32 %v1097, %v1110
    %v1122 = vadd.f32 %v1098, %v1111
    %v1123 = vadd.f32 %v1099, %v1112
    %v1124 = vadd.f32 %v1100, %v1113
    %v1125 = vadd.f32 %v1101, %v1114
    %v1126 = vadd.f32 %v1102, %v1115
    %v1127 = vadd.f32 %v1103, %v1116
    %s1128 = sld [smem:[#allocation4 + $0x94]]
    %v1129 = vstv %s1128
    %v1130 = vmul.f32 %v1129, %v265
    %v1131 = vmul.f32 %v1129, %v266
    %v1132 = vmul.f32 %v1129, %v267
    %v1133 = vmul.f32 %v1129, %v268
    %v1134 = vmul.f32 %v1129, %v269
    %v1135 = vmul.f32 %v1129, %v270
    %v1136 = vmul.f32 %v1129, %v271
    %v1137 = vmul.f32 %v1129, %v272
    %v1138 = vmul.f32 %v1129, %v273
    %v1139 = vmul.f32 %v1129, %v274
    %v1140 = vmul.f32 %v1129, %v275
    %v1141 = vadd.f32 %v1117, %v1130
    %v1142 = vadd.f32 %v1118, %v1131
    %v1143 = vadd.f32 %v1119, %v1132
    %v1144 = vadd.f32 %v1120, %v1133
    %v1145 = vadd.f32 %v1121, %v1134
    %v1146 = vadd.f32 %v1122, %v1135
    %v1147 = vadd.f32 %v1123, %v1136
    %v1148 = vadd.f32 %v1124, %v1137
    %v1149 = vadd.f32 %v1125, %v1138
    %v1150 = vadd.f32 %v1126, %v1139
    %v1151 = vadd.f32 %v1127, %v1140
    %s1152 = sld [smem:[#allocation4 + $0x98]]
    %v1153 = vstv %s1152
    %v1154 = vmul.f32 %v1153, %v301
    %v1155 = vmul.f32 %v1153, %v302
    %v1156 = vmul.f32 %v1153, %v303
    %v1157 = vmul.f32 %v1153, %v304
    %v1158 = vmul.f32 %v1153, %v305
    %v1159 = vmul.f32 %v1153, %v306
    %v1160 = vmul.f32 %v1153, %v307
    %v1161 = vmul.f32 %v1153, %v308
    %v1162 = vmul.f32 %v1153, %v309
    %v1163 = vmul.f32 %v1153, %v310
    %v1164 = vmul.f32 %v1153, %v311
    %v1165 = vadd.f32 %v1141, %v1154
    %v1166 = vadd.f32 %v1142, %v1155
    %v1167 = vadd.f32 %v1143, %v1156
    %v1168 = vadd.f32 %v1144, %v1157
    %v1169 = vadd.f32 %v1145, %v1158
    %v1170 = vadd.f32 %v1146, %v1159
    %v1171 = vadd.f32 %v1147, %v1160
    %v1172 = vadd.f32 %v1148, %v1161
    %v1173 = vadd.f32 %v1149, %v1162
    %v1174 = vadd.f32 %v1150, %v1163
    %v1175 = vadd.f32 %v1151, %v1164
    %s1176 = sld [smem:[#allocation4 + $0x81]]
    %v1177 = vstv %s1176
    %v1178 = vmul.f32 %v1177, %v337
    %v1179 = vmul.f32 %v1177, %v338
    %v1180 = vmul.f32 %v1177, %v339
    %v1181 = vmul.f32 %v1177, %v340
    %v1182 = vmul.f32 %v1177, %v341
    %v1183 = vmul.f32 %v1177, %v342
    %v1184 = vmul.f32 %v1177, %v343
    %v1185 = vmul.f32 %v1177, %v344
    %v1186 = vmul.f32 %v1177, %v345
    %v1187 = vmul.f32 %v1177, %v346
    %v1188 = vmul.f32 %v1177, %v347
    %s1189 = sld [smem:[#allocation4 + $0x85]]
    %v1190 = vstv %s1189
    %v1191 = vmul.f32 %v1190, %v362
    %v1192 = vmul.f32 %v1190, %v363
    %v1193 = vmul.f32 %v1190, %v364
    %v1194 = vmul.f32 %v1190, %v365
    %v1195 = vmul.f32 %v1190, %v366
    %v1196 = vmul.f32 %v1190, %v367
    %v1197 = vmul.f32 %v1190, %v368
    %v1198 = vmul.f32 %v1190, %v369
    %v1199 = vmul.f32 %v1190, %v370
    %v1200 = vmul.f32 %v1190, %v371
    %v1201 = vmul.f32 %v1190, %v372
    %v1202 = vadd.f32 %v1178, %v1191
    %v1203 = vadd.f32 %v1179, %v1192
    %v1204 = vadd.f32 %v1180, %v1193
    %v1205 = vadd.f32 %v1181, %v1194
    %v1206 = vadd.f32 %v1182, %v1195
    %v1207 = vadd.f32 %v1183, %v1196
    %v1208 = vadd.f32 %v1184, %v1197
    %v1209 = vadd.f32 %v1185, %v1198
    %v1210 = vadd.f32 %v1186, %v1199
    %v1211 = vadd.f32 %v1187, %v1200
    %v1212 = vadd.f32 %v1188, %v1201
    %s1213 = sld [smem:[#allocation4 + $0x89]]
    %v1214 = vstv %s1213
    %v1215 = vmul.f32 %v1214, %v398
    %v1216 = vmul.f32 %v1214, %v399
    %v1217 = vmul.f32 %v1214, %v400
    %v1218 = vmul.f32 %v1214, %v401
    %v1219 = vmul.f32 %v1214, %v402
    %v1220 = vmul.f32 %v1214, %v403
    %v1221 = vmul.f32 %v1214, %v404
    %v1222 = vmul.f32 %v1214, %v405
    %v1223 = vmul.f32 %v1214, %v406
    %v1224 = vmul.f32 %v1214, %v407
    %v1225 = vmul.f32 %v1214, %v408
    %v1226 = vadd.f32 %v1202, %v1215
    %v1227 = vadd.f32 %v1203, %v1216
    %v1228 = vadd.f32 %v1204, %v1217
    %v1229 = vadd.f32 %v1205, %v1218
    %v1230 = vadd.f32 %v1206, %v1219
    %v1231 = vadd.f32 %v1207, %v1220
    %v1232 = vadd.f32 %v1208, %v1221
    %v1233 = vadd.f32 %v1209, %v1222
    %v1234 = vadd.f32 %v1210, %v1223
    %v1235 = vadd.f32 %v1211, %v1224
    %v1236 = vadd.f32 %v1212, %v1225
    %s1237 = sld [smem:[#allocation4 + $0x8d]]
    %v1238 = vstv %s1237
    %v1239 = vmul.f32 %v1238, %v434
    %v1240 = vmul.f32 %v1238, %v435
    %v1241 = vmul.f32 %v1238, %v436
    %v1242 = vmul.f32 %v1238, %v437
    %v1243 = vmul.f32 %v1238, %v438
    %v1244 = vmul.f32 %v1238, %v439
    %v1245 = vmul.f32 %v1238, %v440
    %v1246 = vmul.f32 %v1238, %v441
    %v1247 = vmul.f32 %v1238, %v442
    %v1248 = vmul.f32 %v1238, %v443
    %v1249 = vmul.f32 %v1238, %v444
    %v1250 = vadd.f32 %v1226, %v1239
    %v1251 = vadd.f32 %v1227, %v1240
    %v1252 = vadd.f32 %v1228, %v1241
    %v1253 = vadd.f32 %v1229, %v1242
    %v1254 = vadd.f32 %v1230, %v1243
    %v1255 = vadd.f32 %v1231, %v1244
    %v1256 = vadd.f32 %v1232, %v1245
    %v1257 = vadd.f32 %v1233, %v1246
    %v1258 = vadd.f32 %v1234, %v1247
    %v1259 = vadd.f32 %v1235, %v1248
    %v1260 = vadd.f32 %v1236, %v1249
    %s1261 = sld [smem:[#allocation4 + $0x91]]
    %v1262 = vstv %s1261
    %v1263 = vmul.f32 %v1262, %v470
    %v1264 = vmul.f32 %v1262, %v471
    %v1265 = vmul.f32 %v1262, %v472
    %v1266 = vmul.f32 %v1262, %v473
    %v1267 = vmul.f32 %v1262, %v474
    %v1268 = vmul.f32 %v1262, %v475
    %v1269 = vmul.f32 %v1262, %v476
    %v1270 = vmul.f32 %v1262, %v477
    %v1271 = vmul.f32 %v1262, %v478
    %v1272 = vmul.f32 %v1262, %v479
    %v1273 = vmul.f32 %v1262, %v480
    %v1274 = vadd.f32 %v1250, %v1263
    %v1275 = vadd.f32 %v1251, %v1264
    %v1276 = vadd.f32 %v1252, %v1265
    %v1277 = vadd.f32 %v1253, %v1266
    %v1278 = vadd.f32 %v1254, %v1267
    %v1279 = vadd.f32 %v1255, %v1268
    %v1280 = vadd.f32 %v1256, %v1269
    %v1281 = vadd.f32 %v1257, %v1270
    %v1282 = vadd.f32 %v1258, %v1271
    %v1283 = vadd.f32 %v1259, %v1272
    %v1284 = vadd.f32 %v1260, %v1273
    %s1285 = sld [smem:[#allocation4 + $0x95]]
    %v1286 = vstv %s1285
    %v1287 = vmul.f32 %v1286, %v506
    %v1288 = vmul.f32 %v1286, %v507
    %v1289 = vmul.f32 %v1286, %v508
    %v1290 = vmul.f32 %v1286, %v509
    %v1291 = vmul.f32 %v1286, %v510
    %v1292 = vmul.f32 %v1286, %v511
    %v1293 = vmul.f32 %v1286, %v512
    %v1294 = vmul.f32 %v1286, %v513
    %v1295 = vmul.f32 %v1286, %v514
    %v1296 = vmul.f32 %v1286, %v515
    %v1297 = vmul.f32 %v1286, %v516
    %v1298 = vadd.f32 %v1274, %v1287
    %v1299 = vadd.f32 %v1275, %v1288
    %v1300 = vadd.f32 %v1276, %v1289
    %v1301 = vadd.f32 %v1277, %v1290
    %v1302 = vadd.f32 %v1278, %v1291
    %v1303 = vadd.f32 %v1279, %v1292
    %v1304 = vadd.f32 %v1280, %v1293
    %v1305 = vadd.f32 %v1281, %v1294
    %v1306 = vadd.f32 %v1282, %v1295
    %v1307 = vadd.f32 %v1283, %v1296
    %v1308 = vadd.f32 %v1284, %v1297
    %s1309 = sld [smem:[#allocation4 + $0x99]]
    %v1310 = vstv %s1309
    %v1311 = vmul.f32 %v1310, %v542
    %v1312 = vmul.f32 %v1310, %v543
    %v1313 = vmul.f32 %v1310, %v544
    %v1314 = vmul.f32 %v1310, %v545
    %v1315 = vmul.f32 %v1310, %v546
    %v1316 = vmul.f32 %v1310, %v547
    %v1317 = vmul.f32 %v1310, %v548
    %v1318 = vmul.f32 %v1310, %v549
    %v1319 = vmul.f32 %v1310, %v550
    %v1320 = vmul.f32 %v1310, %v551
    %v1321 = vmul.f32 %v1310, %v552
    %v1322 = vadd.f32 %v1298, %v1311
    %v1323 = vadd.f32 %v1299, %v1312
    %v1324 = vadd.f32 %v1300, %v1313
    %v1325 = vadd.f32 %v1301, %v1314
    %v1326 = vadd.f32 %v1302, %v1315
    %v1327 = vadd.f32 %v1303, %v1316
    %v1328 = vadd.f32 %v1304, %v1317
    %v1329 = vadd.f32 %v1305, %v1318
    %v1330 = vadd.f32 %v1306, %v1319
    %v1331 = vadd.f32 %v1307, %v1320
    %v1332 = vadd.f32 %v1308, %v1321
    %s1333 = sld [smem:[#allocation4 + $0x82]]
    %v1334 = vstv %s1333
    %v1335 = vmul.f32 %v1334, %v578
    %v1336 = vmul.f32 %v1334, %v579
    %v1337 = vmul.f32 %v1334, %v580
    %v1338 = vmul.f32 %v1334, %v581
    %v1339 = vmul.f32 %v1334, %v582
    %v1340 = vmul.f32 %v1334, %v583
    %v1341 = vmul.f32 %v1334, %v584
    %v1342 = vmul.f32 %v1334, %v585
    %v1343 = vmul.f32 %v1334, %v586
    %v1344 = vmul.f32 %v1334, %v587
    %v1345 = vmul.f32 %v1334, %v588
    %s1346 = sld [smem:[#allocation4 + $0x86]]
    %v1347 = vstv %s1346
    %v1348 = vmul.f32 %v1347, %v603
    %v1349 = vmul.f32 %v1347, %v604
    %v1350 = vmul.f32 %v1347, %v605
    %v1351 = vmul.f32 %v1347, %v606
    %v1352 = vmul.f32 %v1347, %v607
    %v1353 = vmul.f32 %v1347, %v608
    %v1354 = vmul.f32 %v1347, %v609
    %v1355 = vmul.f32 %v1347, %v610
    %v1356 = vmul.f32 %v1347, %v611
    %v1357 = vmul.f32 %v1347, %v612
    %v1358 = vmul.f32 %v1347, %v613
    %v1359 = vadd.f32 %v1335, %v1348
    %v1360 = vadd.f32 %v1336, %v1349
    %v1361 = vadd.f32 %v1337, %v1350
    %v1362 = vadd.f32 %v1338, %v1351
    %v1363 = vadd.f32 %v1339, %v1352
    %v1364 = vadd.f32 %v1340, %v1353
    %v1365 = vadd.f32 %v1341, %v1354
    %v1366 = vadd.f32 %v1342, %v1355
    %v1367 = vadd.f32 %v1343, %v1356
    %v1368 = vadd.f32 %v1344, %v1357
    %v1369 = vadd.f32 %v1345, %v1358
    %s1370 = sld [smem:[#allocation4 + $0x8a]]
    %v1371 = vstv %s1370
    %v1372 = vmul.f32 %v1371, %v639
    %v1373 = vmul.f32 %v1371, %v640
    %v1374 = vmul.f32 %v1371, %v641
    %v1375 = vmul.f32 %v1371, %v642
    %v1376 = vmul.f32 %v1371, %v643
    %v1377 = vmul.f32 %v1371, %v644
    %v1378 = vmul.f32 %v1371, %v645
    %v1379 = vmul.f32 %v1371, %v646
    %v1380 = vmul.f32 %v1371, %v647
    %v1381 = vmul.f32 %v1371, %v648
    %v1382 = vmul.f32 %v1371, %v649
    %v1383 = vadd.f32 %v1359, %v1372
    %v1384 = vadd.f32 %v1360, %v1373
    %v1385 = vadd.f32 %v1361, %v1374
    %v1386 = vadd.f32 %v1362, %v1375
    %v1387 = vadd.f32 %v1363, %v1376
    %v1388 = vadd.f32 %v1364, %v1377
    %v1389 = vadd.f32 %v1365, %v1378
    %v1390 = vadd.f32 %v1366, %v1379
    %v1391 = vadd.f32 %v1367, %v1380
    %v1392 = vadd.f32 %v1368, %v1381
    %v1393 = vadd.f32 %v1369, %v1382
    %s1394 = sld [smem:[#allocation4 + $0x8e]]
    %v1395 = vstv %s1394
    %v1396 = vmul.f32 %v1395, %v675
    %v1397 = vmul.f32 %v1395, %v676
    %v1398 = vmul.f32 %v1395, %v677
    %v1399 = vmul.f32 %v1395, %v678
    %v1400 = vmul.f32 %v1395, %v679
    %v1401 = vmul.f32 %v1395, %v680
    %v1402 = vmul.f32 %v1395, %v681
    %v1403 = vmul.f32 %v1395, %v682
    %v1404 = vmul.f32 %v1395, %v683
    %v1405 = vmul.f32 %v1395, %v684
    %v1406 = vmul.f32 %v1395, %v685
    %v1407 = vadd.f32 %v1383, %v1396
    %v1408 = vadd.f32 %v1384, %v1397
    %v1409 = vadd.f32 %v1385, %v1398
    %v1410 = vadd.f32 %v1386, %v1399
    %v1411 = vadd.f32 %v1387, %v1400
    %v1412 = vadd.f32 %v1388, %v1401
    %v1413 = vadd.f32 %v1389, %v1402
    %v1414 = vadd.f32 %v1390, %v1403
    %v1415 = vadd.f32 %v1391, %v1404
    %v1416 = vadd.f32 %v1392, %v1405
    %v1417 = vadd.f32 %v1393, %v1406
    %s1418 = sld [smem:[#allocation4 + $0x92]]
    %v1419 = vstv %s1418
    %v1420 = vmul.f32 %v1419, %v711
    %v1421 = vmul.f32 %v1419, %v712
    %v1422 = vmul.f32 %v1419, %v713
    %v1423 = vmul.f32 %v1419, %v714
    %v1424 = vmul.f32 %v1419, %v715
    %v1425 = vmul.f32 %v1419, %v716
    %v1426 = vmul.f32 %v1419, %v717
    %v1427 = vmul.f32 %v1419, %v718
    %v1428 = vmul.f32 %v1419, %v719
    %v1429 = vmul.f32 %v1419, %v720
    %v1430 = vmul.f32 %v1419, %v721
    %v1431 = vadd.f32 %v1407, %v1420
    %v1432 = vadd.f32 %v1408, %v1421
    %v1433 = vadd.f32 %v1409, %v1422
    %v1434 = vadd.f32 %v1410, %v1423
    %v1435 = vadd.f32 %v1411, %v1424
    %v1436 = vadd.f32 %v1412, %v1425
    %v1437 = vadd.f32 %v1413, %v1426
    %v1438 = vadd.f32 %v1414, %v1427
    %v1439 = vadd.f32 %v1415, %v1428
    %v1440 = vadd.f32 %v1416, %v1429
    %v1441 = vadd.f32 %v1417, %v1430
    %s1442 = sld [smem:[#allocation4 + $0x96]]
    %v1443 = vstv %s1442
    %v1444 = vmul.f32 %v1443, %v747
    %v1445 = vmul.f32 %v1443, %v748
    %v1446 = vmul.f32 %v1443, %v749
    %v1447 = vmul.f32 %v1443, %v750
    %v1448 = vmul.f32 %v1443, %v751
    %v1449 = vmul.f32 %v1443, %v752
    %v1450 = vmul.f32 %v1443, %v753
    %v1451 = vmul.f32 %v1443, %v754
    %v1452 = vmul.f32 %v1443, %v755
    %v1453 = vmul.f32 %v1443, %v756
    %v1454 = vmul.f32 %v1443, %v757
    %v1455 = vadd.f32 %v1431, %v1444
    %v1456 = vadd.f32 %v1432, %v1445
    %v1457 = vadd.f32 %v1433, %v1446
    %v1458 = vadd.f32 %v1434, %v1447
    %v1459 = vadd.f32 %v1435, %v1448
    %v1460 = vadd.f32 %v1436, %v1449
    %v1461 = vadd.f32 %v1437, %v1450
    %v1462 = vadd.f32 %v1438, %v1451
    %v1463 = vadd.f32 %v1439, %v1452
    %v1464 = vadd.f32 %v1440, %v1453
    %v1465 = vadd.f32 %v1441, %v1454
    %s1466 = sld [smem:[#allocation4 + $0x83]]
    %v1467 = vstv %s1466
    %v1468 = vmul.f32 %v1467, %v783
    %v1469 = vmul.f32 %v1467, %v784
    %v1470 = vmul.f32 %v1467, %v785
    %v1471 = vmul.f32 %v1467, %v786
    %v1472 = vmul.f32 %v1467, %v787
    %v1473 = vmul.f32 %v1467, %v788
    %v1474 = vmul.f32 %v1467, %v789
    %v1475 = vmul.f32 %v1467, %v790
    %v1476 = vmul.f32 %v1467, %v791
    %v1477 = vmul.f32 %v1467, %v792
    %v1478 = vmul.f32 %v1467, %v793
    %s1479 = sld [smem:[#allocation4 + $0x87]]
    %v1480 = vstv %s1479
    %v1481 = vmul.f32 %v1480, %v808
    %v1482 = vmul.f32 %v1480, %v809
    %v1483 = vmul.f32 %v1480, %v810
    %v1484 = vmul.f32 %v1480, %v811
    %v1485 = vmul.f32 %v1480, %v812
    %v1486 = vmul.f32 %v1480, %v813
    %v1487 = vmul.f32 %v1480, %v814
    %v1488 = vmul.f32 %v1480, %v815
    %v1489 = vmul.f32 %v1480, %v816
    %v1490 = vmul.f32 %v1480, %v817
    %v1491 = vmul.f32 %v1480, %v818
    %v1492 = vadd.f32 %v1468, %v1481
    %v1493 = vadd.f32 %v1469, %v1482
    %v1494 = vadd.f32 %v1470, %v1483
    %v1495 = vadd.f32 %v1471, %v1484
    %v1496 = vadd.f32 %v1472, %v1485
    %v1497 = vadd.f32 %v1473, %v1486
    %v1498 = vadd.f32 %v1474, %v1487
    %v1499 = vadd.f32 %v1475, %v1488
    %v1500 = vadd.f32 %v1476, %v1489
    %v1501 = vadd.f32 %v1477, %v1490
    %v1502 = vadd.f32 %v1478, %v1491
    %s1503 = sld [smem:[#allocation4 + $0x8b]]
    %v1504 = vstv %s1503
    %v1505 = vmul.f32 %v1504, %v844
    %v1506 = vmul.f32 %v1504, %v845
    %v1507 = vmul.f32 %v1504, %v846
    %v1508 = vmul.f32 %v1504, %v847
    %v1509 = vmul.f32 %v1504, %v848
    %v1510 = vmul.f32 %v1504, %v849
    %v1511 = vmul.f32 %v1504, %v850
    %v1512 = vmul.f32 %v1504, %v851
    %v1513 = vmul.f32 %v1504, %v852
    %v1514 = vmul.f32 %v1504, %v853
    %v1515 = vmul.f32 %v1504, %v854
    %v1516 = vadd.f32 %v1492, %v1505
    %v1517 = vadd.f32 %v1493, %v1506
    %v1518 = vadd.f32 %v1494, %v1507
    %v1519 = vadd.f32 %v1495, %v1508
    %v1520 = vadd.f32 %v1496, %v1509
    %v1521 = vadd.f32 %v1497, %v1510
    %v1522 = vadd.f32 %v1498, %v1511
    %v1523 = vadd.f32 %v1499, %v1512
    %v1524 = vadd.f32 %v1500, %v1513
    %v1525 = vadd.f32 %v1501, %v1514
    %v1526 = vadd.f32 %v1502, %v1515
    %s1527 = sld [smem:[#allocation4 + $0x8f]]
    %v1528 = vstv %s1527
    %v1529 = vmul.f32 %v1528, %v880
    %v1530 = vmul.f32 %v1528, %v881
    %v1531 = vmul.f32 %v1528, %v882
    %v1532 = vmul.f32 %v1528, %v883
    %v1533 = vmul.f32 %v1528, %v884
    %v1534 = vmul.f32 %v1528, %v885
    %v1535 = vmul.f32 %v1528, %v886
    %v1536 = vmul.f32 %v1528, %v887
    %v1537 = vmul.f32 %v1528, %v888
    %v1538 = vmul.f32 %v1528, %v889
    %v1539 = vmul.f32 %v1528, %v890
    %v1540 = vadd.f32 %v1516, %v1529
    %v1541 = vadd.f32 %v1517, %v1530
    %v1542 = vadd.f32 %v1518, %v1531
    %v1543 = vadd.f32 %v1519, %v1532
    %v1544 = vadd.f32 %v1520, %v1533
    %v1545 = vadd.f32 %v1521, %v1534
    %v1546 = vadd.f32 %v1522, %v1535
    %v1547 = vadd.f32 %v1523, %v1536
    %v1548 = vadd.f32 %v1524, %v1537
    %v1549 = vadd.f32 %v1525, %v1538
    %v1550 = vadd.f32 %v1526, %v1539
    %s1551 = sld [smem:[#allocation4 + $0x93]]
    %v1552 = vstv %s1551
    %v1553 = vmul.f32 %v1552, %v916
    %v1554 = vmul.f32 %v1552, %v917
    %v1555 = vmul.f32 %v1552, %v918
    %v1556 = vmul.f32 %v1552, %v919
    %v1557 = vmul.f32 %v1552, %v920
    %v1558 = vmul.f32 %v1552, %v921
    %v1559 = vmul.f32 %v1552, %v922
    %v1560 = vmul.f32 %v1552, %v923
    %v1561 = vmul.f32 %v1552, %v924
    %v1562 = vmul.f32 %v1552, %v925
    %v1563 = vmul.f32 %v1552, %v926
    %v1564 = vadd.f32 %v1540, %v1553
    %v1565 = vadd.f32 %v1541, %v1554
    %v1566 = vadd.f32 %v1542, %v1555
    %v1567 = vadd.f32 %v1543, %v1556
    %v1568 = vadd.f32 %v1544, %v1557
    %v1569 = vadd.f32 %v1545, %v1558
    %v1570 = vadd.f32 %v1546, %v1559
    %v1571 = vadd.f32 %v1547, %v1560
    %v1572 = vadd.f32 %v1548, %v1561
    %v1573 = vadd.f32 %v1549, %v1562
    %v1574 = vadd.f32 %v1550, %v1563
    %s1575 = sld [smem:[#allocation4 + $0x97]]
    %v1576 = vstv %s1575
    %v1577 = vmul.f32 %v1576, %v952
    %v1578 = vmul.f32 %v1576, %v953
    %v1579 = vmul.f32 %v1576, %v954
    %v1580 = vmul.f32 %v1576, %v955
    %v1581 = vmul.f32 %v1576, %v956
    %v1582 = vmul.f32 %v1576, %v957
    %v1583 = vmul.f32 %v1576, %v958
    %v1584 = vmul.f32 %v1576, %v959
    %v1585 = vmul.f32 %v1576, %v960
    %v1586 = vmul.f32 %v1576, %v961
    %v1587 = vmul.f32 %v1576, %v962
    %v1588 = vadd.f32 %v1564, %v1577
    %v1589 = vadd.f32 %v1565, %v1578
    %v1590 = vadd.f32 %v1566, %v1579
    %v1591 = vadd.f32 %v1567, %v1580
    %v1592 = vadd.f32 %v1568, %v1581
    %v1593 = vadd.f32 %v1569, %v1582
    %v1594 = vadd.f32 %v1570, %v1583
    %v1595 = vadd.f32 %v1571, %v1584
    %v1596 = vadd.f32 %v1572, %v1585
    %v1597 = vadd.f32 %v1573, %v1586
    %v1598 = vadd.f32 %v1574, %v1587
    %v1599 = vadd.f32 %v1165, %v1322
    %v1600 = vadd.f32 %v1166, %v1323
    %v1601 = vadd.f32 %v1167, %v1324
    %v1602 = vadd.f32 %v1168, %v1325
    %v1603 = vadd.f32 %v1169, %v1326
    %v1604 = vadd.f32 %v1170, %v1327
    %v1605 = vadd.f32 %v1171, %v1328
    %v1606 = vadd.f32 %v1172, %v1329
    %v1607 = vadd.f32 %v1173, %v1330
    %v1608 = vadd.f32 %v1174, %v1331
    %v1609 = vadd.f32 %v1175, %v1332
    %v1610 = vadd.f32 %v1455, %v1588
    %v1611 = vadd.f32 %v1456, %v1589
    %v1612 = vadd.f32 %v1457, %v1590
    %v1613 = vadd.f32 %v1458, %v1591
    %v1614 = vadd.f32 %v1459, %v1592
    %v1615 = vadd.f32 %v1460, %v1593
    %v1616 = vadd.f32 %v1461, %v1594
    %v1617 = vadd.f32 %v1462, %v1595
    %v1618 = vadd.f32 %v1463, %v1596
    %v1619 = vadd.f32 %v1464, %v1597
    %v1620 = vadd.f32 %v1465, %v1598
    %v1621 = vadd.f32 %v1599, %v1610
    %v1622 = vadd.f32 %v1600, %v1611
    %v1623 = vadd.f32 %v1601, %v1612
    %v1624 = vadd.f32 %v1602, %v1613
    %v1625 = vadd.f32 %v1603, %v1614
    %v1626 = vadd.f32 %v1604, %v1615
    %v1627 = vadd.f32 %v1605, %v1616
    %v1628 = vadd.f32 %v1606, %v1617
    %v1629 = vadd.f32 %v1607, %v1618
    %v1630 = vadd.f32 %v1608, %v1619
    %v1631 = vadd.f32 %v1609, %v1620
    %v1632 = vsel %vm51, %v1008, 0.0
    %v1633 = vsel %vm51, %v1009, 0.0
    %v1634 = vadd.f32 %v1632, %v1633
    %v1635 = vsel %vm51, %v1010, 0.0
    %v1636 = vadd.f32 %v1634, %v1635
    %v1637 = vsel %vm51, %v1011, 0.0
    %v1638 = vadd.f32 %v1636, %v1637
    %v1639 = vsel %vm51, %v1012, 0.0
    %v1640 = vadd.f32 %v1638, %v1639
    %v1641 = vsel %vm51, %v1013, 0.0
    %v1642 = vadd.f32 %v1640, %v1641
    %v1643 = vsel %vm51, %v1014, 0.0
    %v1644 = vadd.f32 %v1642, %v1643
    %v1645 = vsel %vm51, %v1015, 0.0
    %v1646 = vadd.f32 %v1644, %v1645
    %v1647 = vsel %vm51, %v1016, 0.0
    %v1648 = vadd.f32 %v1646, %v1647
    %v1649 = vsel %vm51, %v1017, 0.0
    %v1650 = vadd.f32 %v1648, %v1649
    %vm1651 = vcmask 253952
    %v1652 = vsel %vm1651, %v1018, 0.0
    %v1653 = vadd.f32 %v1650, %v1652
    %v1654 = vrot.slane %v1653, 4
    %v1655 = vadd.f32 %v1653, %v1654
    %v1656 = vrot.slane %v1655, 2
    %v1657 = vadd.f32 %v1655, %v1656
    %v1658 = vrot.slane %v1657, 1
    %v1659 = vadd.f32 %v1657, %v1658
    %v1660 = vadd.f32 %v1659, 0.0
    %v1661 = vmul.f32 %v1008, %v1008
    %v1662 = vmul.f32 %v1009, %v1009
    %v1663 = vmul.f32 %v1010, %v1010
    %v1664 = vmul.f32 %v1011, %v1011
    %v1665 = vmul.f32 %v1012, %v1012
    %v1666 = vmul.f32 %v1013, %v1013
    %v1667 = vmul.f32 %v1014, %v1014
    %v1668 = vmul.f32 %v1015, %v1015
    %v1669 = vmul.f32 %v1016, %v1016
    %v1670 = vmul.f32 %v1017, %v1017
    %v1671 = vmul.f32 %v1018, %v1018
    %v1672 = vsel %vm51, %v1661, 0.0
    %v1673 = vsel %vm51, %v1662, 0.0
    %v1674 = vadd.f32 %v1672, %v1673
    %v1675 = vsel %vm51, %v1663, 0.0
    %v1676 = vadd.f32 %v1674, %v1675
    %v1677 = vsel %vm51, %v1664, 0.0
    %v1678 = vadd.f32 %v1676, %v1677
    %v1679 = vsel %vm51, %v1665, 0.0
    %v1680 = vadd.f32 %v1678, %v1679
    %v1681 = vsel %vm51, %v1666, 0.0
    %v1682 = vadd.f32 %v1680, %v1681
    %v1683 = vsel %vm51, %v1667, 0.0
    %v1684 = vadd.f32 %v1682, %v1683
    %v1685 = vsel %vm51, %v1668, 0.0
    %v1686 = vadd.f32 %v1684, %v1685
    %v1687 = vsel %vm51, %v1669, 0.0
    %v1688 = vadd.f32 %v1686, %v1687
    %v1689 = vsel %vm51, %v1670, 0.0
    %v1690 = vadd.f32 %v1688, %v1689
    %v1691 = vsel %vm1651, %v1671, 0.0
    %v1692 = vadd.f32 %v1690, %v1691
    %v1693 = vrot.slane %v1692, 4
    %v1694 = vadd.f32 %v1692, %v1693
    %v1695 = vrot.slane %v1694, 2
    %v1696 = vadd.f32 %v1694, %v1695
    %v1697 = vrot.slane %v1696, 1
    %v1698 = vadd.f32 %v1696, %v1697
    %v1699 = vadd.f32 %v1698, 0.0
    %v1700 = vsel %vm51, %v1621, 0.0
    %v1701 = vsel %vm51, %v1622, 0.0
    %v1702 = vadd.f32 %v1700, %v1701
    %v1703 = vsel %vm51, %v1623, 0.0
    %v1704 = vadd.f32 %v1702, %v1703
    %v1705 = vsel %vm51, %v1624, 0.0
    %v1706 = vadd.f32 %v1704, %v1705
    %v1707 = vsel %vm51, %v1625, 0.0
    %v1708 = vadd.f32 %v1706, %v1707
    %v1709 = vsel %vm51, %v1626, 0.0
    %v1710 = vadd.f32 %v1708, %v1709
    %v1711 = vsel %vm51, %v1627, 0.0
    %v1712 = vadd.f32 %v1710, %v1711
    %v1713 = vsel %vm51, %v1628, 0.0
    %v1714 = vadd.f32 %v1712, %v1713
    %v1715 = vsel %vm51, %v1629, 0.0
    %v1716 = vadd.f32 %v1714, %v1715
    %v1717 = vsel %vm51, %v1630, 0.0
    %v1718 = vadd.f32 %v1716, %v1717
    %v1719 = vsel %vm1651, %v1631, 0.0
    %v1720 = vadd.f32 %v1718, %v1719
    %v1721 = vrot.slane %v1720, 4
    %v1722 = vadd.f32 %v1720, %v1721
    %v1723 = vrot.slane %v1722, 2
    %v1724 = vadd.f32 %v1722, %v1723
    %v1725 = vrot.slane %v1724, 1
    %v1726 = vadd.f32 %v1724, %v1725
    %v1727 = vadd.f32 %v1660, %v1726
    %v1728 = vmul.f32 %v1621, %v1621
    %v1729 = vmul.f32 %v1622, %v1622
    %v1730 = vmul.f32 %v1623, %v1623
    %v1731 = vmul.f32 %v1624, %v1624
    %v1732 = vmul.f32 %v1625, %v1625
    %v1733 = vmul.f32 %v1626, %v1626
    %v1734 = vmul.f32 %v1627, %v1627
    %v1735 = vmul.f32 %v1628, %v1628
    %v1736 = vmul.f32 %v1629, %v1629
    %v1737 = vmul.f32 %v1630, %v1630
    %v1738 = vmul.f32 %v1631, %v1631
    %v1739 = vsel %vm51, %v1728, 0.0
    %v1740 = vsel %vm51, %v1729, 0.0
    %v1741 = vadd.f32 %v1739, %v1740
    %v1742 = vsel %vm51, %v1730, 0.0
    %v1743 = vadd.f32 %v1741, %v1742
    %v1744 = vsel %vm51, %v1731, 0.0
    %v1745 = vadd.f32 %v1743, %v1744
    %v1746 = vsel %vm51, %v1732, 0.0
    %v1747 = vadd.f32 %v1745, %v1746
    %v1748 = vsel %vm51, %v1733, 0.0
    %v1749 = vadd.f32 %v1747, %v1748
    %v1750 = vsel %vm51, %v1734, 0.0
    %v1751 = vadd.f32 %v1749, %v1750
    %v1752 = vsel %vm51, %v1735, 0.0
    %v1753 = vadd.f32 %v1751, %v1752
    %v1754 = vsel %vm51, %v1736, 0.0
    %v1755 = vadd.f32 %v1753, %v1754
    %v1756 = vsel %vm51, %v1737, 0.0
    %v1757 = vadd.f32 %v1755, %v1756
    %v1758 = vsel %vm1651, %v1738, 0.0
    %v1759 = vadd.f32 %v1757, %v1758
    %v1760 = vrot.slane %v1759, 4
    %v1761 = vadd.f32 %v1759, %v1760
    %v1762 = vrot.slane %v1761, 2
    %v1763 = vadd.f32 %v1761, %v1762
    %v1764 = vrot.slane %v1763, 1
    %v1765 = vadd.f32 %v1763, %v1764
    %v1766 = vadd.f32 %v1699, %v1765
    %v1767 = vrcp.pop 98.0
    %v1768 = vmul.f32 98.0, %v1767
    %v1769 = vsub.f32 1.0, %v1768
    %v1770 = vmul.f32 %v1767, %v1769
    %v1771 = vadd.f32 %v1767, %v1770
    %vm1772 = vweird.f32 %v1767
    %v1773 = vsel %vm1772, %v1767, %v1771
    %v1774 = vmul.f32 %v1727, %v1773
    %v1775 = vmul.f32 %v1766, %v1773
    %v1776 = vmul.f32 %v1774, %v1774
    %v1777 = vsub.f32 %v1775, %v1776
    %v1778 = vmax.f32 %v1777, 0.0
    %v1779 = vld [vmem:[%s2] sm:$0x1]
    %v1780 = vadd.f32 %v1778, 1e-05
    %v1781 = vrsqrt.pop %v1780
    %v1782 = vmul.f32 %v1781, %v1780
    %v1783 = vmul.f32 %v1782, %v1781
    %v1784 = vmul.f32 0.5, %v1783
    %v1785 = vsub.f32 1.5, %v1784
    %v1786 = vmul.f32 %v1781, %v1785
    %vm1787 = vweird.f32 %v1780
    %vm1788 = vweird.f32 %v1781
    %vm1789 = vmor %vm1787, %vm1788
    %v1790 = vsel %vm1789, %v1781, %v1786
    %v1791 = vmul.f32 %v1779, %v1790
    %v1792 = vld [vmem:[%s3] sm:$0x1]
    %v1793 = vmul.f32 %v1774, %v1791
    %v1794 = vsub.f32 %v1792, %v1793
    %v1795 = vld [vmem:[%s8] sm:$0xff]
    %v1796 = vld [vmem:[%s8 + $0x8] sm:$0xff]
    %v1797 = vld [vmem:[%s8 + $0x10] sm:$0xff]
    %v1798 = vld [vmem:[%s8 + $0x18] sm:$0xff]
    %v1799 = vld [vmem:[%s8 + $0x20] sm:$0xff]
    %v1800 = vld [vmem:[%s8 + $0x28] sm:$0xff]
    %v1801 = vld [vmem:[%s8 + $0x30] sm:$0xff]
    %v1802 = vld [vmem:[%s8 + $0x38] sm:$0xff]
    %v1803 = vld [vmem:[%s8 + $0x40] sm:$0xff]
    %v1804 = vld [vmem:[%s8 + $0x48] sm:$0xff]
    %v1805 = vld [vmem:[%s8 + $0x50] sm:$0x1]
    %v1807 = vperm.slane %v1791, 0
    %v1809 = vmul.f32 %v1008, %v1807
    %v1810 = vmul.f32 %v1009, %v1807
    %v1811 = vmul.f32 %v1010, %v1807
    %v1812 = vmul.f32 %v1011, %v1807
    %v1813 = vmul.f32 %v1012, %v1807
    %v1814 = vmul.f32 %v1013, %v1807
    %v1815 = vmul.f32 %v1014, %v1807
    %v1816 = vmul.f32 %v1015, %v1807
    %v1817 = vmul.f32 %v1016, %v1807
    %v1818 = vmul.f32 %v1017, %v1807
    %v1819 = vmul.f32 %v1018, %v1807
    %v1821 = vperm.slane %v1794, 0
    %v1823 = vadd.f32 %v1809, %v1821
    %v1824 = vadd.f32 %v1810, %v1821
    %v1825 = vadd.f32 %v1811, %v1821
    %v1826 = vadd.f32 %v1812, %v1821
    %v1827 = vadd.f32 %v1813, %v1821
    %v1828 = vadd.f32 %v1814, %v1821
    %v1829 = vadd.f32 %v1815, %v1821
    %v1830 = vadd.f32 %v1816, %v1821
    %v1831 = vadd.f32 %v1817, %v1821
    %v1832 = vadd.f32 %v1818, %v1821
    %v1833 = vadd.f32 %v1819, %v1821
    %v1834 = vmax.f32 %v1823, 0.0
    %v1835 = vmax.f32 %v1824, 0.0
    %v1836 = vmax.f32 %v1825, 0.0
    %v1837 = vmax.f32 %v1826, 0.0
    %v1838 = vmax.f32 %v1827, 0.0
    %v1839 = vmax.f32 %v1828, 0.0
    %v1840 = vmax.f32 %v1829, 0.0
    %v1841 = vmax.f32 %v1830, 0.0
    %v1842 = vmax.f32 %v1831, 0.0
    %v1843 = vmax.f32 %v1832, 0.0
    %v1844 = vmax.f32 %v1833, 0.0
    %1846 = vset.pattern.permute.xlu0 0
    %1847 = vperm.xlu0 %1846, %v1795
    %v1848 = vpop.permute.xlu0 %1847
    %1851 = vset.pattern.permute.xlu0 0
    %1852 = vperm.xlu0 %1851, %v1796
    %v1853 = vpop.permute.xlu0 %1852
    %1856 = vset.pattern.permute.xlu0 0
    %1857 = vperm.xlu0 %1856, %v1797
    %v1858 = vpop.permute.xlu0 %1857
    %1861 = vset.pattern.permute.xlu0 0
    %1862 = vperm.xlu0 %1861, %v1798
    %v1863 = vpop.permute.xlu0 %1862
    %1866 = vset.pattern.permute.xlu0 0
    %1867 = vperm.xlu0 %1866, %v1799
    %v1868 = vpop.permute.xlu0 %1867
    %1871 = vset.pattern.permute.xlu0 0
    %1872 = vperm.xlu0 %1871, %v1800
    %v1873 = vpop.permute.xlu0 %1872
    %1876 = vset.pattern.permute.xlu0 0
    %1877 = vperm.xlu0 %1876, %v1801
    %v1878 = vpop.permute.xlu0 %1877
    %1881 = vset.pattern.permute.xlu0 0
    %1882 = vperm.xlu0 %1881, %v1802
    %v1883 = vpop.permute.xlu0 %1882
    %1886 = vset.pattern.permute.xlu0 0
    %1887 = vperm.xlu0 %1886, %v1803
    %v1888 = vpop.permute.xlu0 %1887
    %1891 = vset.pattern.permute.xlu0 0
    %1892 = vperm.xlu0 %1891, %v1804
    %v1893 = vpop.permute.xlu0 %1892
    %1896 = vset.pattern.permute.xlu0 0
    %1897 = vperm.xlu0 %1896, %v1805
    %v1898 = vpop.permute.xlu0 %1897
    %v1900 = vmul.f32 %v1834, %v1848
    %v1901 = vmul.f32 %v1835, %v1853
    %v1902 = vmul.f32 %v1836, %v1858
    %v1903 = vmul.f32 %v1837, %v1863
    %v1904 = vmul.f32 %v1838, %v1868
    %v1905 = vmul.f32 %v1839, %v1873
    %v1906 = vmul.f32 %v1840, %v1878
    %v1907 = vmul.f32 %v1841, %v1883
    %v1908 = vmul.f32 %v1842, %v1888
    %v1909 = vmul.f32 %v1843, %v1893
    %v1910 = vmul.f32 %v1844, %v1898
    %vm1922 = vcmask 1041408
    %v1923 = vrot.slane %v1900, 6
    %v1924 = vrot.slane %v1901, 6
    %v1925 = vsel %vm1922, %v1923, %v1924
    %v1926 = vrot.slane %v1902, 6
    %v1927 = vsel %vm1922, %v1924, %v1926
    %v1928 = vrot.slane %v1903, 6
    %v1929 = vsel %vm1922, %v1926, %v1928
    %v1930 = vrot.slane %v1904, 6
    %v1931 = vsel %vm1922, %v1928, %v1930
    %v1932 = vrot.slane %v1905, 6
    %v1933 = vsel %vm1922, %v1930, %v1932
    %v1934 = vrot.slane %v1906, 6
    %v1935 = vsel %vm1922, %v1932, %v1934
    %v1936 = vrot.slane %v1907, 6
    %v1937 = vsel %vm1922, %v1934, %v1936
    %v1938 = vrot.slane %v1908, 6
    %v1939 = vsel %vm1922, %v1936, %v1938
    %v1940 = vrot.slane %v1909, 6
    %v1941 = vsel %vm1922, %v1938, %v1940
    %v1942 = vrot.slane %v1910, 6
    %v1943 = vsel %vm1922, %v1940, %v1942
    %1955 = vst.msk [vmem:[#allocation2 + $0x48] sm:$0xfc] %vm58, %v1923
    %1956 = vst.msk [vmem:[#allocation2 + $0x60] sm:$0xff] %vm51, %v1925
    %1957 = vst.msk [vmem:[#allocation2 + $0x78] sm:$0xff] %vm51, %v1927
    %1958 = vst.msk [vmem:[#allocation2 + $0x90] sm:$0xff] %vm51, %v1929
    %1959 = vst.msk [vmem:[#allocation2 + $0xa8] sm:$0xff] %vm51, %v1931
    %1960 = vst.msk [vmem:[#allocation2 + $0xc0] sm:$0xff] %vm51, %v1933
    %1961 = vst.msk [vmem:[#allocation2 + $0xd8] sm:$0xff] %vm51, %v1935
    %1962 = vst.msk [vmem:[#allocation2 + $0xf0] sm:$0xff] %vm51, %v1937
    %1963 = vst.msk [vmem:[#allocation2 + $0x108] sm:$0xff] %vm51, %v1939
    %1964 = vst.msk [vmem:[#allocation2 + $0x120] sm:$0xff] %vm51, %v1941
    %vm1965 = vcmask 256000
    %1966 = vst.msk [vmem:[#allocation2 + $0x138] sm:$0x7] %vm1965, %v1943
    %vm1967 = vcmask 1040384
    %v1968 = vrot.slane %v1900, 7
    %v1969 = vrot.slane %v1901, 7
    %v1970 = vsel %vm1967, %v1968, %v1969
    %v1971 = vrot.slane %v1902, 7
    %v1972 = vsel %vm1967, %v1969, %v1971
    %v1973 = vrot.slane %v1903, 7
    %v1974 = vsel %vm1967, %v1971, %v1973
    %v1975 = vrot.slane %v1904, 7
    %v1976 = vsel %vm1967, %v1973, %v1975
    %v1977 = vrot.slane %v1905, 7
    %v1978 = vsel %vm1967, %v1975, %v1977
    %v1979 = vrot.slane %v1906, 7
    %v1980 = vsel %vm1967, %v1977, %v1979
    %v1981 = vrot.slane %v1907, 7
    %v1982 = vsel %vm1967, %v1979, %v1981
    %v1983 = vrot.slane %v1908, 7
    %v1984 = vsel %vm1967, %v1981, %v1983
    %v1985 = vrot.slane %v1909, 7
    %v1986 = vsel %vm1967, %v1983, %v1985
    %v1987 = vrot.slane %v1910, 7
    %v1988 = vsel %vm1967, %v1985, %v1987
    %1989 = vrot.lane.b32.xlu0 %v1968, 32
    %v1990 = vpop.permute.xlu0 %1989
    %1991 = vrot.lane.b32.xlu0 %v1970, 32
    %v1992 = vpop.permute.xlu0 %1991
    %1993 = vrot.lane.b32.xlu0 %v1972, 32
    %v1994 = vpop.permute.xlu0 %1993
    %1995 = vrot.lane.b32.xlu0 %v1974, 32
    %v1996 = vpop.permute.xlu0 %1995
    %1997 = vrot.lane.b32.xlu0 %v1976, 32
    %v1998 = vpop.permute.xlu0 %1997
    %1999 = vrot.lane.b32.xlu0 %v1978, 32
    %v2000 = vpop.permute.xlu0 %1999
    %2001 = vrot.lane.b32.xlu0 %v1980, 32
    %v2002 = vpop.permute.xlu0 %2001
    %2003 = vrot.lane.b32.xlu0 %v1982, 32
    %v2004 = vpop.permute.xlu0 %2003
    %2005 = vrot.lane.b32.xlu0 %v1984, 32
    %v2006 = vpop.permute.xlu0 %2005
    %2007 = vrot.lane.b32.xlu0 %v1986, 32
    %v2008 = vpop.permute.xlu0 %2007
    %2009 = vrot.lane.b32.xlu0 %v1988, 32
    %v2010 = vpop.permute.xlu0 %2009
    %vm2022 = vcmask 523521
    %2023 = vst.msk [vmem:[#allocation2 + $0x48] sm:$0xfe] %vm2022, %v1990
    %vm2024 = vcmask 523520
    %2025 = vst.msk [vmem:[#allocation2 + $0x60] sm:$0xff] %vm2024, %v1992
    %2026 = vst.msk [vmem:[#allocation2 + $0x78] sm:$0xff] %vm2024, %v1994
    %2027 = vst.msk [vmem:[#allocation2 + $0x90] sm:$0xff] %vm2024, %v1996
    %2028 = vst.msk [vmem:[#allocation2 + $0xa8] sm:$0xff] %vm2024, %v1998
    %2029 = vst.msk [vmem:[#allocation2 + $0xc0] sm:$0xff] %vm2024, %v2000
    %2030 = vst.msk [vmem:[#allocation2 + $0xd8] sm:$0xff] %vm2024, %v2002
    %2031 = vst.msk [vmem:[#allocation2 + $0xf0] sm:$0xff] %vm2024, %v2004
    %2032 = vst.msk [vmem:[#allocation2 + $0x108] sm:$0xff] %vm2024, %v2006
    %2033 = vst.msk [vmem:[#allocation2 + $0x120] sm:$0xff] %vm2024, %v2008
    %vm2034 = vcmask 517376
    %2035 = vst.msk [vmem:[#allocation2 + $0x138] sm:$0x3] %vm2034, %v2010
    %2036 = vrot.lane.b32.xlu0 %v1900, 64
    %v2037 = vpop.permute.xlu0 %2036
    %2038 = vrot.lane.b32.xlu0 %v1901, 64
    %v2039 = vpop.permute.xlu0 %2038
    %2040 = vrot.lane.b32.xlu0 %v1902, 64
    %v2041 = vpop.permute.xlu0 %2040
    %2042 = vrot.lane.b32.xlu0 %v1903, 64
    %v2043 = vpop.permute.xlu0 %2042
    %2044 = vrot.lane.b32.xlu0 %v1904, 64
    %v2045 = vpop.permute.xlu0 %2044
    %2046 = vrot.lane.b32.xlu0 %v1905, 64
    %v2047 = vpop.permute.xlu0 %2046
    %2048 = vrot.lane.b32.xlu0 %v1906, 64
    %v2049 = vpop.permute.xlu0 %2048
    %2050 = vrot.lane.b32.xlu0 %v1907, 64
    %v2051 = vpop.permute.xlu0 %2050
    %2052 = vrot.lane.b32.xlu0 %v1908, 64
    %v2053 = vpop.permute.xlu0 %2052
    %2054 = vrot.lane.b32.xlu0 %v1909, 64
    %v2055 = vpop.permute.xlu0 %2054
    %2056 = vrot.lane.b32.xlu0 %v1910, 64
    %v2057 = vpop.permute.xlu0 %2056
    %vm2069 = vcmask 785920
    %2070 = vst.msk [vmem:[#allocation2 + $0x48] sm:$0xff] %vm2069, %v2037
    %2071 = vst.msk [vmem:[#allocation2 + $0x60] sm:$0xff] %vm2069, %v2039
    %2072 = vst.msk [vmem:[#allocation2 + $0x78] sm:$0xff] %vm2069, %v2041
    %2073 = vst.msk [vmem:[#allocation2 + $0x90] sm:$0xff] %vm2069, %v2043
    %2074 = vst.msk [vmem:[#allocation2 + $0xa8] sm:$0xff] %vm2069, %v2045
    %2075 = vst.msk [vmem:[#allocation2 + $0xc0] sm:$0xff] %vm2069, %v2047
    %2076 = vst.msk [vmem:[#allocation2 + $0xd8] sm:$0xff] %vm2069, %v2049
    %2077 = vst.msk [vmem:[#allocation2 + $0xf0] sm:$0xff] %vm2069, %v2051
    %2078 = vst.msk [vmem:[#allocation2 + $0x108] sm:$0xff] %vm2069, %v2053
    %2079 = vst.msk [vmem:[#allocation2 + $0x120] sm:$0xff] %vm2069, %v2055
    %vm2080 = vcmask 778752
    %2081 = vst.msk [vmem:[#allocation2 + $0x138] sm:$0x1] %vm2080, %v2057
    %2082 = vrot.lane.b32.xlu0 %v1968, 96
    %v2083 = vpop.permute.xlu0 %2082
    %2084 = vrot.lane.b32.xlu0 %v1970, 96
    %v2085 = vpop.permute.xlu0 %2084
    %2086 = vrot.lane.b32.xlu0 %v1972, 96
    %v2087 = vpop.permute.xlu0 %2086
    %2088 = vrot.lane.b32.xlu0 %v1974, 96
    %v2089 = vpop.permute.xlu0 %2088
    %2090 = vrot.lane.b32.xlu0 %v1976, 96
    %v2091 = vpop.permute.xlu0 %2090
    %2092 = vrot.lane.b32.xlu0 %v1978, 96
    %v2093 = vpop.permute.xlu0 %2092
    %2094 = vrot.lane.b32.xlu0 %v1980, 96
    %v2095 = vpop.permute.xlu0 %2094
    %2096 = vrot.lane.b32.xlu0 %v1982, 96
    %v2097 = vpop.permute.xlu0 %2096
    %2098 = vrot.lane.b32.xlu0 %v1984, 96
    %v2099 = vpop.permute.xlu0 %2098
    %2100 = vrot.lane.b32.xlu0 %v1986, 96
    %v2101 = vpop.permute.xlu0 %2100
    %2102 = vrot.lane.b32.xlu0 %v1988, 96
    %v2103 = vpop.permute.xlu0 %2102
    %vm2115 = vcmask 1048321
    %2116 = vst.msk [vmem:[#allocation2 + $0x30] sm:$0xfe] %vm2115, %v2083
    %vm2117 = vcmask 1048320
    %2118 = vst.msk [vmem:[#allocation2 + $0x48] sm:$0xff] %vm2117, %v2085
    %2119 = vst.msk [vmem:[#allocation2 + $0x60] sm:$0xff] %vm2117, %v2087
    %2120 = vst.msk [vmem:[#allocation2 + $0x78] sm:$0xff] %vm2117, %v2089
    %2121 = vst.msk [vmem:[#allocation2 + $0x90] sm:$0xff] %vm2117, %v2091
    %2122 = vst.msk [vmem:[#allocation2 + $0xa8] sm:$0xff] %vm2117, %v2093
    %2123 = vst.msk [vmem:[#allocation2 + $0xc0] sm:$0xff] %vm2117, %v2095
    %2124 = vst.msk [vmem:[#allocation2 + $0xd8] sm:$0xff] %vm2117, %v2097
    %2125 = vst.msk [vmem:[#allocation2 + $0xf0] sm:$0xff] %vm2117, %v2099
    %2126 = vst.msk [vmem:[#allocation2 + $0x108] sm:$0xff] %vm2117, %v2101
    %vm2127 = vcmask 1042176
    %2128 = vst.msk [vmem:[#allocation2 + $0x120] sm:$0x3] %vm2127, %v2103
    %2129 = vst.msk [vmem:[#allocation2 + $0x38] sm:$0xff] %vm51, %v1900
    %2130 = vst.msk [vmem:[#allocation2 + $0x50] sm:$0xff] %vm51, %v1901
    %2131 = vst.msk [vmem:[#allocation2 + $0x68] sm:$0xff] %vm51, %v1902
    %2132 = vst.msk [vmem:[#allocation2 + $0x80] sm:$0xff] %vm51, %v1903
    %2133 = vst.msk [vmem:[#allocation2 + $0x98] sm:$0xff] %vm51, %v1904
    %2134 = vst.msk [vmem:[#allocation2 + $0xb0] sm:$0xff] %vm51, %v1905
    %2135 = vst.msk [vmem:[#allocation2 + $0xc8] sm:$0xff] %vm51, %v1906
    %2136 = vst.msk [vmem:[#allocation2 + $0xe0] sm:$0xff] %vm51, %v1907
    %2137 = vst.msk [vmem:[#allocation2 + $0xf8] sm:$0xff] %vm51, %v1908
    %2138 = vst.msk [vmem:[#allocation2 + $0x110] sm:$0xff] %vm51, %v1909
    %2139 = vst.msk [vmem:[#allocation2 + $0x128] sm:$0x1] %vm1651, %v1910
    %vm2140 = vcmask 1046528
    %v2141 = vrot.slane %v1900, 1
    %v2142 = vrot.slane %v1901, 1
    %v2143 = vsel %vm2140, %v2141, %v2142
    %v2144 = vrot.slane %v1902, 1
    %v2145 = vsel %vm2140, %v2142, %v2144
    %v2146 = vrot.slane %v1903, 1
    %v2147 = vsel %vm2140, %v2144, %v2146
    %v2148 = vrot.slane %v1904, 1
    %v2149 = vsel %vm2140, %v2146, %v2148
    %v2150 = vrot.slane %v1905, 1
    %v2151 = vsel %vm2140, %v2148, %v2150
    %v2152 = vrot.slane %v1906, 1
    %v2153 = vsel %vm2140, %v2150, %v2152
    %v2154 = vrot.slane %v1907, 1
    %v2155 = vsel %vm2140, %v2152, %v2154
    %v2156 = vrot.slane %v1908, 1
    %v2157 = vsel %vm2140, %v2154, %v2156
    %v2158 = vrot.slane %v1909, 1
    %v2159 = vsel %vm2140, %v2156, %v2158
    %v2160 = vrot.slane %v1910, 1
    %v2161 = vsel %vm2140, %v2158, %v2160
    %2162 = vrot.lane.b32.xlu0 %v2141, 32
    %v2163 = vpop.permute.xlu0 %2162
    %2164 = vrot.lane.b32.xlu0 %v2143, 32
    %v2165 = vpop.permute.xlu0 %2164
    %2166 = vrot.lane.b32.xlu0 %v2145, 32
    %v2167 = vpop.permute.xlu0 %2166
    %2168 = vrot.lane.b32.xlu0 %v2147, 32
    %v2169 = vpop.permute.xlu0 %2168
    %2170 = vrot.lane.b32.xlu0 %v2149, 32
    %v2171 = vpop.permute.xlu0 %2170
    %2172 = vrot.lane.b32.xlu0 %v2151, 32
    %v2173 = vpop.permute.xlu0 %2172
    %2174 = vrot.lane.b32.xlu0 %v2153, 32
    %v2175 = vpop.permute.xlu0 %2174
    %2176 = vrot.lane.b32.xlu0 %v2155, 32
    %v2177 = vpop.permute.xlu0 %2176
    %2178 = vrot.lane.b32.xlu0 %v2157, 32
    %v2179 = vpop.permute.xlu0 %2178
    %2180 = vrot.lane.b32.xlu0 %v2159, 32
    %v2181 = vpop.permute.xlu0 %2180
    %2182 = vrot.lane.b32.xlu0 %v2161, 32
    %v2183 = vpop.permute.xlu0 %2182
    %vm2195 = vcmask 523527
    %2196 = vst.msk [vmem:[#allocation2 + $0x20] sm:$0x80] %vm2195, %v2163
    %2197 = vst.msk [vmem:[#allocation2 + $0x38] sm:$0xff] %vm2024, %v2165
    %2198 = vst.msk [vmem:[#allocation2 + $0x50] sm:$0xff] %vm2024, %v2167
    %2199 = vst.msk [vmem:[#allocation2 + $0x68] sm:$0xff] %vm2024, %v2169
    %2200 = vst.msk [vmem:[#allocation2 + $0x80] sm:$0xff] %vm2024, %v2171
    %2201 = vst.msk [vmem:[#allocation2 + $0x98] sm:$0xff] %vm2024, %v2173
    %2202 = vst.msk [vmem:[#allocation2 + $0xb0] sm:$0xff] %vm2024, %v2175
    %2203 = vst.msk [vmem:[#allocation2 + $0xc8] sm:$0xff] %vm2024, %v2177
    %2204 = vst.msk [vmem:[#allocation2 + $0xe0] sm:$0xff] %vm2024, %v2179
    %2205 = vst.msk [vmem:[#allocation2 + $0xf8] sm:$0xff] %vm2024, %v2181
    %2206 = vst.msk [vmem:[#allocation2 + $0x110] sm:$0xff] %vm2024, %v2183
    %2207 = vst.msk [vmem:[#allocation2 + $0x20] sm:$0xff] %vm2069, %v2037
    %2208 = vst.msk [vmem:[#allocation2 + $0x38] sm:$0xff] %vm2069, %v2039
    %2209 = vst.msk [vmem:[#allocation2 + $0x50] sm:$0xff] %vm2069, %v2041
    %2210 = vst.msk [vmem:[#allocation2 + $0x68] sm:$0xff] %vm2069, %v2043
    %2211 = vst.msk [vmem:[#allocation2 + $0x80] sm:$0xff] %vm2069, %v2045
    %2212 = vst.msk [vmem:[#allocation2 + $0x98] sm:$0xff] %vm2069, %v2047
    %2213 = vst.msk [vmem:[#allocation2 + $0xb0] sm:$0xff] %vm2069, %v2049
    %2214 = vst.msk [vmem:[#allocation2 + $0xc8] sm:$0xff] %vm2069, %v2051
    %2215 = vst.msk [vmem:[#allocation2 + $0xe0] sm:$0xff] %vm2069, %v2053
    %2216 = vst.msk [vmem:[#allocation2 + $0xf8] sm:$0xff] %vm2069, %v2055
    %2217 = vst.msk [vmem:[#allocation2 + $0x110] sm:$0x1] %vm2080, %v2057
    %2218 = vrot.lane.b32.xlu0 %v2141, 96
    %v2219 = vpop.permute.xlu0 %2218
    %2220 = vrot.lane.b32.xlu0 %v2143, 96
    %v2221 = vpop.permute.xlu0 %2220
    %2222 = vrot.lane.b32.xlu0 %v2145, 96
    %v2223 = vpop.permute.xlu0 %2222
    %2224 = vrot.lane.b32.xlu0 %v2147, 96
    %v2225 = vpop.permute.xlu0 %2224
    %2226 = vrot.lane.b32.xlu0 %v2149, 96
    %v2227 = vpop.permute.xlu0 %2226
    %2228 = vrot.lane.b32.xlu0 %v2151, 96
    %v2229 = vpop.permute.xlu0 %2228
    %2230 = vrot.lane.b32.xlu0 %v2153, 96
    %v2231 = vpop.permute.xlu0 %2230
    %2232 = vrot.lane.b32.xlu0 %v2155, 96
    %v2233 = vpop.permute.xlu0 %2232
    %2234 = vrot.lane.b32.xlu0 %v2157, 96
    %v2235 = vpop.permute.xlu0 %2234
    %2236 = vrot.lane.b32.xlu0 %v2159, 96
    %v2237 = vpop.permute.xlu0 %2236
    %2238 = vrot.lane.b32.xlu0 %v2161, 96
    %v2239 = vpop.permute.xlu0 %2238
    %vm2251 = vcmask 1048327
    %2252 = vst.msk [vmem:[#allocation2 + $0x8] sm:$0x80] %vm2251, %v2219
    %2253 = vst.msk [vmem:[#allocation2 + $0x20] sm:$0xff] %vm2117, %v2221
    %2254 = vst.msk [vmem:[#allocation2 + $0x38] sm:$0xff] %vm2117, %v2223
    %2255 = vst.msk [vmem:[#allocation2 + $0x50] sm:$0xff] %vm2117, %v2225
    %2256 = vst.msk [vmem:[#allocation2 + $0x68] sm:$0xff] %vm2117, %v2227
    %2257 = vst.msk [vmem:[#allocation2 + $0x80] sm:$0xff] %vm2117, %v2229
    %2258 = vst.msk [vmem:[#allocation2 + $0x98] sm:$0xff] %vm2117, %v2231
    %2259 = vst.msk [vmem:[#allocation2 + $0xb0] sm:$0xff] %vm2117, %v2233
    %2260 = vst.msk [vmem:[#allocation2 + $0xc8] sm:$0xff] %vm2117, %v2235
    %2261 = vst.msk [vmem:[#allocation2 + $0xe0] sm:$0xff] %vm2117, %v2237
    %2262 = vst.msk [vmem:[#allocation2 + $0xf8] sm:$0xff] %vm2117, %v2239
    %vm2263 = vcmask 1045504
    %v2264 = vrot.slane %v1900, 2
    %v2265 = vrot.slane %v1901, 2
    %v2266 = vsel %vm2263, %v2264, %v2265
    %v2267 = vrot.slane %v1902, 2
    %v2268 = vsel %vm2263, %v2265, %v2267
    %v2269 = vrot.slane %v1903, 2
    %v2270 = vsel %vm2263, %v2267, %v2269
    %v2271 = vrot.slane %v1904, 2
    %v2272 = vsel %vm2263, %v2269, %v2271
    %v2273 = vrot.slane %v1905, 2
    %v2274 = vsel %vm2263, %v2271, %v2273
    %v2275 = vrot.slane %v1906, 2
    %v2276 = vsel %vm2263, %v2273, %v2275
    %v2277 = vrot.slane %v1907, 2
    %v2278 = vsel %vm2263, %v2275, %v2277
    %v2279 = vrot.slane %v1908, 2
    %v2280 = vsel %vm2263, %v2277, %v2279
    %v2281 = vrot.slane %v1909, 2
    %v2282 = vsel %vm2263, %v2279, %v2281
    %v2283 = vrot.slane %v1910, 2
    %v2284 = vsel %vm2263, %v2281, %v2283
    %vm2296 = vcmask 261126
    %2297 = vst.msk [vmem:[#allocation2 + $0x10] sm:$0xc0] %vm2296, %v2264
    %2298 = vst.msk [vmem:[#allocation2 + $0x28] sm:$0xff] %vm51, %v2266
    %2299 = vst.msk [vmem:[#allocation2 + $0x40] sm:$0xff] %vm51, %v2268
    %2300 = vst.msk [vmem:[#allocation2 + $0x58] sm:$0xff] %vm51, %v2270
    %2301 = vst.msk [vmem:[#allocation2 + $0x70] sm:$0xff] %vm51, %v2272
    %2302 = vst.msk [vmem:[#allocation2 + $0x88] sm:$0xff] %vm51, %v2274
    %2303 = vst.msk [vmem:[#allocation2 + $0xa0] sm:$0xff] %vm51, %v2276
    %2304 = vst.msk [vmem:[#allocation2 + $0xb8] sm:$0xff] %vm51, %v2278
    %2305 = vst.msk [vmem:[#allocation2 + $0xd0] sm:$0xff] %vm51, %v2280
    %2306 = vst.msk [vmem:[#allocation2 + $0xe8] sm:$0xff] %vm51, %v2282
    %vm2307 = vcmask 260096
    %2308 = vst.msk [vmem:[#allocation2 + $0x100] sm:$0x7f] %vm2307, %v2284
    %v2309 = vmul.f32 %v1621, %v1807
    %v2310 = vmul.f32 %v1622, %v1807
    %v2311 = vmul.f32 %v1623, %v1807
    %v2312 = vmul.f32 %v1624, %v1807
    %v2313 = vmul.f32 %v1625, %v1807
    %v2314 = vmul.f32 %v1626, %v1807
    %v2315 = vmul.f32 %v1627, %v1807
    %v2316 = vmul.f32 %v1628, %v1807
    %v2317 = vmul.f32 %v1629, %v1807
    %v2318 = vmul.f32 %v1630, %v1807
    %v2319 = vmul.f32 %v1631, %v1807
    %v2320 = vadd.f32 %v2309, %v1821
    %v2321 = vadd.f32 %v2310, %v1821
    %v2322 = vadd.f32 %v2311, %v1821
    %v2323 = vadd.f32 %v2312, %v1821
    %v2324 = vadd.f32 %v2313, %v1821
    %v2325 = vadd.f32 %v2314, %v1821
    %v2326 = vadd.f32 %v2315, %v1821
    %v2327 = vadd.f32 %v2316, %v1821
    %v2328 = vadd.f32 %v2317, %v1821
    %v2329 = vadd.f32 %v2318, %v1821
    %v2330 = vadd.f32 %v2319, %v1821
    %v2331 = vmax.f32 %v2320, 0.0
    %v2332 = vmax.f32 %v2321, 0.0
    %v2333 = vmax.f32 %v2322, 0.0
    %v2334 = vmax.f32 %v2323, 0.0
    %v2335 = vmax.f32 %v2324, 0.0
    %v2336 = vmax.f32 %v2325, 0.0
    %v2337 = vmax.f32 %v2326, 0.0
    %v2338 = vmax.f32 %v2327, 0.0
    %v2339 = vmax.f32 %v2328, 0.0
    %v2340 = vmax.f32 %v2329, 0.0
    %v2341 = vmax.f32 %v2330, 0.0
    %v2342 = vmul.f32 %v2331, %v1848
    %v2343 = vmul.f32 %v2332, %v1853
    %v2344 = vmul.f32 %v2333, %v1858
    %v2345 = vmul.f32 %v2334, %v1863
    %v2346 = vmul.f32 %v2335, %v1868
    %v2347 = vmul.f32 %v2336, %v1873
    %v2348 = vmul.f32 %v2337, %v1878
    %v2349 = vmul.f32 %v2338, %v1883
    %v2350 = vmul.f32 %v2339, %v1888
    %v2351 = vmul.f32 %v2340, %v1893
    %v2352 = vmul.f32 %v2341, %v1898
    %vm2364 = vcmask 1042432
    %v2365 = vrot.slane %v2342, 5
    %v2366 = vrot.slane %v2343, 5
    %v2367 = vsel %vm2364, %v2365, %v2366
    %v2368 = vrot.slane %v2344, 5
    %v2369 = vsel %vm2364, %v2366, %v2368
    %v2370 = vrot.slane %v2345, 5
    %v2371 = vsel %vm2364, %v2368, %v2370
    %v2372 = vrot.slane %v2346, 5
    %v2373 = vsel %vm2364, %v2370, %v2372
    %v2374 = vrot.slane %v2347, 5
    %v2375 = vsel %vm2364, %v2372, %v2374
    %v2376 = vrot.slane %v2348, 5
    %v2377 = vsel %vm2364, %v2374, %v2376
    %v2378 = vrot.slane %v2349, 5
    %v2379 = vsel %vm2364, %v2376, %v2378
    %v2380 = vrot.slane %v2350, 5
    %v2381 = vsel %vm2364, %v2378, %v2380
    %v2382 = vrot.slane %v2351, 5
    %v2383 = vsel %vm2364, %v2380, %v2382
    %v2384 = vrot.slane %v2352, 5
    %v2385 = vsel %vm2364, %v2382, %v2384
    %vm2397 = vcmask 261123
    %2398 = vst.msk [vmem:[#allocation2 + $0x138] sm:$0xf8] %vm2397, %v2365
    %2399 = vst.msk [vmem:[#allocation2 + $0x150] sm:$0xff] %vm51, %v2367
    %2400 = vst.msk [vmem:[#allocation2 + $0x168] sm:$0xff] %vm51, %v2369
    %2401 = vst.msk [vmem:[#allocation2 + $0x180] sm:$0xff] %vm51, %v2371
    %2402 = vst.msk [vmem:[#allocation2 + $0x198] sm:$0xff] %vm51, %v2373
    %2403 = vst.msk [vmem:[#allocation2 + $0x1b0] sm:$0xff] %vm51, %v2375
    %2404 = vst.msk [vmem:[#allocation2 + $0x1c8] sm:$0xff] %vm51, %v2377
    %2405 = vst.msk [vmem:[#allocation2 + $0x1e0] sm:$0xff] %vm51, %v2379
    %2406 = vst.msk [vmem:[#allocation2 + $0x1f8] sm:$0xff] %vm51, %v2381
    %2407 = vst.msk [vmem:[#allocation2 + $0x210] sm:$0xff] %vm51, %v2383
    %vm2408 = vcmask 257024
    %2409 = vst.msk [vmem:[#allocation2 + $0x228] sm:$0xf] %vm2408, %v2385
    %v2410 = vrot.slane %v2342, 6
    %v2411 = vrot.slane %v2343, 6
    %v2412 = vsel %vm1922, %v2410, %v2411
    %v2413 = vrot.slane %v2344, 6
    %v2414 = vsel %vm1922, %v2411, %v2413
    %v2415 = vrot.slane %v2345, 6
    %v2416 = vsel %vm1922, %v2413, %v2415
    %v2417 = vrot.slane %v2346, 6
    %v2418 = vsel %vm1922, %v2415, %v2417
    %v2419 = vrot.slane %v2347, 6
    %v2420 = vsel %vm1922, %v2417, %v2419
    %v2421 = vrot.slane %v2348, 6
    %v2422 = vsel %vm1922, %v2419, %v2421
    %v2423 = vrot.slane %v2349, 6
    %v2424 = vsel %vm1922, %v2421, %v2423
    %v2425 = vrot.slane %v2350, 6
    %v2426 = vsel %vm1922, %v2423, %v2425
    %v2427 = vrot.slane %v2351, 6
    %v2428 = vsel %vm1922, %v2425, %v2427
    %v2429 = vrot.slane %v2352, 6
    %v2430 = vsel %vm1922, %v2427, %v2429
    %2431 = vrot.lane.b32.xlu0 %v2410, 32
    %v2432 = vpop.permute.xlu0 %2431
    %2433 = vrot.lane.b32.xlu0 %v2412, 32
    %v2434 = vpop.permute.xlu0 %2433
    %2435 = vrot.lane.b32.xlu0 %v2414, 32
    %v2436 = vpop.permute.xlu0 %2435
    %2437 = vrot.lane.b32.xlu0 %v2416, 32
    %v2438 = vpop.permute.xlu0 %2437
    %2439 = vrot.lane.b32.xlu0 %v2418, 32
    %v2440 = vpop.permute.xlu0 %2439
    %2441 = vrot.lane.b32.xlu0 %v2420, 32
    %v2442 = vpop.permute.xlu0 %2441
    %2443 = vrot.lane.b32.xlu0 %v2422, 32
    %v2444 = vpop.permute.xlu0 %2443
    %2445 = vrot.lane.b32.xlu0 %v2424, 32
    %v2446 = vpop.permute.xlu0 %2445
    %2447 = vrot.lane.b32.xlu0 %v2426, 32
    %v2448 = vpop.permute.xlu0 %2447
    %2449 = vrot.lane.b32.xlu0 %v2428, 32
    %v2450 = vpop.permute.xlu0 %2449
    %2451 = vrot.lane.b32.xlu0 %v2430, 32
    %v2452 = vpop.permute.xlu0 %2451
    %vm2464 = vcmask 523522
    %2465 = vst.msk [vmem:[#allocation2 + $0x138] sm:$0xfc] %vm2464, %v2432
    %2466 = vst.msk [vmem:[#allocation2 + $0x150] sm:$0xff] %vm2024, %v2434
    %2467 = vst.msk [vmem:[#allocation2 + $0x168] sm:$0xff] %vm2024, %v2436
    %2468 = vst.msk [vmem:[#allocation2 + $0x180] sm:$0xff] %vm2024, %v2438
    %2469 = vst.msk [vmem:[#allocation2 + $0x198] sm:$0xff] %vm2024, %v2440
    %2470 = vst.msk [vmem:[#allocation2 + $0x1b0] sm:$0xff] %vm2024, %v2442
    %2471 = vst.msk [vmem:[#allocation2 + $0x1c8] sm:$0xff] %vm2024, %v2444
    %2472 = vst.msk [vmem:[#allocation2 + $0x1e0] sm:$0xff] %vm2024, %v2446
    %2473 = vst.msk [vmem:[#allocation2 + $0x1f8] sm:$0xff] %vm2024, %v2448
    %2474 = vst.msk [vmem:[#allocation2 + $0x210] sm:$0xff] %vm2024, %v2450
    %vm2475 = vcmask 518400
    %2476 = vst.msk [vmem:[#allocation2 + $0x228] sm:$0x7] %vm2475, %v2452
    %v2477 = vrot.slane %v2342, 7
    %v2478 = vrot.slane %v2343, 7
    %v2479 = vsel %vm1967, %v2477, %v2478
    %v2480 = vrot.slane %v2344, 7
    %v2481 = vsel %vm1967, %v2478, %v2480
    %v2482 = vrot.slane %v2345, 7
    %v2483 = vsel %vm1967, %v2480, %v2482
    %v2484 = vrot.slane %v2346, 7
    %v2485 = vsel %vm1967, %v2482, %v2484
    %v2486 = vrot.slane %v2347, 7
    %v2487 = vsel %vm1967, %v2484, %v2486
    %v2488 = vrot.slane %v2348, 7
    %v2489 = vsel %vm1967, %v2486, %v2488
    %v2490 = vrot.slane %v2349, 7
    %v2491 = vsel %vm1967, %v2488, %v2490
    %v2492 = vrot.slane %v2350, 7
    %v2493 = vsel %vm1967, %v2490, %v2492
    %v2494 = vrot.slane %v2351, 7
    %v2495 = vsel %vm1967, %v2492, %v2494
    %v2496 = vrot.slane %v2352, 7
    %v2497 = vsel %vm1967, %v2494, %v2496
    %2498 = vrot.lane.b32.xlu0 %v2477, 64
    %v2499 = vpop.permute.xlu0 %2498
    %2500 = vrot.lane.b32.xlu0 %v2479, 64
    %v2501 = vpop.permute.xlu0 %2500
    %2502 = vrot.lane.b32.xlu0 %v2481, 64
    %v2503 = vpop.permute.xlu0 %2502
    %2504 = vrot.lane.b32.xlu0 %v2483, 64
    %v2505 = vpop.permute.xlu0 %2504
    %2506 = vrot.lane.b32.xlu0 %v2485, 64
    %v2507 = vpop.permute.xlu0 %2506
    %2508 = vrot.lane.b32.xlu0 %v2487, 64
    %v2509 = vpop.permute.xlu0 %2508
    %2510 = vrot.lane.b32.xlu0 %v2489, 64
    %v2511 = vpop.permute.xlu0 %2510
    %2512 = vrot.lane.b32.xlu0 %v2491, 64
    %v2513 = vpop.permute.xlu0 %2512
    %2514 = vrot.lane.b32.xlu0 %v2493, 64
    %v2515 = vpop.permute.xlu0 %2514
    %2516 = vrot.lane.b32.xlu0 %v2495, 64
    %v2517 = vpop.permute.xlu0 %2516
    %2518 = vrot.lane.b32.xlu0 %v2497, 64
    %v2519 = vpop.permute.xlu0 %2518
    %vm2531 = vcmask 785921
    %2532 = vst.msk [vmem:[#allocation2 + $0x138] sm:$0xfe] %vm2531, %v2499
    %2533 = vst.msk [vmem:[#allocation2 + $0x150] sm:$0xff] %vm2069, %v2501
    %2534 = vst.msk [vmem:[#allocation2 + $0x168] sm:$0xff] %vm2069, %v2503
    %2535 = vst.msk [vmem:[#allocation2 + $0x180] sm:$0xff] %vm2069, %v2505
    %2536 = vst.msk [vmem:[#allocation2 + $0x198] sm:$0xff] %vm2069, %v2507
    %2537 = vst.msk [vmem:[#allocation2 + $0x1b0] sm:$0xff] %vm2069, %v2509
    %2538 = vst.msk [vmem:[#allocation2 + $0x1c8] sm:$0xff] %vm2069, %v2511
    %2539 = vst.msk [vmem:[#allocation2 + $0x1e0] sm:$0xff] %vm2069, %v2513
    %2540 = vst.msk [vmem:[#allocation2 + $0x1f8] sm:$0xff] %vm2069, %v2515
    %2541 = vst.msk [vmem:[#allocation2 + $0x210] sm:$0xff] %vm2069, %v2517
    %vm2542 = vcmask 779776
    %2543 = vst.msk [vmem:[#allocation2 + $0x228] sm:$0x3] %vm2542, %v2519
    %2544 = vrot.lane.b32.xlu0 %v2410, 96
    %v2545 = vpop.permute.xlu0 %2544
    %2546 = vrot.lane.b32.xlu0 %v2412, 96
    %v2547 = vpop.permute.xlu0 %2546
    %2548 = vrot.lane.b32.xlu0 %v2414, 96
    %v2549 = vpop.permute.xlu0 %2548
    %2550 = vrot.lane.b32.xlu0 %v2416, 96
    %v2551 = vpop.permute.xlu0 %2550
    %2552 = vrot.lane.b32.xlu0 %v2418, 96
    %v2553 = vpop.permute.xlu0 %2552
    %2554 = vrot.lane.b32.xlu0 %v2420, 96
    %v2555 = vpop.permute.xlu0 %2554
    %2556 = vrot.lane.b32.xlu0 %v2422, 96
    %v2557 = vpop.permute.xlu0 %2556
    %2558 = vrot.lane.b32.xlu0 %v2424, 96
    %v2559 = vpop.permute.xlu0 %2558
    %2560 = vrot.lane.b32.xlu0 %v2426, 96
    %v2561 = vpop.permute.xlu0 %2560
    %2562 = vrot.lane.b32.xlu0 %v2428, 96
    %v2563 = vpop.permute.xlu0 %2562
    %2564 = vrot.lane.b32.xlu0 %v2430, 96
    %v2565 = vpop.permute.xlu0 %2564
    %vm2577 = vcmask 1048322
    %2578 = vst.msk [vmem:[#allocation2 + $0x120] sm:$0xfc] %vm2577, %v2545
    %2579 = vst.msk [vmem:[#allocation2 + $0x138] sm:$0xff] %vm2117, %v2547
    %2580 = vst.msk [vmem:[#allocation2 + $0x150] sm:$0xff] %vm2117, %v2549
    %2581 = vst.msk [vmem:[#allocation2 + $0x168] sm:$0xff] %vm2117, %v2551
    %2582 = vst.msk [vmem:[#allocation2 + $0x180] sm:$0xff] %vm2117, %v2553
    %2583 = vst.msk [vmem:[#allocation2 + $0x198] sm:$0xff] %vm2117, %v2555
    %2584 = vst.msk [vmem:[#allocation2 + $0x1b0] sm:$0xff] %vm2117, %v2557
    %2585 = vst.msk [vmem:[#allocation2 + $0x1c8] sm:$0xff] %vm2117, %v2559
    %2586 = vst.msk [vmem:[#allocation2 + $0x1e0] sm:$0xff] %vm2117, %v2561
    %2587 = vst.msk [vmem:[#allocation2 + $0x1f8] sm:$0xff] %vm2117, %v2563
    %vm2588 = vcmask 1043200
    %2589 = vst.msk [vmem:[#allocation2 + $0x210] sm:$0x7] %vm2588, %v2565
    %vm2601 = vcmask 261121
    %2602 = vst.msk [vmem:[#allocation2 + $0x128] sm:$0xfe] %vm2601, %v2477
    %2603 = vst.msk [vmem:[#allocation2 + $0x140] sm:$0xff] %vm51, %v2479
    %2604 = vst.msk [vmem:[#allocation2 + $0x158] sm:$0xff] %vm51, %v2481
    %2605 = vst.msk [vmem:[#allocation2 + $0x170] sm:$0xff] %vm51, %v2483
    %2606 = vst.msk [vmem:[#allocation2 + $0x188] sm:$0xff] %vm51, %v2485
    %2607 = vst.msk [vmem:[#allocation2 + $0x1a0] sm:$0xff] %vm51, %v2487
    %2608 = vst.msk [vmem:[#allocation2 + $0x1b8] sm:$0xff] %vm51, %v2489
    %2609 = vst.msk [vmem:[#allocation2 + $0x1d0] sm:$0xff] %vm51, %v2491
    %2610 = vst.msk [vmem:[#allocation2 + $0x1e8] sm:$0xff] %vm51, %v2493
    %2611 = vst.msk [vmem:[#allocation2 + $0x200] sm:$0xff] %vm51, %v2495
    %2612 = vst.msk [vmem:[#allocation2 + $0x218] sm:$0x3] %vm65, %v2497
    %2613 = vrot.lane.b32.xlu0 %v2342, 32
    %v2614 = vpop.permute.xlu0 %2613
    %2615 = vrot.lane.b32.xlu0 %v2343, 32
    %v2616 = vpop.permute.xlu0 %2615
    %2617 = vrot.lane.b32.xlu0 %v2344, 32
    %v2618 = vpop.permute.xlu0 %2617
    %2619 = vrot.lane.b32.xlu0 %v2345, 32
    %v2620 = vpop.permute.xlu0 %2619
    %2621 = vrot.lane.b32.xlu0 %v2346, 32
    %v2622 = vpop.permute.xlu0 %2621
    %2623 = vrot.lane.b32.xlu0 %v2347, 32
    %v2624 = vpop.permute.xlu0 %2623
    %2625 = vrot.lane.b32.xlu0 %v2348, 32
    %v2626 = vpop.permute.xlu0 %2625
    %2627 = vrot.lane.b32.xlu0 %v2349, 32
    %v2628 = vpop.permute.xlu0 %2627
    %2629 = vrot.lane.b32.xlu0 %v2350, 32
    %v2630 = vpop.permute.xlu0 %2629
    %2631 = vrot.lane.b32.xlu0 %v2351, 32
    %v2632 = vpop.permute.xlu0 %2631
    %2633 = vrot.lane.b32.xlu0 %v2352, 32
    %v2634 = vpop.permute.xlu0 %2633
    %2646 = vst.msk [vmem:[#allocation2 + $0x128] sm:$0xff] %vm2024, %v2614
    %2647 = vst.msk [vmem:[#allocation2 + $0x140] sm:$0xff] %vm2024, %v2616
    %2648 = vst.msk [vmem:[#allocation2 + $0x158] sm:$0xff] %vm2024, %v2618
    %2649 = vst.msk [vmem:[#allocation2 + $0x170] sm:$0xff] %vm2024, %v2620
    %2650 = vst.msk [vmem:[#allocation2 + $0x188] sm:$0xff] %vm2024, %v2622
    %2651 = vst.msk [vmem:[#allocation2 + $0x1a0] sm:$0xff] %vm2024, %v2624
    %2652 = vst.msk [vmem:[#allocation2 + $0x1b8] sm:$0xff] %vm2024, %v2626
    %2653 = vst.msk [vmem:[#allocation2 + $0x1d0] sm:$0xff] %vm2024, %v2628
    %2654 = vst.msk [vmem:[#allocation2 + $0x1e8] sm:$0xff] %vm2024, %v2630
    %2655 = vst.msk [vmem:[#allocation2 + $0x200] sm:$0xff] %vm2024, %v2632
    %vm2656 = vcmask 516352
    %2657 = vst.msk [vmem:[#allocation2 + $0x218] sm:$0x1] %vm2656, %v2634
    %2658 = vst.msk [vmem:[#allocation2 + $0x110] sm:$0xfe] %vm2531, %v2499
    %2659 = vst.msk [vmem:[#allocation2 + $0x128] sm:$0xff] %vm2069, %v2501
    %2660 = vst.msk [vmem:[#allocation2 + $0x140] sm:$0xff] %vm2069, %v2503
    %2661 = vst.msk [vmem:[#allocation2 + $0x158] sm:$0xff] %vm2069, %v2505
    %2662 = vst.msk [vmem:[#allocation2 + $0x170] sm:$0xff] %vm2069, %v2507
    %2663 = vst.msk [vmem:[#allocation2 + $0x188] sm:$0xff] %vm2069, %v2509
    %2664 = vst.msk [vmem:[#allocation2 + $0x1a0] sm:$0xff] %vm2069, %v2511
    %2665 = vst.msk [vmem:[#allocation2 + $0x1b8] sm:$0xff] %vm2069, %v2513
    %2666 = vst.msk [vmem:[#allocation2 + $0x1d0] sm:$0xff] %vm2069, %v2515
    %2667 = vst.msk [vmem:[#allocation2 + $0x1e8] sm:$0xff] %vm2069, %v2517
    %2668 = vst.msk [vmem:[#allocation2 + $0x200] sm:$0x3] %vm2542, %v2519
    %2669 = vrot.lane.b32.xlu0 %v2342, 96
    %v2670 = vpop.permute.xlu0 %2669
    %2671 = vrot.lane.b32.xlu0 %v2343, 96
    %v2672 = vpop.permute.xlu0 %2671
    %2673 = vrot.lane.b32.xlu0 %v2344, 96
    %v2674 = vpop.permute.xlu0 %2673
    %2675 = vrot.lane.b32.xlu0 %v2345, 96
    %v2676 = vpop.permute.xlu0 %2675
    %2677 = vrot.lane.b32.xlu0 %v2346, 96
    %v2678 = vpop.permute.xlu0 %2677
    %2679 = vrot.lane.b32.xlu0 %v2347, 96
    %v2680 = vpop.permute.xlu0 %2679
    %2681 = vrot.lane.b32.xlu0 %v2348, 96
    %v2682 = vpop.permute.xlu0 %2681
    %2683 = vrot.lane.b32.xlu0 %v2349, 96
    %v2684 = vpop.permute.xlu0 %2683
    %2685 = vrot.lane.b32.xlu0 %v2350, 96
    %v2686 = vpop.permute.xlu0 %2685
    %2687 = vrot.lane.b32.xlu0 %v2351, 96
    %v2688 = vpop.permute.xlu0 %2687
    %2689 = vrot.lane.b32.xlu0 %v2352, 96
    %v2690 = vpop.permute.xlu0 %2689
    %2702 = vst.msk [vmem:[#allocation2 + $0x110] sm:$0xff] %vm2117, %v2670
    %2703 = vst.msk [vmem:[#allocation2 + $0x128] sm:$0xff] %vm2117, %v2672
    %2704 = vst.msk [vmem:[#allocation2 + $0x140] sm:$0xff] %vm2117, %v2674
    %2705 = vst.msk [vmem:[#allocation2 + $0x158] sm:$0xff] %vm2117, %v2676
    %2706 = vst.msk [vmem:[#allocation2 + $0x170] sm:$0xff] %vm2117, %v2678
    %2707 = vst.msk [vmem:[#allocation2 + $0x188] sm:$0xff] %vm2117, %v2680
    %2708 = vst.msk [vmem:[#allocation2 + $0x1a0] sm:$0xff] %vm2117, %v2682
    %2709 = vst.msk [vmem:[#allocation2 + $0x1b8] sm:$0xff] %vm2117, %v2684
    %2710 = vst.msk [vmem:[#allocation2 + $0x1d0] sm:$0xff] %vm2117, %v2686
    %2711 = vst.msk [vmem:[#allocation2 + $0x1e8] sm:$0xff] %vm2117, %v2688
    %vm2712 = vcmask 1041152
    %2713 = vst.msk [vmem:[#allocation2 + $0x200] sm:$0x1] %vm2712, %v2690
    %v2714 = vrot.slane %v2342, 1
    %v2715 = vrot.slane %v2343, 1
    %v2716 = vsel %vm2140, %v2714, %v2715
    %v2717 = vrot.slane %v2344, 1
    %v2718 = vsel %vm2140, %v2715, %v2717
    %v2719 = vrot.slane %v2345, 1
    %v2720 = vsel %vm2140, %v2717, %v2719
    %v2721 = vrot.slane %v2346, 1
    %v2722 = vsel %vm2140, %v2719, %v2721
    %v2723 = vrot.slane %v2347, 1
    %v2724 = vsel %vm2140, %v2721, %v2723
    %v2725 = vrot.slane %v2348, 1
    %v2726 = vsel %vm2140, %v2723, %v2725
    %v2727 = vrot.slane %v2349, 1
    %v2728 = vsel %vm2140, %v2725, %v2727
    %v2729 = vrot.slane %v2350, 1
    %v2730 = vsel %vm2140, %v2727, %v2729
    %v2731 = vrot.slane %v2351, 1
    %v2732 = vsel %vm2140, %v2729, %v2731
    %v2733 = vrot.slane %v2352, 1
    %v2734 = vsel %vm2140, %v2731, %v2733
    %vm2746 = vcmask 261127
    %2747 = vst.msk [vmem:[#allocation2 + $0x100] sm:$0x80] %vm2746, %v2714
    %2748 = vst.msk [vmem:[#allocation2 + $0x118] sm:$0xff] %vm51, %v2716
    %2749 = vst.msk [vmem:[#allocation2 + $0x130] sm:$0xff] %vm51, %v2718
    %2750 = vst.msk [vmem:[#allocation2 + $0x148] sm:$0xff] %vm51, %v2720
    %2751 = vst.msk [vmem:[#allocation2 + $0x160] sm:$0xff] %vm51, %v2722
    %2752 = vst.msk [vmem:[#allocation2 + $0x178] sm:$0xff] %vm51, %v2724
    %2753 = vst.msk [vmem:[#allocation2 + $0x190] sm:$0xff] %vm51, %v2726
    %2754 = vst.msk [vmem:[#allocation2 + $0x1a8] sm:$0xff] %vm51, %v2728
    %2755 = vst.msk [vmem:[#allocation2 + $0x1c0] sm:$0xff] %vm51, %v2730
    %2756 = vst.msk [vmem:[#allocation2 + $0x1d8] sm:$0xff] %vm51, %v2732
    %2757 = vst.msk [vmem:[#allocation2 + $0x1f0] sm:$0xff] %vm51, %v2734
    %v2758 = vld [vmem:[#allocation2 + $0x30] sm:$0xff]
    %v2759 = vld [vmem:[#allocation2 + $0x38] sm:$0xff]
    %v2760 = vld [vmem:[#allocation2 + $0x40] sm:$0xff]
    %v2761 = vld [vmem:[#allocation2 + $0x48] sm:$0xff]
    %v2762 = vld [vmem:[#allocation2 + $0x50] sm:$0xff]
    %v2763 = vld [vmem:[#allocation2 + $0x58] sm:$0xff]
    %v2764 = vld [vmem:[#allocation2 + $0x60] sm:$0xff]
    %v2765 = vld [vmem:[#allocation2 + $0x68] sm:$0xff]
    %v2766 = vld [vmem:[#allocation2 + $0x70] sm:$0xff]
    %v2767 = vld [vmem:[#allocation2 + $0x78] sm:$0xff]
    %v2768 = vld [vmem:[#allocation2 + $0x80] sm:$0xff]
    %v2769 = vld [vmem:[#allocation2 + $0x88] sm:$0xff]
    %v2770 = vld [vmem:[#allocation2 + $0x90] sm:$0xff]
    %v2771 = vld [vmem:[#allocation2 + $0x98] sm:$0xff]
    %v2772 = vld [vmem:[#allocation2 + $0xa0] sm:$0xff]
    %v2773 = vld [vmem:[#allocation2 + $0xa8] sm:$0xff]
    %v2774 = vld [vmem:[#allocation2 + $0xb0] sm:$0xff]
    %v2775 = vld [vmem:[#allocation2 + $0xb8] sm:$0xff]
    %v2776 = vld [vmem:[#allocation2 + $0xc0] sm:$0xff]
    %v2777 = vld [vmem:[#allocation2 + $0xc8] sm:$0xff]
    %v2778 = vld [vmem:[#allocation2 + $0xd0] sm:$0xff]
    %v2779 = vld [vmem:[#allocation2 + $0xd8] sm:$0xff]
    %v2780 = vld [vmem:[#allocation2 + $0xe0] sm:$0xff]
    %v2781 = vld [vmem:[#allocation2 + $0xe8] sm:$0xff]
    %v2782 = vld [vmem:[#allocation2 + $0xf0] sm:$0xff]
    %v2783 = vld [vmem:[#allocation2 + $0xf8] sm:$0xff]
    %v2784 = vld [vmem:[#allocation2 + $0x100] sm:$0xff]
    %v2785 = vld [vmem:[#allocation2 + $0x108] sm:$0xff]
    %v2786 = vld [vmem:[#allocation2 + $0x110] sm:$0xff]
    %v2787 = vld [vmem:[#allocation2 + $0x118] sm:$0xff]
    %v2788 = vld [vmem:[#allocation2 + $0x120] sm:$0xff]
    %v2789 = vld [vmem:[#allocation2 + $0x128] sm:$0xff]
    %v2790 = vld [vmem:[#allocation2 + $0x130] sm:$0xff]
    %v2791 = vld [vmem:[#allocation2 + $0x138] sm:$0xff]
    %v2792 = vld [vmem:[#allocation2 + $0x140] sm:$0xff]
    %v2793 = vld [vmem:[#allocation2 + $0x148] sm:$0xff]
    %v2794 = vld [vmem:[#allocation2 + $0x150] sm:$0xff]
    %v2795 = vld [vmem:[#allocation2 + $0x158] sm:$0xff]
    %v2796 = vld [vmem:[#allocation2 + $0x160] sm:$0xff]
    %v2797 = vld [vmem:[#allocation2 + $0x168] sm:$0xff]
    %v2798 = vld [vmem:[#allocation2 + $0x170] sm:$0xff]
    %v2799 = vld [vmem:[#allocation2 + $0x178] sm:$0xff]
    %v2800 = vld [vmem:[#allocation2 + $0x180] sm:$0xff]
    %v2801 = vld [vmem:[#allocation2 + $0x188] sm:$0xff]
    %v2802 = vld [vmem:[#allocation2 + $0x190] sm:$0xff]
    %v2803 = vld [vmem:[#allocation2 + $0x198] sm:$0xff]
    %v2804 = vld [vmem:[#allocation2 + $0x1a0] sm:$0xff]
    %v2805 = vld [vmem:[#allocation2 + $0x1a8] sm:$0xff]
    %v2806 = vld [vmem:[#allocation2 + $0x1b0] sm:$0xff]
    %v2807 = vld [vmem:[#allocation2 + $0x1b8] sm:$0xff]
    %v2808 = vld [vmem:[#allocation2 + $0x1c0] sm:$0xff]
    %v2809 = vld [vmem:[#allocation2 + $0x1c8] sm:$0xff]
    %v2810 = vld [vmem:[#allocation2 + $0x1d0] sm:$0xff]
    %v2811 = vld [vmem:[#allocation2 + $0x1d8] sm:$0xff]
    %v2812 = vld [vmem:[#allocation2 + $0x1e0] sm:$0xff]
    %v2813 = vld [vmem:[#allocation2 + $0x1e8] sm:$0xff]
    %v2814 = vld [vmem:[#allocation2 + $0x1f0] sm:$0xff]
    %v2815 = vld [vmem:[#allocation2 + $0x1f8] sm:$0xff]
    %v2816 = vld [vmem:[#allocation2 + $0x200] sm:$0xff]
    %v2817 = vld [vmem:[#allocation2 + $0x208] sm:$0xff]
    %v2818 = vld [vmem:[#allocation2 + $0x210] sm:$0x3]
    %v2819 = vld [vmem:[#allocation2 + $0x218] sm:$0x3]
    %v2820 = vld [vmem:[#allocation2 + $0x220] sm:$0x3]
    %v2821 = vpack.c.bf16 %v2761, %v2758
    %v2822 = vpack.c.bf16 %v2762, %v2759
    %v2823 = vpack.c.bf16 %v2763, %v2760
    %v2824 = vpack.c.bf16 %v2767, %v2764
    %v2825 = vpack.c.bf16 %v2768, %v2765
    %v2826 = vpack.c.bf16 %v2769, %v2766
    %v2827 = vpack.c.bf16 %v2773, %v2770
    %v2828 = vpack.c.bf16 %v2774, %v2771
    %v2829 = vpack.c.bf16 %v2775, %v2772
    %v2830 = vpack.c.bf16 %v2779, %v2776
    %v2831 = vpack.c.bf16 %v2780, %v2777
    %v2832 = vpack.c.bf16 %v2781, %v2778
    %v2833 = vpack.c.bf16 %v2785, %v2782
    %v2834 = vpack.c.bf16 %v2786, %v2783
    %v2835 = vpack.c.bf16 %v2787, %v2784
    %v2836 = vpack.c.bf16 %v2791, %v2788
    %v2837 = vpack.c.bf16 %v2792, %v2789
    %v2838 = vpack.c.bf16 %v2793, %v2790
    %v2839 = vpack.c.bf16 %v2797, %v2794
    %v2840 = vpack.c.bf16 %v2798, %v2795
    %v2841 = vpack.c.bf16 %v2799, %v2796
    %v2842 = vpack.c.bf16 %v2803, %v2800
    %v2843 = vpack.c.bf16 %v2804, %v2801
    %v2844 = vpack.c.bf16 %v2805, %v2802
    %v2845 = vpack.c.bf16 %v2809, %v2806
    %v2846 = vpack.c.bf16 %v2810, %v2807
    %v2847 = vpack.c.bf16 %v2811, %v2808
    %v2848 = vpack.c.bf16 %v2815, %v2812
    %v2849 = vpack.c.bf16 %v2816, %v2813
    %v2850 = vpack.c.bf16 %v2817, %v2814
    %v2851 = vpack.c.bf16 %v2818, %v2818
    %v2852 = vpack.c.bf16 %v2819, %v2819
    %v2853 = vpack.c.bf16 %v2820, %v2820
    %v2854 = vld [vmem:[%s4] sm:$0xf]
    %v2855 = vld [vmem:[%s4 + $0x4] sm:$0xf]
    %v2856 = vld [vmem:[%s4 + $0x8] sm:$0xf]
    %v2857 = vld [vmem:[%s4 + $0xc] sm:$0xf]
    %v2858 = vld [vmem:[%s4 + $0x10] sm:$0xf]
    %v2859 = vld [vmem:[%s4 + $0x14] sm:$0xf]
    %v2860 = vld [vmem:[%s4 + $0x18] sm:$0xf]
    %v2861 = vld [vmem:[%s4 + $0x1c] sm:$0xf]
    %v2862 = vld [vmem:[%s4 + $0x20] sm:$0xf]
    %v2863 = vld [vmem:[%s4 + $0x24] sm:$0xf]
    %v2864 = vld [vmem:[%s4 + $0x28] sm:$0xf]
    %v2865 = vld [vmem:[%s4 + $0x2c] sm:$0xf]
    %v2866 = vld [vmem:[%s4 + $0x30] sm:$0xf]
    %v2867 = vld [vmem:[%s4 + $0x34] sm:$0xf]
    %v2868 = vld [vmem:[%s4 + $0x38] sm:$0xf]
    %v2869 = vld [vmem:[%s4 + $0x3c] sm:$0xf]
    %v2870 = vld [vmem:[%s4 + $0x40] sm:$0xf]
    %v2871 = vld [vmem:[%s4 + $0x44] sm:$0xf]
    %v2872 = vld [vmem:[%s4 + $0x48] sm:$0xf]
    %v2873 = vld [vmem:[%s4 + $0x4c] sm:$0xf]
    %v2874 = vld [vmem:[%s4 + $0x50] sm:$0xf]
    %v2875 = vld [vmem:[%s4 + $0x54] sm:$0xf]
    %v2876 = vld [vmem:[%s4 + $0x58] sm:$0xf]
    %v2877 = vld [vmem:[%s4 + $0x5c] sm:$0xf]
    %v2878 = vld [vmem:[%s4 + $0x60] sm:$0xf]
    %v2879 = vld [vmem:[%s4 + $0x64] sm:$0xf]
    %v2880 = vld [vmem:[%s4 + $0x68] sm:$0xf]
    %v2881 = vld [vmem:[%s4 + $0x6c] sm:$0xf]
    %v2882 = vld [vmem:[%s4 + $0x70] sm:$0xf]
    %v2883 = vld [vmem:[%s4 + $0x74] sm:$0xf]
    %v2884 = vld [vmem:[%s4 + $0x78] sm:$0xf]
    %v2885 = vld [vmem:[%s4 + $0x7c] sm:$0xf]
    %v2886 = vld [vmem:[%s4 + $0x80] sm:$0xf]
    %v2887 = vld [vmem:[%s4 + $0x84] sm:$0xf]
    %v2888 = vld [vmem:[%s4 + $0x88] sm:$0xf]
    %v2889 = vld [vmem:[%s4 + $0x8c] sm:$0xf]
    %v2926 = vunpack.c.l.b16 %v2854
    %v2927 = vunpack.c.l.b16 %v2855
    %v2928 = vunpack.c.l.b16 %v2856
    %v2929 = vunpack.c.l.b16 %v2857
    %v2930 = vunpack.c.l.b16 %v2858
    %v2931 = vunpack.c.l.b16 %v2859
    %v2932 = vunpack.c.l.b16 %v2860
    %v2933 = vunpack.c.l.b16 %v2861
    %v2934 = vunpack.c.l.b16 %v2862
    %v2935 = vunpack.c.l.b16 %v2863
    %v2936 = vunpack.c.l.b16 %v2864
    %v2937 = vunpack.c.l.b16 %v2865
    %v2938 = vunpack.c.l.b16 %v2866
    %v2939 = vunpack.c.l.b16 %v2867
    %v2940 = vunpack.c.l.b16 %v2868
    %v2941 = vunpack.c.l.b16 %v2869
    %v2942 = vunpack.c.l.b16 %v2870
    %v2943 = vunpack.c.l.b16 %v2871
    %v2944 = vunpack.c.l.b16 %v2872
    %v2945 = vunpack.c.l.b16 %v2873
    %v2946 = vunpack.c.l.b16 %v2874
    %v2947 = vunpack.c.l.b16 %v2875
    %v2948 = vunpack.c.l.b16 %v2876
    %v2949 = vunpack.c.l.b16 %v2877
    %v2950 = vunpack.c.l.b16 %v2878
    %v2951 = vunpack.c.l.b16 %v2879
    %v2952 = vunpack.c.l.b16 %v2880
    %v2953 = vunpack.c.l.b16 %v2881
    %v2954 = vunpack.c.l.b16 %v2882
    %v2955 = vunpack.c.l.b16 %v2883
    %v2956 = vunpack.c.l.b16 %v2884
    %v2957 = vunpack.c.l.b16 %v2885
    %v2958 = vunpack.c.l.b16 %v2886
    %v2959 = vunpack.c.l.b16 %v2887
    %v2960 = vunpack.c.l.b16 %v2888
    %v2961 = vunpack.c.l.b16 %v2889
    %v2962 = vpack.c.b16 %v2927, %v2926
    %v2963 = vpack.c.b16 %v2929, %v2928
    %v2964 = vpack.c.b16 %v2931, %v2930
    %v2965 = vpack.c.b16 %v2933, %v2932
    %v2966 = vpack.c.b16 %v2935, %v2934
    %v2967 = vpack.c.b16 %v2937, %v2936
    %v2968 = vpack.c.b16 %v2939, %v2938
    %v2969 = vpack.c.b16 %v2941, %v2940
    %v2970 = vpack.c.b16 %v2943, %v2942
    %v2971 = vpack.c.b16 %v2945, %v2944
    %v2972 = vpack.c.b16 %v2947, %v2946
    %v2973 = vpack.c.b16 %v2949, %v2948
    %v2974 = vpack.c.b16 %v2951, %v2950
    %v2975 = vpack.c.b16 %v2953, %v2952
    %v2976 = vpack.c.b16 %v2955, %v2954
    %v2977 = vpack.c.b16 %v2957, %v2956
    %v2978 = vpack.c.b16 %v2959, %v2958
    %v2979 = vpack.c.b16 %v2961, %v2960
    %v2999 = vsel %vm51, %v2823, 0
    %v3002 = vsel %vm51, %v2826, 0
    %v3005 = vsel %vm51, %v2829, 0
    %v3008 = vsel %vm51, %v2832, 0
    %v3011 = vsel %vm51, %v2835, 0
    %v3014 = vsel %vm51, %v2838, 0
    %v3017 = vsel %vm51, %v2841, 0
    %v3020 = vsel %vm51, %v2844, 0
    %v3023 = vsel %vm51, %v2847, 0
    %v3026 = vsel %vm51, %v2850, 0
    %v3029 = vsel %vm51, %v2853, 0
    %3031 = vmatpush.bf16.msra.mxu0 %v2969
    %3032 = vmatpush.bf16.msra.mxu0 %v2968
    %3033 = vmatpush.bf16.msra.mxu0 %v2967
    %3034 = vmatpush.bf16.msra.mxu0 %v2966
    %3035 = vmatpush.bf16.msra.mxu0 %v2965
    %3036 = vmatpush.bf16.msra.mxu0 %v2964
    %3037 = vmatpush.bf16.msra.mxu0 %v2963
    %3038 = vmatpush.bf16.msra.mxu0 %v2962
    %3039 = vmatmul.bf16.gmra.mxu0 %v2821
    %v3040 = vpop.f32.mrf.mxu0
    %v3041 = vadd.f32 0.0, %v3040
    %v3042 = vpop.f32.mrf.mxu0
    %v3043 = vadd.f32 0.0, %v3042
    %3044 = vmatmul.bf16.gmra.mxu0 %v2824
    %v3045 = vpop.f32.mrf.mxu0
    %v3046 = vadd.f32 0.0, %v3045
    %v3047 = vpop.f32.mrf.mxu0
    %v3048 = vadd.f32 0.0, %v3047
    %3049 = vmatmul.bf16.gmra.mxu0 %v2827
    %v3050 = vpop.f32.mrf.mxu0
    %v3051 = vadd.f32 0.0, %v3050
    %v3052 = vpop.f32.mrf.mxu0
    %v3053 = vadd.f32 0.0, %v3052
    %3054 = vmatmul.bf16.gmra.mxu0 %v2830
    %v3055 = vpop.f32.mrf.mxu0
    %v3056 = vadd.f32 0.0, %v3055
    %v3057 = vpop.f32.mrf.mxu0
    %v3058 = vadd.f32 0.0, %v3057
    %3059 = vmatmul.bf16.gmra.mxu0 %v2833
    %v3060 = vpop.f32.mrf.mxu0
    %v3061 = vadd.f32 0.0, %v3060
    %v3062 = vpop.f32.mrf.mxu0
    %v3063 = vadd.f32 0.0, %v3062
    %3064 = vmatmul.bf16.gmra.mxu0 %v2836
    %v3065 = vpop.f32.mrf.mxu0
    %v3066 = vadd.f32 0.0, %v3065
    %v3067 = vpop.f32.mrf.mxu0
    %v3068 = vadd.f32 0.0, %v3067
    %3069 = vmatmul.bf16.gmra.mxu0 %v2839
    %v3070 = vpop.f32.mrf.mxu0
    %v3071 = vadd.f32 0.0, %v3070
    %v3072 = vpop.f32.mrf.mxu0
    %v3073 = vadd.f32 0.0, %v3072
    %3074 = vmatmul.bf16.gmra.mxu0 %v2842
    %v3075 = vpop.f32.mrf.mxu0
    %v3076 = vadd.f32 0.0, %v3075
    %v3077 = vpop.f32.mrf.mxu0
    %v3078 = vadd.f32 0.0, %v3077
    %3079 = vmatmul.bf16.gmra.mxu0 %v2845
    %v3080 = vpop.f32.mrf.mxu0
    %v3081 = vadd.f32 0.0, %v3080
    %v3082 = vpop.f32.mrf.mxu0
    %v3083 = vadd.f32 0.0, %v3082
    %3084 = vmatmul.bf16.gmra.mxu0 %v2848
    %v3085 = vpop.f32.mrf.mxu0
    %v3086 = vadd.f32 0.0, %v3085
    %v3087 = vpop.f32.mrf.mxu0
    %v3088 = vadd.f32 0.0, %v3087
    %3089 = vmatmul.bf16.gmra.mxu0 %v2851
    %v3090 = vpop.f32.mrf.mxu0
    %v3091 = vadd.f32 0.0, %v3090
    %v3092 = vpop.f32.mrf.mxu0
    %3093 = vdwg.mxu0
    %3094 = vmatpush.bf16.msra.mxu0 %v2977
    %3095 = vmatpush.bf16.msra.mxu0 %v2976
    %3096 = vmatpush.bf16.msra.mxu0 %v2975
    %3097 = vmatpush.bf16.msra.mxu0 %v2974
    %3098 = vmatpush.bf16.msra.mxu0 %v2973
    %3099 = vmatpush.bf16.msra.mxu0 %v2972
    %3100 = vmatpush.bf16.msra.mxu0 %v2971
    %3101 = vmatpush.bf16.msra.mxu0 %v2970
    %3102 = vmatmul.bf16.gmra.mxu0 %v2822
    %v3103 = vpop.f32.mrf.mxu0
    %v3104 = vadd.f32 %v3041, %v3103
    %v3105 = vpop.f32.mrf.mxu0
    %v3106 = vadd.f32 %v3043, %v3105
    %3107 = vmatmul.bf16.gmra.mxu0 %v2825
    %v3108 = vpop.f32.mrf.mxu0
    %v3109 = vadd.f32 %v3046, %v3108
    %v3110 = vpop.f32.mrf.mxu0
    %v3111 = vadd.f32 %v3048, %v3110
    %3112 = vmatmul.bf16.gmra.mxu0 %v2828
    %v3113 = vpop.f32.mrf.mxu0
    %v3114 = vadd.f32 %v3051, %v3113
    %v3115 = vpop.f32.mrf.mxu0
    %v3116 = vadd.f32 %v3053, %v3115
    %3117 = vmatmul.bf16.gmra.mxu0 %v2831
    %v3118 = vpop.f32.mrf.mxu0
    %v3119 = vadd.f32 %v3056, %v3118
    %v3120 = vpop.f32.mrf.mxu0
    %v3121 = vadd.f32 %v3058, %v3120
    %3122 = vmatmul.bf16.gmra.mxu0 %v2834
    %v3123 = vpop.f32.mrf.mxu0
    %v3124 = vadd.f32 %v3061, %v3123
    %v3125 = vpop.f32.mrf.mxu0
    %v3126 = vadd.f32 %v3063, %v3125
    %3127 = vmatmul.bf16.gmra.mxu0 %v2837
    %v3128 = vpop.f32.mrf.mxu0
    %v3129 = vadd.f32 %v3066, %v3128
    %v3130 = vpop.f32.mrf.mxu0
    %v3131 = vadd.f32 %v3068, %v3130
    %3132 = vmatmul.bf16.gmra.mxu0 %v2840
    %v3133 = vpop.f32.mrf.mxu0
    %v3134 = vadd.f32 %v3071, %v3133
    %v3135 = vpop.f32.mrf.mxu0
    %v3136 = vadd.f32 %v3073, %v3135
    %3137 = vmatmul.bf16.gmra.mxu0 %v2843
    %v3138 = vpop.f32.mrf.mxu0
    %v3139 = vadd.f32 %v3076, %v3138
    %v3140 = vpop.f32.mrf.mxu0
    %v3141 = vadd.f32 %v3078, %v3140
    %3142 = vmatmul.bf16.gmra.mxu0 %v2846
    %v3143 = vpop.f32.mrf.mxu0
    %v3144 = vadd.f32 %v3081, %v3143
    %v3145 = vpop.f32.mrf.mxu0
    %v3146 = vadd.f32 %v3083, %v3145
    %3147 = vmatmul.bf16.gmra.mxu0 %v2849
    %v3148 = vpop.f32.mrf.mxu0
    %v3149 = vadd.f32 %v3086, %v3148
    %v3150 = vpop.f32.mrf.mxu0
    %v3151 = vadd.f32 %v3088, %v3150
    %3152 = vmatmul.bf16.gmra.mxu0 %v2852
    %v3153 = vpop.f32.mrf.mxu0
    %v3154 = vadd.f32 %v3091, %v3153
    %v3155 = vpop.f32.mrf.mxu0
    %3156 = vdwg.mxu0
    %3157 = vmatpush.bf16.msra.mxu0 0
    %3158 = vmatpush.bf16.msra.mxu0 0
    %3159 = vmatpush.bf16.msra.mxu0 0
    %3160 = vmatpush.bf16.msra.mxu0 0
    %3161 = vmatpush.bf16.msra.mxu0 0
    %3162 = vmatpush.bf16.msra.mxu0 0
    %3163 = vmatpush.bf16.msra.mxu0 %v2979
    %3164 = vmatpush.bf16.msra.mxu0 %v2978
    %3165 = vmatmul.bf16.gmra.mxu0 %v2999
    %v3166 = vpop.f32.mrf.mxu0
    %v3167 = vadd.f32 %v3104, %v3166
    %v3168 = vpop.f32.mrf.mxu0
    %v3169 = vadd.f32 %v3106, %v3168
    %3170 = vmatmul.bf16.gmra.mxu0 %v3002
    %v3171 = vpop.f32.mrf.mxu0
    %v3172 = vadd.f32 %v3109, %v3171
    %v3173 = vpop.f32.mrf.mxu0
    %v3174 = vadd.f32 %v3111, %v3173
    %3175 = vmatmul.bf16.gmra.mxu0 %v3005
    %v3176 = vpop.f32.mrf.mxu0
    %v3177 = vadd.f32 %v3114, %v3176
    %v3178 = vpop.f32.mrf.mxu0
    %v3179 = vadd.f32 %v3116, %v3178
    %3180 = vmatmul.bf16.gmra.mxu0 %v3008
    %v3181 = vpop.f32.mrf.mxu0
    %v3182 = vadd.f32 %v3119, %v3181
    %v3183 = vpop.f32.mrf.mxu0
    %v3184 = vadd.f32 %v3121, %v3183
    %3185 = vmatmul.bf16.gmra.mxu0 %v3011
    %v3186 = vpop.f32.mrf.mxu0
    %v3187 = vadd.f32 %v3124, %v3186
    %v3188 = vpop.f32.mrf.mxu0
    %v3189 = vadd.f32 %v3126, %v3188
    %3190 = vmatmul.bf16.gmra.mxu0 %v3014
    %v3191 = vpop.f32.mrf.mxu0
    %v3192 = vadd.f32 %v3129, %v3191
    %v3193 = vpop.f32.mrf.mxu0
    %v3194 = vadd.f32 %v3131, %v3193
    %3195 = vmatmul.bf16.gmra.mxu0 %v3017
    %v3196 = vpop.f32.mrf.mxu0
    %v3197 = vadd.f32 %v3134, %v3196
    %v3198 = vpop.f32.mrf.mxu0
    %v3199 = vadd.f32 %v3136, %v3198
    %3200 = vmatmul.bf16.gmra.mxu0 %v3020
    %v3201 = vpop.f32.mrf.mxu0
    %v3202 = vadd.f32 %v3139, %v3201
    %v3203 = vpop.f32.mrf.mxu0
    %v3204 = vadd.f32 %v3141, %v3203
    %3205 = vmatmul.bf16.gmra.mxu0 %v3023
    %v3206 = vpop.f32.mrf.mxu0
    %v3207 = vadd.f32 %v3144, %v3206
    %v3208 = vpop.f32.mrf.mxu0
    %v3209 = vadd.f32 %v3146, %v3208
    %3210 = vmatmul.bf16.gmra.mxu0 %v3026
    %v3211 = vpop.f32.mrf.mxu0
    %v3212 = vadd.f32 %v3149, %v3211
    %v3213 = vpop.f32.mrf.mxu0
    %v3214 = vadd.f32 %v3151, %v3213
    %3215 = vmatmul.bf16.gmra.mxu0 %v3029
    %v3216 = vpop.f32.mrf.mxu0
    %v3217 = vadd.f32 %v3154, %v3216
    %v3218 = vpop.f32.mrf.mxu0
    %3219 = vdwg.mxu0
    %v3220 = vld [vmem:[%s9] sm:$0xff]
    %v3221 = vld [vmem:[%s9 + $0x8] sm:$0xff]
    %v3222 = vld [vmem:[%s9 + $0x10] sm:$0xff]
    %v3223 = vld [vmem:[%s9 + $0x18] sm:$0xff]
    %v3224 = vld [vmem:[%s9 + $0x20] sm:$0xff]
    %v3225 = vld [vmem:[%s9 + $0x28] sm:$0xff]
    %v3226 = vld [vmem:[%s9 + $0x30] sm:$0xff]
    %v3227 = vld [vmem:[%s9 + $0x38] sm:$0xff]
    %v3228 = vld [vmem:[%s9 + $0x40] sm:$0xff]
    %v3229 = vld [vmem:[%s9 + $0x48] sm:$0xff]
    %v3230 = vld [vmem:[%s9 + $0x50] sm:$0xff]
    %v3231 = vld [vmem:[%s9 + $0x58] sm:$0xff]
    %v3232 = vld [vmem:[%s9 + $0x60] sm:$0xff]
    %v3233 = vld [vmem:[%s9 + $0x68] sm:$0xff]
    %v3234 = vld [vmem:[%s9 + $0x70] sm:$0xff]
    %v3235 = vld [vmem:[%s9 + $0x78] sm:$0xff]
    %v3236 = vld [vmem:[%s9 + $0x80] sm:$0xff]
    %v3237 = vld [vmem:[%s9 + $0x88] sm:$0xff]
    %v3238 = vld [vmem:[%s9 + $0x90] sm:$0xff]
    %v3239 = vld [vmem:[%s9 + $0x98] sm:$0xff]
    %v3240 = vld [vmem:[%s9 + $0xa0] sm:$0x3]
    %3242 = vset.pattern.permute.xlu0 0
    %3243 = vperm.xlu0 %3242, %v3220
    %v3244 = vpop.permute.xlu0 %3243
    %3247 = vset.pattern.permute.xlu0 0
    %3248 = vperm.xlu0 %3247, %v3221
    %v3249 = vpop.permute.xlu0 %3248
    %3252 = vset.pattern.permute.xlu0 0
    %3253 = vperm.xlu0 %3252, %v3222
    %v3254 = vpop.permute.xlu0 %3253
    %3257 = vset.pattern.permute.xlu0 0
    %3258 = vperm.xlu0 %3257, %v3223
    %v3259 = vpop.permute.xlu0 %3258
    %3262 = vset.pattern.permute.xlu0 0
    %3263 = vperm.xlu0 %3262, %v3224
    %v3264 = vpop.permute.xlu0 %3263
    %3267 = vset.pattern.permute.xlu0 0
    %3268 = vperm.xlu0 %3267, %v3225
    %v3269 = vpop.permute.xlu0 %3268
    %3272 = vset.pattern.permute.xlu0 0
    %3273 = vperm.xlu0 %3272, %v3226
    %v3274 = vpop.permute.xlu0 %3273
    %3277 = vset.pattern.permute.xlu0 0
    %3278 = vperm.xlu0 %3277, %v3227
    %v3279 = vpop.permute.xlu0 %3278
    %3282 = vset.pattern.permute.xlu0 0
    %3283 = vperm.xlu0 %3282, %v3228
    %v3284 = vpop.permute.xlu0 %3283
    %3287 = vset.pattern.permute.xlu0 0
    %3288 = vperm.xlu0 %3287, %v3229
    %v3289 = vpop.permute.xlu0 %3288
    %3292 = vset.pattern.permute.xlu0 0
    %3293 = vperm.xlu0 %3292, %v3230
    %v3294 = vpop.permute.xlu0 %3293
    %3297 = vset.pattern.permute.xlu0 0
    %3298 = vperm.xlu0 %3297, %v3231
    %v3299 = vpop.permute.xlu0 %3298
    %3302 = vset.pattern.permute.xlu0 0
    %3303 = vperm.xlu0 %3302, %v3232
    %v3304 = vpop.permute.xlu0 %3303
    %3307 = vset.pattern.permute.xlu0 0
    %3308 = vperm.xlu0 %3307, %v3233
    %v3309 = vpop.permute.xlu0 %3308
    %3312 = vset.pattern.permute.xlu0 0
    %3313 = vperm.xlu0 %3312, %v3234
    %v3314 = vpop.permute.xlu0 %3313
    %3317 = vset.pattern.permute.xlu0 0
    %3318 = vperm.xlu0 %3317, %v3235
    %v3319 = vpop.permute.xlu0 %3318
    %3322 = vset.pattern.permute.xlu0 0
    %3323 = vperm.xlu0 %3322, %v3236
    %v3324 = vpop.permute.xlu0 %3323
    %3327 = vset.pattern.permute.xlu0 0
    %3328 = vperm.xlu0 %3327, %v3237
    %v3329 = vpop.permute.xlu0 %3328
    %3332 = vset.pattern.permute.xlu0 0
    %3333 = vperm.xlu0 %3332, %v3238
    %v3334 = vpop.permute.xlu0 %3333
    %3337 = vset.pattern.permute.xlu0 0
    %3338 = vperm.xlu0 %3337, %v3239
    %v3339 = vpop.permute.xlu0 %3338
    %3342 = vset.pattern.permute.xlu0 0
    %3343 = vperm.xlu0 %3342, %v3240
    %v3344 = vpop.permute.xlu0 %3343
    %v3346 = vmul.f32 %v3167, %v3244
    %v3347 = vmul.f32 %v3169, %v3249
    %v3348 = vmul.f32 %v3172, %v3254
    %v3349 = vmul.f32 %v3174, %v3259
    %v3350 = vmul.f32 %v3177, %v3264
    %v3351 = vmul.f32 %v3179, %v3269
    %v3352 = vmul.f32 %v3182, %v3274
    %v3353 = vmul.f32 %v3184, %v3279
    %v3354 = vmul.f32 %v3187, %v3284
    %v3355 = vmul.f32 %v3189, %v3289
    %v3356 = vmul.f32 %v3192, %v3294
    %v3357 = vmul.f32 %v3194, %v3299
    %v3358 = vmul.f32 %v3197, %v3304
    %v3359 = vmul.f32 %v3199, %v3309
    %v3360 = vmul.f32 %v3202, %v3314
    %v3361 = vmul.f32 %v3204, %v3319
    %v3362 = vmul.f32 %v3207, %v3324
    %v3363 = vmul.f32 %v3209, %v3329
    %v3364 = vmul.f32 %v3212, %v3334
    %v3365 = vmul.f32 %v3214, %v3339
    %v3366 = vmul.f32 %v3217, %v3344
    %v3367 = vsel %vm71, %v3346, 0.0
    %v3368 = vsel %vm71, %v3347, 0.0
    %v3369 = vadd.f32 %v3367, %v3368
    %v3370 = vsel %vm71, %v3348, 0.0
    %v3371 = vadd.f32 %v3369, %v3370
    %v3372 = vsel %vm71, %v3349, 0.0
    %v3373 = vadd.f32 %v3371, %v3372
    %v3374 = vsel %vm71, %v3350, 0.0
    %v3375 = vadd.f32 %v3373, %v3374
    %v3376 = vsel %vm71, %v3351, 0.0
    %v3377 = vadd.f32 %v3375, %v3376
    %v3378 = vsel %vm71, %v3352, 0.0
    %v3379 = vadd.f32 %v3377, %v3378
    %v3380 = vsel %vm71, %v3353, 0.0
    %v3381 = vadd.f32 %v3379, %v3380
    %v3382 = vsel %vm71, %v3354, 0.0
    %v3383 = vadd.f32 %v3381, %v3382
    %v3384 = vsel %vm71, %v3355, 0.0
    %v3385 = vadd.f32 %v3383, %v3384
    %v3386 = vsel %vm71, %v3356, 0.0
    %v3387 = vadd.f32 %v3385, %v3386
    %v3388 = vsel %vm71, %v3357, 0.0
    %v3389 = vadd.f32 %v3387, %v3388
    %v3390 = vsel %vm71, %v3358, 0.0
    %v3391 = vadd.f32 %v3389, %v3390
    %v3392 = vsel %vm71, %v3359, 0.0
    %v3393 = vadd.f32 %v3391, %v3392
    %v3394 = vsel %vm71, %v3360, 0.0
    %v3395 = vadd.f32 %v3393, %v3394
    %v3396 = vsel %vm71, %v3361, 0.0
    %v3397 = vadd.f32 %v3395, %v3396
    %v3398 = vsel %vm71, %v3362, 0.0
    %v3399 = vadd.f32 %v3397, %v3398
    %v3400 = vsel %vm71, %v3363, 0.0
    %v3401 = vadd.f32 %v3399, %v3400
    %v3402 = vsel %vm71, %v3364, 0.0
    %v3403 = vadd.f32 %v3401, %v3402
    %v3404 = vsel %vm71, %v3365, 0.0
    %v3405 = vadd.f32 %v3403, %v3404
    %v3406 = vsel %vm93, %v3366, 0.0
    %v3407 = vadd.f32 %v3405, %v3406
    %v3408 = vrot.slane %v3407, 4
    %v3409 = vadd.f32 %v3407, %v3408
    %v3410 = vrot.slane %v3409, 2
    %v3411 = vadd.f32 %v3409, %v3410
    %v3412 = vrot.slane %v3411, 1
    %v3413 = vadd.f32 %v3411, %v3412
    %v3414 = vmul.f32 %v3167, %v3167
    %v3415 = vmul.f32 %v3169, %v3169
    %v3416 = vmul.f32 %v3172, %v3172
    %v3417 = vmul.f32 %v3174, %v3174
    %v3418 = vmul.f32 %v3177, %v3177
    %v3419 = vmul.f32 %v3179, %v3179
    %v3420 = vmul.f32 %v3182, %v3182
    %v3421 = vmul.f32 %v3184, %v3184
    %v3422 = vmul.f32 %v3187, %v3187
    %v3423 = vmul.f32 %v3189, %v3189
    %v3424 = vmul.f32 %v3192, %v3192
    %v3425 = vmul.f32 %v3194, %v3194
    %v3426 = vmul.f32 %v3197, %v3197
    %v3427 = vmul.f32 %v3199, %v3199
    %v3428 = vmul.f32 %v3202, %v3202
    %v3429 = vmul.f32 %v3204, %v3204
    %v3430 = vmul.f32 %v3207, %v3207
    %v3431 = vmul.f32 %v3209, %v3209
    %v3432 = vmul.f32 %v3212, %v3212
    %v3433 = vmul.f32 %v3214, %v3214
    %v3434 = vmul.f32 %v3217, %v3217
    %v3435 = vmul.f32 %v3414, %v3244
    %v3436 = vmul.f32 %v3415, %v3249
    %v3437 = vmul.f32 %v3416, %v3254
    %v3438 = vmul.f32 %v3417, %v3259
    %v3439 = vmul.f32 %v3418, %v3264
    %v3440 = vmul.f32 %v3419, %v3269
    %v3441 = vmul.f32 %v3420, %v3274
    %v3442 = vmul.f32 %v3421, %v3279
    %v3443 = vmul.f32 %v3422, %v3284
    %v3444 = vmul.f32 %v3423, %v3289
    %v3445 = vmul.f32 %v3424, %v3294
    %v3446 = vmul.f32 %v3425, %v3299
    %v3447 = vmul.f32 %v3426, %v3304
    %v3448 = vmul.f32 %v3427, %v3309
    %v3449 = vmul.f32 %v3428, %v3314
    %v3450 = vmul.f32 %v3429, %v3319
    %v3451 = vmul.f32 %v3430, %v3324
    %v3452 = vmul.f32 %v3431, %v3329
    %v3453 = vmul.f32 %v3432, %v3334
    %v3454 = vmul.f32 %v3433, %v3339
    %v3455 = vmul.f32 %v3434, %v3344
    %v3456 = vsel %vm71, %v3435, 0.0
    %v3457 = vsel %vm71, %v3436, 0.0
    %v3458 = vadd.f32 %v3456, %v3457
    %v3459 = vsel %vm71, %v3437, 0.0
    %v3460 = vadd.f32 %v3458, %v3459
    %v3461 = vsel %vm71, %v3438, 0.0
    %v3462 = vadd.f32 %v3460, %v3461
    %v3463 = vsel %vm71, %v3439, 0.0
    %v3464 = vadd.f32 %v3462, %v3463
    %v3465 = vsel %vm71, %v3440, 0.0
    %v3466 = vadd.f32 %v3464, %v3465
    %v3467 = vsel %vm71, %v3441, 0.0
    %v3468 = vadd.f32 %v3466, %v3467
    %v3469 = vsel %vm71, %v3442, 0.0
    %v3470 = vadd.f32 %v3468, %v3469
    %v3471 = vsel %vm71, %v3443, 0.0
    %v3472 = vadd.f32 %v3470, %v3471
    %v3473 = vsel %vm71, %v3444, 0.0
    %v3474 = vadd.f32 %v3472, %v3473
    %v3475 = vsel %vm71, %v3445, 0.0
    %v3476 = vadd.f32 %v3474, %v3475
    %v3477 = vsel %vm71, %v3446, 0.0
    %v3478 = vadd.f32 %v3476, %v3477
    %v3479 = vsel %vm71, %v3447, 0.0
    %v3480 = vadd.f32 %v3478, %v3479
    %v3481 = vsel %vm71, %v3448, 0.0
    %v3482 = vadd.f32 %v3480, %v3481
    %v3483 = vsel %vm71, %v3449, 0.0
    %v3484 = vadd.f32 %v3482, %v3483
    %v3485 = vsel %vm71, %v3450, 0.0
    %v3486 = vadd.f32 %v3484, %v3485
    %v3487 = vsel %vm71, %v3451, 0.0
    %v3488 = vadd.f32 %v3486, %v3487
    %v3489 = vsel %vm71, %v3452, 0.0
    %v3490 = vadd.f32 %v3488, %v3489
    %v3491 = vsel %vm71, %v3453, 0.0
    %v3492 = vadd.f32 %v3490, %v3491
    %v3493 = vsel %vm71, %v3454, 0.0
    %v3494 = vadd.f32 %v3492, %v3493
    %v3495 = vsel %vm93, %v3455, 0.0
    %v3496 = vadd.f32 %v3494, %v3495
    %v3497 = vrot.slane %v3496, 4
    %v3498 = vadd.f32 %v3496, %v3497
    %v3499 = vrot.slane %v3498, 2
    %v3500 = vadd.f32 %v3498, %v3499
    %v3501 = vrot.slane %v3500, 1
    %v3502 = vadd.f32 %v3500, %v3501
    %3504 = vrot.lane.b32.xlu0 %v3413, 112
    %v3505 = vpop.permute.xlu0 %3504
    %v3507 = vadd.f32 %v3413, %v3505
    %3508 = vrot.lane.b32.xlu0 %v3413, 96
    %v3509 = vpop.permute.xlu0 %3508
    %v3511 = vadd.f32 %v3507, %v3509
    %3512 = vrot.lane.b32.xlu0 %v3413, 80
    %v3513 = vpop.permute.xlu0 %3512
    %v3515 = vadd.f32 %v3511, %v3513
    %3517 = vrot.lane.b32.xlu0 %v3502, 112
    %v3518 = vpop.permute.xlu0 %3517
    %v3520 = vadd.f32 %v3502, %v3518
    %3521 = vrot.lane.b32.xlu0 %v3502, 96
    %v3522 = vpop.permute.xlu0 %3521
    %v3524 = vadd.f32 %v3520, %v3522
    %3525 = vrot.lane.b32.xlu0 %v3502, 80
    %v3526 = vpop.permute.xlu0 %3525
    %v3528 = vadd.f32 %v3524, %v3526
    %v3529 = vrcp.pop 392.0
    %v3530 = vmul.f32 392.0, %v3529
    %v3531 = vsub.f32 1.0, %v3530
    %v3532 = vmul.f32 %v3529, %v3531
    %v3533 = vadd.f32 %v3529, %v3532
    %vm3534 = vweird.f32 %v3529
    %v3535 = vsel %vm3534, %v3529, %v3533
    %v3536 = vmul.f32 %v3515, %v3535
    %v3537 = vmul.f32 %v3528, %v3535
    %v3538 = vmul.f32 %v3536, %v3536
    %v3539 = vsub.f32 %v3537, %v3538
    %v3540 = vmax.f32 %v3539, 0.0
    %v3541 = vld [vmem:[%s5] sm:$0x1]
    %v3542 = vadd.f32 %v3540, 1e-05
    %v3543 = vrsqrt.pop %v3542
    %v3544 = vmul.f32 %v3543, %v3542
    %v3545 = vmul.f32 %v3544, %v3543
    %v3546 = vmul.f32 0.5, %v3545
    %v3547 = vsub.f32 1.5, %v3546
    %v3548 = vmul.f32 %v3543, %v3547
    %vm3549 = vweird.f32 %v3542
    %vm3550 = vweird.f32 %v3543
    %vm3551 = vmor %vm3549, %vm3550
    %v3552 = vsel %vm3551, %v3543, %v3548
    %v3553 = vmul.f32 %v3541, %v3552
    %v3554 = vld [vmem:[%s6] sm:$0x1]
    %v3555 = vmul.f32 %v3536, %v3553
    %v3556 = vsub.f32 %v3554, %v3555
    %v3558 = vperm.slane %v3553, 0
    %3559 = vrot.lane.b32.xlu0 %v3558, 16
    %v3560 = vpop.permute.xlu0 %3559
    %3562 = vrot.lane.b32.xlu0 %v3558, 32
    %v3563 = vpop.permute.xlu0 %3562
    %3565 = vrot.lane.b32.xlu0 %v3558, 48
    %v3566 = vpop.permute.xlu0 %3565
    %vm3568 = vcmask 130048
    %v3569 = vsel %vm3568, %v3553, %v3560
    %v3570 = vsel %vm51, %v3569, %v3563
    %vm3571 = vcmask 392192
    %v3572 = vsel %vm3571, %v3570, %v3566
    %v3574 = vperm.slane %v3556, 0
    %3575 = vrot.lane.b32.xlu0 %v3574, 16
    %v3576 = vpop.permute.xlu0 %3575
    %3578 = vrot.lane.b32.xlu0 %v3574, 32
    %v3579 = vpop.permute.xlu0 %3578
    %3581 = vrot.lane.b32.xlu0 %v3574, 48
    %v3582 = vpop.permute.xlu0 %3581
    %v3584 = vsel %vm3568, %v3556, %v3576
    %v3585 = vsel %vm51, %v3584, %v3579
    %v3586 = vsel %vm3571, %v3585, %v3582
    %v3587 = vperm.slane %v3572, 0
    %v3588 = vmul.f32 %v3167, %v3587
    %v3589 = vmul.f32 %v3169, %v3587
    %v3590 = vmul.f32 %v3172, %v3587
    %v3591 = vmul.f32 %v3174, %v3587
    %v3592 = vmul.f32 %v3177, %v3587
    %v3593 = vmul.f32 %v3179, %v3587
    %v3594 = vmul.f32 %v3182, %v3587
    %v3595 = vmul.f32 %v3184, %v3587
    %v3596 = vmul.f32 %v3187, %v3587
    %v3597 = vmul.f32 %v3189, %v3587
    %v3598 = vmul.f32 %v3192, %v3587
    %v3599 = vmul.f32 %v3194, %v3587
    %v3600 = vmul.f32 %v3197, %v3587
    %v3601 = vmul.f32 %v3199, %v3587
    %v3602 = vmul.f32 %v3202, %v3587
    %v3603 = vmul.f32 %v3204, %v3587
    %v3604 = vmul.f32 %v3207, %v3587
    %v3605 = vmul.f32 %v3209, %v3587
    %v3606 = vmul.f32 %v3212, %v3587
    %v3607 = vmul.f32 %v3214, %v3587
    %v3608 = vmul.f32 %v3217, %v3587
    %v3609 = vperm.slane %v3586, 0
    %v3610 = vadd.f32 %v3588, %v3609
    %v3611 = vadd.f32 %v3589, %v3609
    %v3612 = vadd.f32 %v3590, %v3609
    %v3613 = vadd.f32 %v3591, %v3609
    %v3614 = vadd.f32 %v3592, %v3609
    %v3615 = vadd.f32 %v3593, %v3609
    %v3616 = vadd.f32 %v3594, %v3609
    %v3617 = vadd.f32 %v3595, %v3609
    %v3618 = vadd.f32 %v3596, %v3609
    %v3619 = vadd.f32 %v3597, %v3609
    %v3620 = vadd.f32 %v3598, %v3609
    %v3621 = vadd.f32 %v3599, %v3609
    %v3622 = vadd.f32 %v3600, %v3609
    %v3623 = vadd.f32 %v3601, %v3609
    %v3624 = vadd.f32 %v3602, %v3609
    %v3625 = vadd.f32 %v3603, %v3609
    %v3626 = vadd.f32 %v3604, %v3609
    %v3627 = vadd.f32 %v3605, %v3609
    %v3628 = vadd.f32 %v3606, %v3609
    %v3629 = vadd.f32 %v3607, %v3609
    %v3630 = vadd.f32 %v3608, %v3609
    %v3631 = vmax.f32 %v3610, 0.0
    %v3632 = vmax.f32 %v3611, 0.0
    %v3633 = vmax.f32 %v3612, 0.0
    %v3634 = vmax.f32 %v3613, 0.0
    %v3635 = vmax.f32 %v3614, 0.0
    %v3636 = vmax.f32 %v3615, 0.0
    %v3637 = vmax.f32 %v3616, 0.0
    %v3638 = vmax.f32 %v3617, 0.0
    %v3639 = vmax.f32 %v3618, 0.0
    %v3640 = vmax.f32 %v3619, 0.0
    %v3641 = vmax.f32 %v3620, 0.0
    %v3642 = vmax.f32 %v3621, 0.0
    %v3643 = vmax.f32 %v3622, 0.0
    %v3644 = vmax.f32 %v3623, 0.0
    %v3645 = vmax.f32 %v3624, 0.0
    %v3646 = vmax.f32 %v3625, 0.0
    %v3647 = vmax.f32 %v3626, 0.0
    %v3648 = vmax.f32 %v3627, 0.0
    %v3649 = vmax.f32 %v3628, 0.0
    %v3650 = vmax.f32 %v3629, 0.0
    %v3651 = vmax.f32 %v3630, 0.0
    %v3652 = vmul.f32 %v3631, %v3244
    %v3653 = vmul.f32 %v3632, %v3249
    %v3654 = vmul.f32 %v3633, %v3254
    %v3655 = vmul.f32 %v3634, %v3259
    %v3656 = vmul.f32 %v3635, %v3264
    %v3657 = vmul.f32 %v3636, %v3269
    %v3658 = vmul.f32 %v3637, %v3274
    %v3659 = vmul.f32 %v3638, %v3279
    %v3660 = vmul.f32 %v3639, %v3284
    %v3661 = vmul.f32 %v3640, %v3289
    %v3662 = vmul.f32 %v3641, %v3294
    %v3663 = vmul.f32 %v3642, %v3299
    %v3664 = vmul.f32 %v3643, %v3304
    %v3665 = vmul.f32 %v3644, %v3309
    %v3666 = vmul.f32 %v3645, %v3314
    %v3667 = vmul.f32 %v3646, %v3319
    %v3668 = vmul.f32 %v3647, %v3324
    %v3669 = vmul.f32 %v3648, %v3329
    %v3670 = vmul.f32 %v3649, %v3334
    %v3671 = vmul.f32 %v3650, %v3339
    %v3672 = vmul.f32 %v3651, %v3344
    %v3694 = vrot.slane %v3652, 6
    %v3695 = vrot.slane %v3653, 6
    %v3696 = vsel %vm1922, %v3694, %v3695
    %v3697 = vrot.slane %v3654, 6
    %v3698 = vsel %vm1922, %v3695, %v3697
    %v3699 = vrot.slane %v3655, 6
    %v3700 = vsel %vm1922, %v3697, %v3699
    %v3701 = vrot.slane %v3656, 6
    %v3702 = vsel %vm1922, %v3699, %v3701
    %v3703 = vrot.slane %v3657, 6
    %v3704 = vsel %vm1922, %v3701, %v3703
    %v3705 = vrot.slane %v3658, 6
    %v3706 = vsel %vm1922, %v3703, %v3705
    %v3707 = vrot.slane %v3659, 6
    %v3708 = vsel %vm1922, %v3705, %v3707
    %v3709 = vrot.slane %v3660, 6
    %v3710 = vsel %vm1922, %v3707, %v3709
    %v3711 = vrot.slane %v3661, 6
    %v3712 = vsel %vm1922, %v3709, %v3711
    %v3713 = vrot.slane %v3662, 6
    %v3714 = vsel %vm1922, %v3711, %v3713
    %v3715 = vrot.slane %v3663, 6
    %v3716 = vsel %vm1922, %v3713, %v3715
    %v3717 = vrot.slane %v3664, 6
    %v3718 = vsel %vm1922, %v3715, %v3717
    %v3719 = vrot.slane %v3665, 6
    %v3720 = vsel %vm1922, %v3717, %v3719
    %v3721 = vrot.slane %v3666, 6
    %v3722 = vsel %vm1922, %v3719, %v3721
    %v3723 = vrot.slane %v3667, 6
    %v3724 = vsel %vm1922, %v3721, %v3723
    %v3725 = vrot.slane %v3668, 6
    %v3726 = vsel %vm1922, %v3723, %v3725
    %v3727 = vrot.slane %v3669, 6
    %v3728 = vsel %vm1922, %v3725, %v3727
    %v3729 = vrot.slane %v3670, 6
    %v3730 = vsel %vm1922, %v3727, %v3729
    %v3731 = vrot.slane %v3671, 6
    %v3732 = vsel %vm1922, %v3729, %v3731
    %v3733 = vrot.slane %v3672, 6
    %v3734 = vsel %vm1922, %v3731, %v3733
    %3756 = vst.msk [vmem:[#allocation3 + $0x78] sm:$0xfc] %vm82, %v3694
    %3757 = vst.msk [vmem:[#allocation3 + $0xa0] sm:$0xff] %vm71, %v3696
    %3758 = vst.msk [vmem:[#allocation3 + $0xc8] sm:$0xff] %vm71, %v3698
    %3759 = vst.msk [vmem:[#allocation3 + $0xf0] sm:$0xff] %vm71, %v3700
    %3760 = vst.msk [vmem:[#allocation3 + $0x118] sm:$0xff] %vm71, %v3702
    %3761 = vst.msk [vmem:[#allocation3 + $0x140] sm:$0xff] %vm71, %v3704
    %3762 = vst.msk [vmem:[#allocation3 + $0x168] sm:$0xff] %vm71, %v3706
    %3763 = vst.msk [vmem:[#allocation3 + $0x190] sm:$0xff] %vm71, %v3708
    %3764 = vst.msk [vmem:[#allocation3 + $0x1b8] sm:$0xff] %vm71, %v3710
    %3765 = vst.msk [vmem:[#allocation3 + $0x1e0] sm:$0xff] %vm71, %v3712
    %3766 = vst.msk [vmem:[#allocation3 + $0x208] sm:$0xff] %vm71, %v3714
    %3767 = vst.msk [vmem:[#allocation3 + $0x230] sm:$0xff] %vm71, %v3716
    %3768 = vst.msk [vmem:[#allocation3 + $0x258] sm:$0xff] %vm71, %v3718
    %3769 = vst.msk [vmem:[#allocation3 + $0x280] sm:$0xff] %vm71, %v3720
    %3770 = vst.msk [vmem:[#allocation3 + $0x2a8] sm:$0xff] %vm71, %v3722
    %3771 = vst.msk [vmem:[#allocation3 + $0x2d0] sm:$0xff] %vm71, %v3724
    %3772 = vst.msk [vmem:[#allocation3 + $0x2f8] sm:$0xff] %vm71, %v3726
    %3773 = vst.msk [vmem:[#allocation3 + $0x320] sm:$0xff] %vm71, %v3728
    %3774 = vst.msk [vmem:[#allocation3 + $0x348] sm:$0xff] %vm71, %v3730
    %3775 = vst.msk [vmem:[#allocation3 + $0x370] sm:$0xff] %vm71, %v3732
    %vm3776 = vcmask 519168
    %3777 = vst.msk [vmem:[#allocation3 + $0x398] sm:$0xf] %vm3776, %v3734
    %v3778 = vrot.slane %v3652, 7
    %v3779 = vrot.slane %v3653, 7
    %v3780 = vsel %vm1967, %v3778, %v3779
    %v3781 = vrot.slane %v3654, 7
    %v3782 = vsel %vm1967, %v3779, %v3781
    %v3783 = vrot.slane %v3655, 7
    %v3784 = vsel %vm1967, %v3781, %v3783
    %v3785 = vrot.slane %v3656, 7
    %v3786 = vsel %vm1967, %v3783, %v3785
    %v3787 = vrot.slane %v3657, 7
    %v3788 = vsel %vm1967, %v3785, %v3787
    %v3789 = vrot.slane %v3658, 7
    %v3790 = vsel %vm1967, %v3787, %v3789
    %v3791 = vrot.slane %v3659, 7
    %v3792 = vsel %vm1967, %v3789, %v3791
    %v3793 = vrot.slane %v3660, 7
    %v3794 = vsel %vm1967, %v3791, %v3793
    %v3795 = vrot.slane %v3661, 7
    %v3796 = vsel %vm1967, %v3793, %v3795
    %v3797 = vrot.slane %v3662, 7
    %v3798 = vsel %vm1967, %v3795, %v3797
    %v3799 = vrot.slane %v3663, 7
    %v3800 = vsel %vm1967, %v3797, %v3799
    %v3801 = vrot.slane %v3664, 7
    %v3802 = vsel %vm1967, %v3799, %v3801
    %v3803 = vrot.slane %v3665, 7
    %v3804 = vsel %vm1967, %v3801, %v3803
    %v3805 = vrot.slane %v3666, 7
    %v3806 = vsel %vm1967, %v3803, %v3805
    %v3807 = vrot.slane %v3667, 7
    %v3808 = vsel %vm1967, %v3805, %v3807
    %v3809 = vrot.slane %v3668, 7
    %v3810 = vsel %vm1967, %v3807, %v3809
    %v3811 = vrot.slane %v3669, 7
    %v3812 = vsel %vm1967, %v3809, %v3811
    %v3813 = vrot.slane %v3670, 7
    %v3814 = vsel %vm1967, %v3811, %v3813
    %v3815 = vrot.slane %v3671, 7
    %v3816 = vsel %vm1967, %v3813, %v3815
    %v3817 = vrot.slane %v3672, 7
    %v3818 = vsel %vm1967, %v3815, %v3817
    %3819 = vrot.lane.b32.xlu0 %v3778, 64
    %v3820 = vpop.permute.xlu0 %3819
    %3821 = vrot.lane.b32.xlu0 %v3780, 64
    %v3822 = vpop.permute.xlu0 %3821
    %3823 = vrot.lane.b32.xlu0 %v3782, 64
    %v3824 = vpop.permute.xlu0 %3823
    %3825 = vrot.lane.b32.xlu0 %v3784, 64
    %v3826 = vpop.permute.xlu0 %3825
    %3827 = vrot.lane.b32.xlu0 %v3786, 64
    %v3828 = vpop.permute.xlu0 %3827
    %3829 = vrot.lane.b32.xlu0 %v3788, 64
    %v3830 = vpop.permute.xlu0 %3829
    %3831 = vrot.lane.b32.xlu0 %v3790, 64
    %v3832 = vpop.permute.xlu0 %3831
    %3833 = vrot.lane.b32.xlu0 %v3792, 64
    %v3834 = vpop.permute.xlu0 %3833
    %3835 = vrot.lane.b32.xlu0 %v3794, 64
    %v3836 = vpop.permute.xlu0 %3835
    %3837 = vrot.lane.b32.xlu0 %v3796, 64
    %v3838 = vpop.permute.xlu0 %3837
    %3839 = vrot.lane.b32.xlu0 %v3798, 64
    %v3840 = vpop.permute.xlu0 %3839
    %3841 = vrot.lane.b32.xlu0 %v3800, 64
    %v3842 = vpop.permute.xlu0 %3841
    %3843 = vrot.lane.b32.xlu0 %v3802, 64
    %v3844 = vpop.permute.xlu0 %3843
    %3845 = vrot.lane.b32.xlu0 %v3804, 64
    %v3846 = vpop.permute.xlu0 %3845
    %3847 = vrot.lane.b32.xlu0 %v3806, 64
    %v3848 = vpop.permute.xlu0 %3847
    %3849 = vrot.lane.b32.xlu0 %v3808, 64
    %v3850 = vpop.permute.xlu0 %3849
    %3851 = vrot.lane.b32.xlu0 %v3810, 64
    %v3852 = vpop.permute.xlu0 %3851
    %3853 = vrot.lane.b32.xlu0 %v3812, 64
    %v3854 = vpop.permute.xlu0 %3853
    %3855 = vrot.lane.b32.xlu0 %v3814, 64
    %v3856 = vpop.permute.xlu0 %3855
    %3857 = vrot.lane.b32.xlu0 %v3816, 64
    %v3858 = vpop.permute.xlu0 %3857
    %3859 = vrot.lane.b32.xlu0 %v3818, 64
    %v3860 = vpop.permute.xlu0 %3859
    %vm3882 = vcmask 1048065
    %3883 = vst.msk [vmem:[#allocation3 + $0x78] sm:$0xfe] %vm3882, %v3820
    %vm3884 = vcmask 1048064
    %3885 = vst.msk [vmem:[#allocation3 + $0xa0] sm:$0xff] %vm3884, %v3822
    %3886 = vst.msk [vmem:[#allocation3 + $0xc8] sm:$0xff] %vm3884, %v3824
    %3887 = vst.msk [vmem:[#allocation3 + $0xf0] sm:$0xff] %vm3884, %v3826
    %3888 = vst.msk [vmem:[#allocation3 + $0x118] sm:$0xff] %vm3884, %v3828
    %3889 = vst.msk [vmem:[#allocation3 + $0x140] sm:$0xff] %vm3884, %v3830
    %3890 = vst.msk [vmem:[#allocation3 + $0x168] sm:$0xff] %vm3884, %v3832
    %3891 = vst.msk [vmem:[#allocation3 + $0x190] sm:$0xff] %vm3884, %v3834
    %3892 = vst.msk [vmem:[#allocation3 + $0x1b8] sm:$0xff] %vm3884, %v3836
    %3893 = vst.msk [vmem:[#allocation3 + $0x1e0] sm:$0xff] %vm3884, %v3838
    %3894 = vst.msk [vmem:[#allocation3 + $0x208] sm:$0xff] %vm3884, %v3840
    %3895 = vst.msk [vmem:[#allocation3 + $0x230] sm:$0xff] %vm3884, %v3842
    %3896 = vst.msk [vmem:[#allocation3 + $0x258] sm:$0xff] %vm3884, %v3844
    %3897 = vst.msk [vmem:[#allocation3 + $0x280] sm:$0xff] %vm3884, %v3846
    %3898 = vst.msk [vmem:[#allocation3 + $0x2a8] sm:$0xff] %vm3884, %v3848
    %3899 = vst.msk [vmem:[#allocation3 + $0x2d0] sm:$0xff] %vm3884, %v3850
    %3900 = vst.msk [vmem:[#allocation3 + $0x2f8] sm:$0xff] %vm3884, %v3852
    %3901 = vst.msk [vmem:[#allocation3 + $0x320] sm:$0xff] %vm3884, %v3854
    %3902 = vst.msk [vmem:[#allocation3 + $0x348] sm:$0xff] %vm3884, %v3856
    %3903 = vst.msk [vmem:[#allocation3 + $0x370] sm:$0xff] %vm3884, %v3858
    %vm3904 = vcmask 1042944
    %3905 = vst.msk [vmem:[#allocation3 + $0x398] sm:$0x7] %vm3904, %v3860
    %3906 = vst.msk [vmem:[#allocation3 + $0x80] sm:$0xff] %vm71, %v3652
    %3907 = vst.msk [vmem:[#allocation3 + $0xa8] sm:$0xff] %vm71, %v3653
    %3908 = vst.msk [vmem:[#allocation3 + $0xd0] sm:$0xff] %vm71, %v3654
    %3909 = vst.msk [vmem:[#allocation3 + $0xf8] sm:$0xff] %vm71, %v3655
    %3910 = vst.msk [vmem:[#allocation3 + $0x120] sm:$0xff] %vm71, %v3656
    %3911 = vst.msk [vmem:[#allocation3 + $0x148] sm:$0xff] %vm71, %v3657
    %3912 = vst.msk [vmem:[#allocation3 + $0x170] sm:$0xff] %vm71, %v3658
    %3913 = vst.msk [vmem:[#allocation3 + $0x198] sm:$0xff] %vm71, %v3659
    %3914 = vst.msk [vmem:[#allocation3 + $0x1c0] sm:$0xff] %vm71, %v3660
    %3915 = vst.msk [vmem:[#allocation3 + $0x1e8] sm:$0xff] %vm71, %v3661
    %3916 = vst.msk [vmem:[#allocation3 + $0x210] sm:$0xff] %vm71, %v3662
    %3917 = vst.msk [vmem:[#allocation3 + $0x238] sm:$0xff] %vm71, %v3663
    %3918 = vst.msk [vmem:[#allocation3 + $0x260] sm:$0xff] %vm71, %v3664
    %3919 = vst.msk [vmem:[#allocation3 + $0x288] sm:$0xff] %vm71, %v3665
    %3920 = vst.msk [vmem:[#allocation3 + $0x2b0] sm:$0xff] %vm71, %v3666
    %3921 = vst.msk [vmem:[#allocation3 + $0x2d8] sm:$0xff] %vm71, %v3667
    %3922 = vst.msk [vmem:[#allocation3 + $0x300] sm:$0xff] %vm71, %v3668
    %3923 = vst.msk [vmem:[#allocation3 + $0x328] sm:$0xff] %vm71, %v3669
    %3924 = vst.msk [vmem:[#allocation3 + $0x350] sm:$0xff] %vm71, %v3670
    %3925 = vst.msk [vmem:[#allocation3 + $0x378] sm:$0xff] %vm71, %v3671
    %3926 = vst.msk [vmem:[#allocation3 + $0x3a0] sm:$0x3] %vm93, %v3672
    %3927 = vst.msk [vmem:[#allocation3 + $0x58] sm:$0xfe] %vm3882, %v3820
    %3928 = vst.msk [vmem:[#allocation3 + $0x80] sm:$0xff] %vm3884, %v3822
    %3929 = vst.msk [vmem:[#allocation3 + $0xa8] sm:$0xff] %vm3884, %v3824
    %3930 = vst.msk [vmem:[#allocation3 + $0xd0] sm:$0xff] %vm3884, %v3826
    %3931 = vst.msk [vmem:[#allocation3 + $0xf8] sm:$0xff] %vm3884, %v3828
    %3932 = vst.msk [vmem:[#allocation3 + $0x120] sm:$0xff] %vm3884, %v3830
    %3933 = vst.msk [vmem:[#allocation3 + $0x148] sm:$0xff] %vm3884, %v3832
    %3934 = vst.msk [vmem:[#allocation3 + $0x170] sm:$0xff] %vm3884, %v3834
    %3935 = vst.msk [vmem:[#allocation3 + $0x198] sm:$0xff] %vm3884, %v3836
    %3936 = vst.msk [vmem:[#allocation3 + $0x1c0] sm:$0xff] %vm3884, %v3838
    %3937 = vst.msk [vmem:[#allocation3 + $0x1e8] sm:$0xff] %vm3884, %v3840
    %3938 = vst.msk [vmem:[#allocation3 + $0x210] sm:$0xff] %vm3884, %v3842
    %3939 = vst.msk [vmem:[#allocation3 + $0x238] sm:$0xff] %vm3884, %v3844
    %3940 = vst.msk [vmem:[#allocation3 + $0x260] sm:$0xff] %vm3884, %v3846
    %3941 = vst.msk [vmem:[#allocation3 + $0x288] sm:$0xff] %vm3884, %v3848
    %3942 = vst.msk [vmem:[#allocation3 + $0x2b0] sm:$0xff] %vm3884, %v3850
    %3943 = vst.msk [vmem:[#allocation3 + $0x2d8] sm:$0xff] %vm3884, %v3852
    %3944 = vst.msk [vmem:[#allocation3 + $0x300] sm:$0xff] %vm3884, %v3854
    %3945 = vst.msk [vmem:[#allocation3 + $0x328] sm:$0xff] %vm3884, %v3856
    %3946 = vst.msk [vmem:[#allocation3 + $0x350] sm:$0xff] %vm3884, %v3858
    %3947 = vst.msk [vmem:[#allocation3 + $0x378] sm:$0x7] %vm3904, %v3860
    %3948 = vst.msk [vmem:[#allocation3 + $0x60] sm:$0xff] %vm71, %v3652
    %3949 = vst.msk [vmem:[#allocation3 + $0x88] sm:$0xff] %vm71, %v3653
    %3950 = vst.msk [vmem:[#allocation3 + $0xb0] sm:$0xff] %vm71, %v3654
    %3951 = vst.msk [vmem:[#allocation3 + $0xd8] sm:$0xff] %vm71, %v3655
    %3952 = vst.msk [vmem:[#allocation3 + $0x100] sm:$0xff] %vm71, %v3656
    %3953 = vst.msk [vmem:[#allocation3 + $0x128] sm:$0xff] %vm71, %v3657
    %3954 = vst.msk [vmem:[#allocation3 + $0x150] sm:$0xff] %vm71, %v3658
    %3955 = vst.msk [vmem:[#allocation3 + $0x178] sm:$0xff] %vm71, %v3659
    %3956 = vst.msk [vmem:[#allocation3 + $0x1a0] sm:$0xff] %vm71, %v3660
    %3957 = vst.msk [vmem:[#allocation3 + $0x1c8] sm:$0xff] %vm71, %v3661
    %3958 = vst.msk [vmem:[#allocation3 + $0x1f0] sm:$0xff] %vm71, %v3662
    %3959 = vst.msk [vmem:[#allocation3 + $0x218] sm:$0xff] %vm71, %v3663
    %3960 = vst.msk [vmem:[#allocation3 + $0x240] sm:$0xff] %vm71, %v3664
    %3961 = vst.msk [vmem:[#allocation3 + $0x268] sm:$0xff] %vm71, %v3665
    %3962 = vst.msk [vmem:[#allocation3 + $0x290] sm:$0xff] %vm71, %v3666
    %3963 = vst.msk [vmem:[#allocation3 + $0x2b8] sm:$0xff] %vm71, %v3667
    %3964 = vst.msk [vmem:[#allocation3 + $0x2e0] sm:$0xff] %vm71, %v3668
    %3965 = vst.msk [vmem:[#allocation3 + $0x308] sm:$0xff] %vm71, %v3669
    %3966 = vst.msk [vmem:[#allocation3 + $0x330] sm:$0xff] %vm71, %v3670
    %3967 = vst.msk [vmem:[#allocation3 + $0x358] sm:$0xff] %vm71, %v3671
    %3968 = vst.msk [vmem:[#allocation3 + $0x380] sm:$0x3] %vm93, %v3672
    %v3969 = vrot.slane %v3652, 1
    %v3970 = vrot.slane %v3653, 1
    %v3971 = vsel %vm2140, %v3969, %v3970
    %v3972 = vrot.slane %v3654, 1
    %v3973 = vsel %vm2140, %v3970, %v3972
    %v3974 = vrot.slane %v3655, 1
    %v3975 = vsel %vm2140, %v3972, %v3974
    %v3976 = vrot.slane %v3656, 1
    %v3977 = vsel %vm2140, %v3974, %v3976
    %v3978 = vrot.slane %v3657, 1
    %v3979 = vsel %vm2140, %v3976, %v3978
    %v3980 = vrot.slane %v3658, 1
    %v3981 = vsel %vm2140, %v3978, %v3980
    %v3982 = vrot.slane %v3659, 1
    %v3983 = vsel %vm2140, %v3980, %v3982
    %v3984 = vrot.slane %v3660, 1
    %v3985 = vsel %vm2140, %v3982, %v3984
    %v3986 = vrot.slane %v3661, 1
    %v3987 = vsel %vm2140, %v3984, %v3986
    %v3988 = vrot.slane %v3662, 1
    %v3989 = vsel %vm2140, %v3986, %v3988
    %v3990 = vrot.slane %v3663, 1
    %v3991 = vsel %vm2140, %v3988, %v3990
    %v3992 = vrot.slane %v3664, 1
    %v3993 = vsel %vm2140, %v3990, %v3992
    %v3994 = vrot.slane %v3665, 1
    %v3995 = vsel %vm2140, %v3992, %v3994
    %v3996 = vrot.slane %v3666, 1
    %v3997 = vsel %vm2140, %v3994, %v3996
    %v3998 = vrot.slane %v3667, 1
    %v3999 = vsel %vm2140, %v3996, %v3998
    %v4000 = vrot.slane %v3668, 1
    %v4001 = vsel %vm2140, %v3998, %v4000
    %v4002 = vrot.slane %v3669, 1
    %v4003 = vsel %vm2140, %v4000, %v4002
    %v4004 = vrot.slane %v3670, 1
    %v4005 = vsel %vm2140, %v4002, %v4004
    %v4006 = vrot.slane %v3671, 1
    %v4007 = vsel %vm2140, %v4004, %v4006
    %v4008 = vrot.slane %v3672, 1
    %v4009 = vsel %vm2140, %v4006, %v4008
    %4010 = vrot.lane.b32.xlu0 %v3969, 64
    %v4011 = vpop.permute.xlu0 %4010
    %4012 = vrot.lane.b32.xlu0 %v3971, 64
    %v4013 = vpop.permute.xlu0 %4012
    %4014 = vrot.lane.b32.xlu0 %v3973, 64
    %v4015 = vpop.permute.xlu0 %4014
    %4016 = vrot.lane.b32.xlu0 %v3975, 64
    %v4017 = vpop.permute.xlu0 %4016
    %4018 = vrot.lane.b32.xlu0 %v3977, 64
    %v4019 = vpop.permute.xlu0 %4018
    %4020 = vrot.lane.b32.xlu0 %v3979, 64
    %v4021 = vpop.permute.xlu0 %4020
    %4022 = vrot.lane.b32.xlu0 %v3981, 64
    %v4023 = vpop.permute.xlu0 %4022
    %4024 = vrot.lane.b32.xlu0 %v3983, 64
    %v4025 = vpop.permute.xlu0 %4024
    %4026 = vrot.lane.b32.xlu0 %v3985, 64
    %v4027 = vpop.permute.xlu0 %4026
    %4028 = vrot.lane.b32.xlu0 %v3987, 64
    %v4029 = vpop.permute.xlu0 %4028
    %4030 = vrot.lane.b32.xlu0 %v3989, 64
    %v4031 = vpop.permute.xlu0 %4030
    %4032 = vrot.lane.b32.xlu0 %v3991, 64
    %v4033 = vpop.permute.xlu0 %4032
    %4034 = vrot.lane.b32.xlu0 %v3993, 64
    %v4035 = vpop.permute.xlu0 %4034
    %4036 = vrot.lane.b32.xlu0 %v3995, 64
    %v4037 = vpop.permute.xlu0 %4036
    %4038 = vrot.lane.b32.xlu0 %v3997, 64
    %v4039 = vpop.permute.xlu0 %4038
    %4040 = vrot.lane.b32.xlu0 %v3999, 64
    %v4041 = vpop.permute.xlu0 %4040
    %4042 = vrot.lane.b32.xlu0 %v4001, 64
    %v4043 = vpop.permute.xlu0 %4042
    %4044 = vrot.lane.b32.xlu0 %v4003, 64
    %v4045 = vpop.permute.xlu0 %4044
    %4046 = vrot.lane.b32.xlu0 %v4005, 64
    %v4047 = vpop.permute.xlu0 %4046
    %4048 = vrot.lane.b32.xlu0 %v4007, 64
    %v4049 = vpop.permute.xlu0 %4048
    %4050 = vrot.lane.b32.xlu0 %v4009, 64
    %v4051 = vpop.permute.xlu0 %4050
    %4052 = vrot.lane.b32.xlu0 %v4008, 64
    %v4053 = vpop.permute.xlu0 %4052
    %vm4076 = vcmask 1048071
    %4077 = vst.msk [vmem:[#allocation3 + $0x38] sm:$0x80] %vm4076, %v4011
    %4078 = vst.msk [vmem:[#allocation3 + $0x60] sm:$0xff] %vm3884, %v4013
    %4079 = vst.msk [vmem:[#allocation3 + $0x88] sm:$0xff] %vm3884, %v4015
    %4080 = vst.msk [vmem:[#allocation3 + $0xb0] sm:$0xff] %vm3884, %v4017
    %4081 = vst.msk [vmem:[#allocation3 + $0xd8] sm:$0xff] %vm3884, %v4019
    %4082 = vst.msk [vmem:[#allocation3 + $0x100] sm:$0xff] %vm3884, %v4021
    %4083 = vst.msk [vmem:[#allocation3 + $0x128] sm:$0xff] %vm3884, %v4023
    %4084 = vst.msk [vmem:[#allocation3 + $0x150] sm:$0xff] %vm3884, %v4025
    %4085 = vst.msk [vmem:[#allocation3 + $0x178] sm:$0xff] %vm3884, %v4027
    %4086 = vst.msk [vmem:[#allocation3 + $0x1a0] sm:$0xff] %vm3884, %v4029
    %4087 = vst.msk [vmem:[#allocation3 + $0x1c8] sm:$0xff] %vm3884, %v4031
    %4088 = vst.msk [vmem:[#allocation3 + $0x1f0] sm:$0xff] %vm3884, %v4033
    %4089 = vst.msk [vmem:[#allocation3 + $0x218] sm:$0xff] %vm3884, %v4035
    %4090 = vst.msk [vmem:[#allocation3 + $0x240] sm:$0xff] %vm3884, %v4037
    %4091 = vst.msk [vmem:[#allocation3 + $0x268] sm:$0xff] %vm3884, %v4039
    %4092 = vst.msk [vmem:[#allocation3 + $0x290] sm:$0xff] %vm3884, %v4041
    %4093 = vst.msk [vmem:[#allocation3 + $0x2b8] sm:$0xff] %vm3884, %v4043
    %4094 = vst.msk [vmem:[#allocation3 + $0x2e0] sm:$0xff] %vm3884, %v4045
    %4095 = vst.msk [vmem:[#allocation3 + $0x308] sm:$0xff] %vm3884, %v4047
    %4096 = vst.msk [vmem:[#allocation3 + $0x330] sm:$0xff] %vm3884, %v4049
    %4097 = vst.msk [vmem:[#allocation3 + $0x358] sm:$0xff] %vm3884, %v4051
    %vm4098 = vcmask 1040896
    %4099 = vst.msk [vmem:[#allocation3 + $0x380] sm:$0x1] %vm4098, %v4053
    %4100 = vst.msk [vmem:[#allocation3 + $0x40] sm:$0xff] %vm71, %v3652
    %4101 = vst.msk [vmem:[#allocation3 + $0x68] sm:$0xff] %vm71, %v3653
    %4102 = vst.msk [vmem:[#allocation3 + $0x90] sm:$0xff] %vm71, %v3654
    %4103 = vst.msk [vmem:[#allocation3 + $0xb8] sm:$0xff] %vm71, %v3655
    %4104 = vst.msk [vmem:[#allocation3 + $0xe0] sm:$0xff] %vm71, %v3656
    %4105 = vst.msk [vmem:[#allocation3 + $0x108] sm:$0xff] %vm71, %v3657
    %4106 = vst.msk [vmem:[#allocation3 + $0x130] sm:$0xff] %vm71, %v3658
    %4107 = vst.msk [vmem:[#allocation3 + $0x158] sm:$0xff] %vm71, %v3659
    %4108 = vst.msk [vmem:[#allocation3 + $0x180] sm:$0xff] %vm71, %v3660
    %4109 = vst.msk [vmem:[#allocation3 + $0x1a8] sm:$0xff] %vm71, %v3661
    %4110 = vst.msk [vmem:[#allocation3 + $0x1d0] sm:$0xff] %vm71, %v3662
    %4111 = vst.msk [vmem:[#allocation3 + $0x1f8] sm:$0xff] %vm71, %v3663
    %4112 = vst.msk [vmem:[#allocation3 + $0x220] sm:$0xff] %vm71, %v3664
    %4113 = vst.msk [vmem:[#allocation3 + $0x248] sm:$0xff] %vm71, %v3665
    %4114 = vst.msk [vmem:[#allocation3 + $0x270] sm:$0xff] %vm71, %v3666
    %4115 = vst.msk [vmem:[#allocation3 + $0x298] sm:$0xff] %vm71, %v3667
    %4116 = vst.msk [vmem:[#allocation3 + $0x2c0] sm:$0xff] %vm71, %v3668
    %4117 = vst.msk [vmem:[#allocation3 + $0x2e8] sm:$0xff] %vm71, %v3669
    %4118 = vst.msk [vmem:[#allocation3 + $0x310] sm:$0xff] %vm71, %v3670
    %4119 = vst.msk [vmem:[#allocation3 + $0x338] sm:$0xff] %vm71, %v3671
    %4120 = vst.msk [vmem:[#allocation3 + $0x360] sm:$0x3] %vm93, %v3672
    %4121 = vst.msk [vmem:[#allocation3 + $0x18] sm:$0x80] %vm4076, %v4011
    %4122 = vst.msk [vmem:[#allocation3 + $0x40] sm:$0xff] %vm3884, %v4013
    %4123 = vst.msk [vmem:[#allocation3 + $0x68] sm:$0xff] %vm3884, %v4015
    %4124 = vst.msk [vmem:[#allocation3 + $0x90] sm:$0xff] %vm3884, %v4017
    %4125 = vst.msk [vmem:[#allocation3 + $0xb8] sm:$0xff] %vm3884, %v4019
    %4126 = vst.msk [vmem:[#allocation3 + $0xe0] sm:$0xff] %vm3884, %v4021
    %4127 = vst.msk [vmem:[#allocation3 + $0x108] sm:$0xff] %vm3884, %v4023
    %4128 = vst.msk [vmem:[#allocation3 + $0x130] sm:$0xff] %vm3884, %v4025
    %4129 = vst.msk [vmem:[#allocation3 + $0x158] sm:$0xff] %vm3884, %v4027
    %4130 = vst.msk [vmem:[#allocation3 + $0x180] sm:$0xff] %vm3884, %v4029
    %4131 = vst.msk [vmem:[#allocation3 + $0x1a8] sm:$0xff] %vm3884, %v4031
    %4132 = vst.msk [vmem:[#allocation3 + $0x1d0] sm:$0xff] %vm3884, %v4033
    %4133 = vst.msk [vmem:[#allocation3 + $0x1f8] sm:$0xff] %vm3884, %v4035
    %4134 = vst.msk [vmem:[#allocation3 + $0x220] sm:$0xff] %vm3884, %v4037
    %4135 = vst.msk [vmem:[#allocation3 + $0x248] sm:$0xff] %vm3884, %v4039
    %4136 = vst.msk [vmem:[#allocation3 + $0x270] sm:$0xff] %vm3884, %v4041
    %4137 = vst.msk [vmem:[#allocation3 + $0x298] sm:$0xff] %vm3884, %v4043
    %4138 = vst.msk [vmem:[#allocation3 + $0x2c0] sm:$0xff] %vm3884, %v4045
    %4139 = vst.msk [vmem:[#allocation3 + $0x2e8] sm:$0xff] %vm3884, %v4047
    %4140 = vst.msk [vmem:[#allocation3 + $0x310] sm:$0xff] %vm3884, %v4049
    %4141 = vst.msk [vmem:[#allocation3 + $0x338] sm:$0xff] %vm3884, %v4051
    %4142 = vst.msk [vmem:[#allocation3 + $0x360] sm:$0x1] %vm4098, %v4053
    %v4143 = vrot.slane %v3652, 2
    %v4144 = vrot.slane %v3653, 2
    %v4145 = vsel %vm2263, %v4143, %v4144
    %v4146 = vrot.slane %v3654, 2
    %v4147 = vsel %vm2263, %v4144, %v4146
    %v4148 = vrot.slane %v3655, 2
    %v4149 = vsel %vm2263, %v4146, %v4148
    %v4150 = vrot.slane %v3656, 2
    %v4151 = vsel %vm2263, %v4148, %v4150
    %v4152 = vrot.slane %v3657, 2
    %v4153 = vsel %vm2263, %v4150, %v4152
    %v4154 = vrot.slane %v3658, 2
    %v4155 = vsel %vm2263, %v4152, %v4154
    %v4156 = vrot.slane %v3659, 2
    %v4157 = vsel %vm2263, %v4154, %v4156
    %v4158 = vrot.slane %v3660, 2
    %v4159 = vsel %vm2263, %v4156, %v4158
    %v4160 = vrot.slane %v3661, 2
    %v4161 = vsel %vm2263, %v4158, %v4160
    %v4162 = vrot.slane %v3662, 2
    %v4163 = vsel %vm2263, %v4160, %v4162
    %v4164 = vrot.slane %v3663, 2
    %v4165 = vsel %vm2263, %v4162, %v4164
    %v4166 = vrot.slane %v3664, 2
    %v4167 = vsel %vm2263, %v4164, %v4166
    %v4168 = vrot.slane %v3665, 2
    %v4169 = vsel %vm2263, %v4166, %v4168
    %v4170 = vrot.slane %v3666, 2
    %v4171 = vsel %vm2263, %v4168, %v4170
    %v4172 = vrot.slane %v3667, 2
    %v4173 = vsel %vm2263, %v4170, %v4172
    %v4174 = vrot.slane %v3668, 2
    %v4175 = vsel %vm2263, %v4172, %v4174
    %v4176 = vrot.slane %v3669, 2
    %v4177 = vsel %vm2263, %v4174, %v4176
    %v4178 = vrot.slane %v3670, 2
    %v4179 = vsel %vm2263, %v4176, %v4178
    %v4180 = vrot.slane %v3671, 2
    %v4181 = vsel %vm2263, %v4178, %v4180
    %v4182 = vrot.slane %v3672, 2
    %v4183 = vsel %vm2263, %v4180, %v4182
    %vm4205 = vcmask 523270
    %4206 = vst.msk [vmem:[#allocation3 + $0x20] sm:$0xc0] %vm4205, %v4143
    %4207 = vst.msk [vmem:[#allocation3 + $0x48] sm:$0xff] %vm71, %v4145
    %4208 = vst.msk [vmem:[#allocation3 + $0x70] sm:$0xff] %vm71, %v4147
    %4209 = vst.msk [vmem:[#allocation3 + $0x98] sm:$0xff] %vm71, %v4149
    %4210 = vst.msk [vmem:[#allocation3 + $0xc0] sm:$0xff] %vm71, %v4151
    %4211 = vst.msk [vmem:[#allocation3 + $0xe8] sm:$0xff] %vm71, %v4153
    %4212 = vst.msk [vmem:[#allocation3 + $0x110] sm:$0xff] %vm71, %v4155
    %4213 = vst.msk [vmem:[#allocation3 + $0x138] sm:$0xff] %vm71, %v4157
    %4214 = vst.msk [vmem:[#allocation3 + $0x160] sm:$0xff] %vm71, %v4159
    %4215 = vst.msk [vmem:[#allocation3 + $0x188] sm:$0xff] %vm71, %v4161
    %4216 = vst.msk [vmem:[#allocation3 + $0x1b0] sm:$0xff] %vm71, %v4163
    %4217 = vst.msk [vmem:[#allocation3 + $0x1d8] sm:$0xff] %vm71, %v4165
    %4218 = vst.msk [vmem:[#allocation3 + $0x200] sm:$0xff] %vm71, %v4167
    %4219 = vst.msk [vmem:[#allocation3 + $0x228] sm:$0xff] %vm71, %v4169
    %4220 = vst.msk [vmem:[#allocation3 + $0x250] sm:$0xff] %vm71, %v4171
    %4221 = vst.msk [vmem:[#allocation3 + $0x278] sm:$0xff] %vm71, %v4173
    %4222 = vst.msk [vmem:[#allocation3 + $0x2a0] sm:$0xff] %vm71, %v4175
    %4223 = vst.msk [vmem:[#allocation3 + $0x2c8] sm:$0xff] %vm71, %v4177
    %4224 = vst.msk [vmem:[#allocation3 + $0x2f0] sm:$0xff] %vm71, %v4179
    %4225 = vst.msk [vmem:[#allocation3 + $0x318] sm:$0xff] %vm71, %v4181
    %4226 = vst.msk [vmem:[#allocation3 + $0x340] sm:$0xff] %vm71, %v4183
    %v4227 = vld [vmem:[#allocation3 + $0x50] sm:$0xff]
    %v4228 = vld [vmem:[#allocation3 + $0x58] sm:$0xff]
    %v4229 = vld [vmem:[#allocation3 + $0x60] sm:$0xff]
    %v4230 = vld [vmem:[#allocation3 + $0x68] sm:$0xff]
    %v4231 = vld [vmem:[#allocation3 + $0x70] sm:$0xff]
    %v4232 = vld [vmem:[#allocation3 + $0x78] sm:$0xff]
    %v4233 = vld [vmem:[#allocation3 + $0x80] sm:$0xff]
    %v4234 = vld [vmem:[#allocation3 + $0x88] sm:$0xff]
    %v4235 = vld [vmem:[#allocation3 + $0x90] sm:$0xff]
    %v4236 = vld [vmem:[#allocation3 + $0x98] sm:$0xff]
    %v4237 = vld [vmem:[#allocation3 + $0xa0] sm:$0xff]
    %v4238 = vld [vmem:[#allocation3 + $0xa8] sm:$0xff]
    %v4239 = vld [vmem:[#allocation3 + $0xb0] sm:$0xff]
    %v4240 = vld [vmem:[#allocation3 + $0xb8] sm:$0xff]
    %v4241 = vld [vmem:[#allocation3 + $0xc0] sm:$0xff]
    %v4242 = vld [vmem:[#allocation3 + $0xc8] sm:$0xff]
    %v4243 = vld [vmem:[#allocation3 + $0xd0] sm:$0xff]
    %v4244 = vld [vmem:[#allocation3 + $0xd8] sm:$0xff]
    %v4245 = vld [vmem:[#allocation3 + $0xe0] sm:$0xff]
    %v4246 = vld [vmem:[#allocation3 + $0xe8] sm:$0xff]
    %v4247 = vld [vmem:[#allocation3 + $0xf0] sm:$0xff]
    %v4248 = vld [vmem:[#allocation3 + $0xf8] sm:$0xff]
    %v4249 = vld [vmem:[#allocation3 + $0x100] sm:$0xff]
    %v4250 = vld [vmem:[#allocation3 + $0x108] sm:$0xff]
    %v4251 = vld [vmem:[#allocation3 + $0x110] sm:$0xff]
    %v4252 = vld [vmem:[#allocation3 + $0x118] sm:$0xff]
    %v4253 = vld [vmem:[#allocation3 + $0x120] sm:$0xff]
    %v4254 = vld [vmem:[#allocation3 + $0x128] sm:$0xff]
    %v4255 = vld [vmem:[#allocation3 + $0x130] sm:$0xff]
    %v4256 = vld [vmem:[#allocation3 + $0x138] sm:$0xff]
    %v4257 = vld [vmem:[#allocation3 + $0x140] sm:$0xff]
    %v4258 = vld [vmem:[#allocation3 + $0x148] sm:$0xff]
    %v4259 = vld [vmem:[#allocation3 + $0x150] sm:$0xff]
    %v4260 = vld [vmem:[#allocation3 + $0x158] sm:$0xff]
    %v4261 = vld [vmem:[#allocation3 + $0x160] sm:$0xff]
    %v4262 = vld [vmem:[#allocation3 + $0x168] sm:$0xff]
    %v4263 = vld [vmem:[#allocation3 + $0x170] sm:$0xff]
    %v4264 = vld [vmem:[#allocation3 + $0x178] sm:$0xff]
    %v4265 = vld [vmem:[#allocation3 + $0x180] sm:$0xff]
    %v4266 = vld [vmem:[#allocation3 + $0x188] sm:$0xff]
    %v4267 = vld [vmem:[#allocation3 + $0x190] sm:$0xff]
    %v4268 = vld [vmem:[#allocation3 + $0x198] sm:$0xff]
    %v4269 = vld [vmem:[#allocation3 + $0x1a0] sm:$0xff]
    %v4270 = vld [vmem:[#allocation3 + $0x1a8] sm:$0xff]
    %v4271 = vld [vmem:[#allocation3 + $0x1b0] sm:$0xff]
    %v4272 = vld [vmem:[#allocation3 + $0x1b8] sm:$0xff]
    %v4273 = vld [vmem:[#allocation3 + $0x1c0] sm:$0xff]
    %v4274 = vld [vmem:[#allocation3 + $0x1c8] sm:$0xff]
    %v4275 = vld [vmem:[#allocation3 + $0x1d0] sm:$0xff]
    %v4276 = vld [vmem:[#allocation3 + $0x1d8] sm:$0xff]
    %v4277 = vld [vmem:[#allocation3 + $0x1e0] sm:$0xff]
    %v4278 = vld [vmem:[#allocation3 + $0x1e8] sm:$0xff]
    %v4279 = vld [vmem:[#allocation3 + $0x1f0] sm:$0xff]
    %v4280 = vld [vmem:[#allocation3 + $0x1f8] sm:$0xff]
    %v4281 = vld [vmem:[#allocation3 + $0x200] sm:$0xff]
    %v4282 = vld [vmem:[#allocation3 + $0x208] sm:$0xff]
    %v4283 = vld [vmem:[#allocation3 + $0x210] sm:$0xff]
    %v4284 = vld [vmem:[#allocation3 + $0x218] sm:$0xff]
    %v4285 = vld [vmem:[#allocation3 + $0x220] sm:$0xff]
    %v4286 = vld [vmem:[#allocation3 + $0x228] sm:$0xff]
    %v4287 = vld [vmem:[#allocation3 + $0x230] sm:$0xff]
    %v4288 = vld [vmem:[#allocation3 + $0x238] sm:$0xff]
    %v4289 = vld [vmem:[#allocation3 + $0x240] sm:$0xff]
    %v4290 = vld [vmem:[#allocation3 + $0x248] sm:$0xff]
    %v4291 = vld [vmem:[#allocation3 + $0x250] sm:$0xff]
    %v4292 = vld [vmem:[#allocation3 + $0x258] sm:$0xff]
    %v4293 = vld [vmem:[#allocation3 + $0x260] sm:$0xff]
    %v4294 = vld [vmem:[#allocation3 + $0x268] sm:$0xff]
    %v4295 = vld [vmem:[#allocation3 + $0x270] sm:$0xff]
    %v4296 = vld [vmem:[#allocation3 + $0x278] sm:$0xff]
    %v4297 = vld [vmem:[#allocation3 + $0x280] sm:$0xff]
    %v4298 = vld [vmem:[#allocation3 + $0x288] sm:$0xff]
    %v4299 = vld [vmem:[#allocation3 + $0x290] sm:$0xff]
    %v4300 = vld [vmem:[#allocation3 + $0x298] sm:$0xff]
    %v4301 = vld [vmem:[#allocation3 + $0x2a0] sm:$0xff]
    %v4302 = vld [vmem:[#allocation3 + $0x2a8] sm:$0xff]
    %v4303 = vld [vmem:[#allocation3 + $0x2b0] sm:$0xff]
    %v4304 = vld [vmem:[#allocation3 + $0x2b8] sm:$0xff]
    %v4305 = vld [vmem:[#allocation3 + $0x2c0] sm:$0xff]
    %v4306 = vld [vmem:[#allocation3 + $0x2c8] sm:$0xff]
    %v4307 = vld [vmem:[#allocation3 + $0x2d0] sm:$0xff]
    %v4308 = vld [vmem:[#allocation3 + $0x2d8] sm:$0xff]
    %v4309 = vld [vmem:[#allocation3 + $0x2e0] sm:$0xff]
    %v4310 = vld [vmem:[#allocation3 + $0x2e8] sm:$0xff]
    %v4311 = vld [vmem:[#allocation3 + $0x2f0] sm:$0xff]
    %v4312 = vld [vmem:[#allocation3 + $0x2f8] sm:$0xff]
    %v4313 = vld [vmem:[#allocation3 + $0x300] sm:$0xff]
    %v4314 = vld [vmem:[#allocation3 + $0x308] sm:$0xff]
    %v4315 = vld [vmem:[#allocation3 + $0x310] sm:$0xff]
    %v4316 = vld [vmem:[#allocation3 + $0x318] sm:$0xff]
    %v4317 = vld [vmem:[#allocation3 + $0x320] sm:$0xff]
    %v4318 = vld [vmem:[#allocation3 + $0x328] sm:$0xff]
    %v4319 = vld [vmem:[#allocation3 + $0x330] sm:$0xff]
    %v4320 = vld [vmem:[#allocation3 + $0x338] sm:$0xff]
    %v4321 = vld [vmem:[#allocation3 + $0x340] sm:$0xff]
    %v4322 = vld [vmem:[#allocation3 + $0x348] sm:$0xff]
    %v4323 = vld [vmem:[#allocation3 + $0x350] sm:$0xff]
    %v4324 = vld [vmem:[#allocation3 + $0x358] sm:$0xff]
    %v4325 = vld [vmem:[#allocation3 + $0x360] sm:$0xff]
    %v4326 = vld [vmem:[#allocation3 + $0x368] sm:$0xff]
    %v4327 = vld [vmem:[#allocation3 + $0x370] sm:$0x3]
    %v4328 = vld [vmem:[#allocation3 + $0x378] sm:$0x3]
    %v4329 = vld [vmem:[#allocation3 + $0x380] sm:$0x3]
    %v4330 = vld [vmem:[#allocation3 + $0x388] sm:$0x3]
    %v4331 = vld [vmem:[#allocation3 + $0x390] sm:$0x3]
    %v4332 = vpack.c.bf16 %v4232, %v4227
    %v4333 = vpack.c.bf16 %v4233, %v4228
    %v4334 = vpack.c.bf16 %v4234, %v4229
    %v4335 = vpack.c.bf16 %v4235, %v4230
    %v4336 = vpack.c.bf16 %v4236, %v4231
    %v4337 = vpack.c.bf16 %v4242, %v4237
    %v4338 = vpack.c.bf16 %v4243, %v4238
    %v4339 = vpack.c.bf16 %v4244, %v4239
    %v4340 = vpack.c.bf16 %v4245, %v4240
    %v4341 = vpack.c.bf16 %v4246, %v4241
    %v4342 = vpack.c.bf16 %v4252, %v4247
    %v4343 = vpack.c.bf16 %v4253, %v4248
    %v4344 = vpack.c.bf16 %v4254, %v4249
    %v4345 = vpack.c.bf16 %v4255, %v4250
    %v4346 = vpack.c.bf16 %v4256, %v4251
    %v4347 = vpack.c.bf16 %v4262, %v4257
    %v4348 = vpack.c.bf16 %v4263, %v4258
    %v4349 = vpack.c.bf16 %v4264, %v4259
    %v4350 = vpack.c.bf16 %v4265, %v4260
    %v4351 = vpack.c.bf16 %v4266, %v4261
    %v4352 = vpack.c.bf16 %v4272, %v4267
    %v4353 = vpack.c.bf16 %v4273, %v4268
    %v4354 = vpack.c.bf16 %v4274, %v4269
    %v4355 = vpack.c.bf16 %v4275, %v4270
    %v4356 = vpack.c.bf16 %v4276, %v4271
    %v4357 = vpack.c.bf16 %v4282, %v4277
    %v4358 = vpack.c.bf16 %v4283, %v4278
    %v4359 = vpack.c.bf16 %v4284, %v4279
    %v4360 = vpack.c.bf16 %v4285, %v4280
    %v4361 = vpack.c.bf16 %v4286, %v4281
    %v4362 = vpack.c.bf16 %v4292, %v4287
    %v4363 = vpack.c.bf16 %v4293, %v4288
    %v4364 = vpack.c.bf16 %v4294, %v4289
    %v4365 = vpack.c.bf16 %v4295, %v4290
    %v4366 = vpack.c.bf16 %v4296, %v4291
    %v4367 = vpack.c.bf16 %v4302, %v4297
    %v4368 = vpack.c.bf16 %v4303, %v4298
    %v4369 = vpack.c.bf16 %v4304, %v4299
    %v4370 = vpack.c.bf16 %v4305, %v4300
    %v4371 = vpack.c.bf16 %v4306, %v4301
    %v4372 = vpack.c.bf16 %v4312, %v4307
    %v4373 = vpack.c.bf16 %v4313, %v4308
    %v4374 = vpack.c.bf16 %v4314, %v4309
    %v4375 = vpack.c.bf16 %v4315, %v4310
    %v4376 = vpack.c.bf16 %v4316, %v4311
    %v4377 = vpack.c.bf16 %v4322, %v4317
    %v4378 = vpack.c.bf16 %v4323, %v4318
    %v4379 = vpack.c.bf16 %v4324, %v4319
    %v4380 = vpack.c.bf16 %v4325, %v4320
    %v4381 = vpack.c.bf16 %v4326, %v4321
    %v4382 = vpack.c.bf16 %v4327, %v4327
    %v4383 = vpack.c.bf16 %v4328, %v4328
    %v4384 = vpack.c.bf16 %v4329, %v4329
    %v4385 = vpack.c.bf16 %v4330, %v4330
    %v4386 = vpack.c.bf16 %v4331, %v4331
    %v4387 = vld [vmem:[%s7] sm:$0xf]
    %v4388 = vld [vmem:[%s7 + $0x4] sm:$0xf]
    %v4389 = vld [vmem:[%s7 + $0x8] sm:$0xf]
    %v4390 = vld [vmem:[%s7 + $0xc] sm:$0xf]
    %v4391 = vld [vmem:[%s7 + $0x10] sm:$0xf]
    %v4392 = vld [vmem:[%s7 + $0x14] sm:$0xf]
    %v4393 = vld [vmem:[%s7 + $0x18] sm:$0xf]
    %v4394 = vld [vmem:[%s7 + $0x1c] sm:$0xf]
    %v4395 = vld [vmem:[%s7 + $0x20] sm:$0xf]
    %v4396 = vld [vmem:[%s7 + $0x24] sm:$0xf]
    %v4397 = vld [vmem:[%s7 + $0x28] sm:$0xf]
    %v4398 = vld [vmem:[%s7 + $0x2c] sm:$0xf]
    %v4399 = vld [vmem:[%s7 + $0x30] sm:$0xf]
    %v4400 = vld [vmem:[%s7 + $0x34] sm:$0xf]
    %v4401 = vld [vmem:[%s7 + $0x38] sm:$0xf]
    %v4402 = vld [vmem:[%s7 + $0x3c] sm:$0xf]
    %v4403 = vld [vmem:[%s7 + $0x40] sm:$0xf]
    %v4404 = vld [vmem:[%s7 + $0x44] sm:$0xf]
    %v4405 = vld [vmem:[%s7 + $0x48] sm:$0xf]
    %v4406 = vld [vmem:[%s7 + $0x4c] sm:$0xf]
    %v4407 = vld [vmem:[%s7 + $0x50] sm:$0xf]
    %v4408 = vld [vmem:[%s7 + $0x54] sm:$0xf]
    %v4409 = vld [vmem:[%s7 + $0x58] sm:$0xf]
    %v4410 = vld [vmem:[%s7 + $0x5c] sm:$0xf]
    %v4411 = vld [vmem:[%s7 + $0x60] sm:$0xf]
    %v4412 = vld [vmem:[%s7 + $0x64] sm:$0xf]
    %v4413 = vld [vmem:[%s7 + $0x68] sm:$0xf]
    %v4414 = vld [vmem:[%s7 + $0x6c] sm:$0xf]
    %v4415 = vld [vmem:[%s7 + $0x70] sm:$0xf]
    %v4416 = vld [vmem:[%s7 + $0x74] sm:$0xf]
    %v4417 = vld [vmem:[%s7 + $0x78] sm:$0xf]
    %v4418 = vld [vmem:[%s7 + $0x7c] sm:$0xf]
    %v4419 = vld [vmem:[%s7 + $0x80] sm:$0xf]
    %v4420 = vld [vmem:[%s7 + $0x84] sm:$0xf]
    %v4421 = vld [vmem:[%s7 + $0x88] sm:$0xf]
    %v4422 = vld [vmem:[%s7 + $0x8c] sm:$0xf]
    %v4423 = vld [vmem:[%s7 + $0x90] sm:$0xf]
    %v4424 = vld [vmem:[%s7 + $0x94] sm:$0xf]
    %v4425 = vld [vmem:[%s7 + $0x98] sm:$0xf]
    %v4426 = vld [vmem:[%s7 + $0x9c] sm:$0xf]
    %v4427 = vld [vmem:[%s7 + $0xa0] sm:$0xf]
    %v4428 = vld [vmem:[%s7 + $0xa4] sm:$0xf]
    %v4429 = vld [vmem:[%s7 + $0xa8] sm:$0xf]
    %v4430 = vld [vmem:[%s7 + $0xac] sm:$0xf]
    %v4431 = vld [vmem:[%s7 + $0xb0] sm:$0xf]
    %v4432 = vld [vmem:[%s7 + $0xb4] sm:$0xf]
    %v4433 = vld [vmem:[%s7 + $0xb8] sm:$0xf]
    %v4434 = vld [vmem:[%s7 + $0xbc] sm:$0xf]
    %v4435 = vld [vmem:[%s7 + $0xc0] sm:$0xf]
    %v4436 = vld [vmem:[%s7 + $0xc4] sm:$0xf]
    %v4437 = vld [vmem:[%s7 + $0xc8] sm:$0xf]
    %v4438 = vld [vmem:[%s7 + $0xcc] sm:$0xf]
    %v4439 = vld [vmem:[%s7 + $0xd0] sm:$0xf]
    %v4440 = vld [vmem:[%s7 + $0xd4] sm:$0xf]
    %v4441 = vld [vmem:[%s7 + $0xd8] sm:$0xf]
    %v4442 = vld [vmem:[%s7 + $0xdc] sm:$0xf]
    %v4443 = vld [vmem:[%s7 + $0xe0] sm:$0xf]
    %v4444 = vld [vmem:[%s7 + $0xe4] sm:$0xf]
    %v4445 = vld [vmem:[%s7 + $0xe8] sm:$0xf]
    %v4446 = vld [vmem:[%s7 + $0xec] sm:$0xf]
    %v4447 = vld [vmem:[%s7 + $0xf0] sm:$0xf]
    %v4448 = vld [vmem:[%s7 + $0xf4] sm:$0xf]
    %v4449 = vld [vmem:[%s7 + $0xf8] sm:$0xf]
    %v4450 = vld [vmem:[%s7 + $0xfc] sm:$0xf]
    %v4451 = vld [vmem:[%s7 + $0x100] sm:$0xf]
    %v4452 = vld [vmem:[%s7 + $0x104] sm:$0xf]
    %v4453 = vld [vmem:[%s7 + $0x108] sm:$0xf]
    %v4454 = vld [vmem:[%s7 + $0x10c] sm:$0xf]
    %v4455 = vld [vmem:[%s7 + $0x110] sm:$0xf]
    %v4456 = vld [vmem:[%s7 + $0x114] sm:$0xf]
    %v4457 = vld [vmem:[%s7 + $0x118] sm:$0xf]
    %v4458 = vld [vmem:[%s7 + $0x11c] sm:$0xf]
    %v4531 = vunpack.c.l.b16 %v4387
    %v4532 = vunpack.c.l.b16 %v4388
    %v4533 = vunpack.c.l.b16 %v4389
    %v4534 = vunpack.c.l.b16 %v4390
    %v4535 = vunpack.c.l.b16 %v4391
    %v4536 = vunpack.c.l.b16 %v4392
    %v4537 = vunpack.c.l.b16 %v4393
    %v4538 = vunpack.c.l.b16 %v4394
    %v4539 = vunpack.c.l.b16 %v4395
    %v4540 = vunpack.c.l.b16 %v4396
    %v4541 = vunpack.c.l.b16 %v4397
    %v4542 = vunpack.c.l.b16 %v4398
    %v4543 = vunpack.c.l.b16 %v4399
    %v4544 = vunpack.c.l.b16 %v4400
    %v4545 = vunpack.c.l.b16 %v4401
    %v4546 = vunpack.c.l.b16 %v4402
    %v4547 = vunpack.c.l.b16 %v4403
    %v4548 = vunpack.c.l.b16 %v4404
    %v4549 = vunpack.c.l.b16 %v4405
    %v4550 = vunpack.c.l.b16 %v4406
    %v4551 = vunpack.c.l.b16 %v4407
    %v4552 = vunpack.c.l.b16 %v4408
    %v4553 = vunpack.c.l.b16 %v4409
    %v4554 = vunpack.c.l.b16 %v4410
    %v4555 = vunpack.c.l.b16 %v4411
    %v4556 = vunpack.c.l.b16 %v4412
    %v4557 = vunpack.c.l.b16 %v4413
    %v4558 = vunpack.c.l.b16 %v4414
    %v4559 = vunpack.c.l.b16 %v4415
    %v4560 = vunpack.c.l.b16 %v4416
    %v4561 = vunpack.c.l.b16 %v4417
    %v4562 = vunpack.c.l.b16 %v4418
    %v4563 = vunpack.c.l.b16 %v4419
    %v4564 = vunpack.c.l.b16 %v4420
    %v4565 = vunpack.c.l.b16 %v4421
    %v4566 = vunpack.c.l.b16 %v4422
    %v4567 = vunpack.c.l.b16 %v4423
    %v4568 = vunpack.c.l.b16 %v4424
    %v4569 = vunpack.c.l.b16 %v4425
    %v4570 = vunpack.c.l.b16 %v4426
    %v4571 = vunpack.c.l.b16 %v4427
    %v4572 = vunpack.c.l.b16 %v4428
    %v4573 = vunpack.c.l.b16 %v4429
    %v4574 = vunpack.c.l.b16 %v4430
    %v4575 = vunpack.c.l.b16 %v4431
    %v4576 = vunpack.c.l.b16 %v4432
    %v4577 = vunpack.c.l.b16 %v4433
    %v4578 = vunpack.c.l.b16 %v4434
    %v4579 = vunpack.c.l.b16 %v4435
    %v4580 = vunpack.c.l.b16 %v4436
    %v4581 = vunpack.c.l.b16 %v4437
    %v4582 = vunpack.c.l.b16 %v4438
    %v4583 = vunpack.c.l.b16 %v4439
    %v4584 = vunpack.c.l.b16 %v4440
    %v4585 = vunpack.c.l.b16 %v4441
    %v4586 = vunpack.c.l.b16 %v4442
    %v4587 = vunpack.c.l.b16 %v4443
    %v4588 = vunpack.c.l.b16 %v4444
    %v4589 = vunpack.c.l.b16 %v4445
    %v4590 = vunpack.c.l.b16 %v4446
    %v4591 = vunpack.c.l.b16 %v4447
    %v4592 = vunpack.c.l.b16 %v4448
    %v4593 = vunpack.c.l.b16 %v4449
    %v4594 = vunpack.c.l.b16 %v4450
    %v4595 = vunpack.c.l.b16 %v4451
    %v4596 = vunpack.c.l.b16 %v4452
    %v4597 = vunpack.c.l.b16 %v4453
    %v4598 = vunpack.c.l.b16 %v4454
    %v4599 = vunpack.c.l.b16 %v4455
    %v4600 = vunpack.c.l.b16 %v4456
    %v4601 = vunpack.c.l.b16 %v4457
    %v4602 = vunpack.c.l.b16 %v4458
    %v4603 = vpack.c.b16 %v4532, %v4531
    %v4604 = vpack.c.b16 %v4534, %v4533
    %v4605 = vpack.c.b16 %v4536, %v4535
    %v4606 = vpack.c.b16 %v4538, %v4537
    %v4607 = vpack.c.b16 %v4540, %v4539
    %v4608 = vpack.c.b16 %v4542, %v4541
    %v4609 = vpack.c.b16 %v4544, %v4543
    %v4610 = vpack.c.b16 %v4546, %v4545
    %v4611 = vpack.c.b16 %v4548, %v4547
    %v4612 = vpack.c.b16 %v4550, %v4549
    %v4613 = vpack.c.b16 %v4552, %v4551
    %v4614 = vpack.c.b16 %v4554, %v4553
    %v4615 = vpack.c.b16 %v4556, %v4555
    %v4616 = vpack.c.b16 %v4558, %v4557
    %v4617 = vpack.c.b16 %v4560, %v4559
    %v4618 = vpack.c.b16 %v4562, %v4561
    %v4619 = vpack.c.b16 %v4564, %v4563
    %v4620 = vpack.c.b16 %v4566, %v4565
    %v4621 = vpack.c.b16 %v4568, %v4567
    %v4622 = vpack.c.b16 %v4570, %v4569
    %v4623 = vpack.c.b16 %v4572, %v4571
    %v4624 = vpack.c.b16 %v4574, %v4573
    %v4625 = vpack.c.b16 %v4576, %v4575
    %v4626 = vpack.c.b16 %v4578, %v4577
    %v4627 = vpack.c.b16 %v4580, %v4579
    %v4628 = vpack.c.b16 %v4582, %v4581
    %v4629 = vpack.c.b16 %v4584, %v4583
    %v4630 = vpack.c.b16 %v4586, %v4585
    %v4631 = vpack.c.b16 %v4588, %v4587
    %v4632 = vpack.c.b16 %v4590, %v4589
    %v4633 = vpack.c.b16 %v4592, %v4591
    %v4634 = vpack.c.b16 %v4594, %v4593
    %v4635 = vpack.c.b16 %v4596, %v4595
    %v4636 = vpack.c.b16 %v4598, %v4597
    %v4637 = vpack.c.b16 %v4600, %v4599
    %v4638 = vpack.c.b16 %v4602, %v4601
    %v4676 = vsel %vm71, %v4336, 0
    %v4679 = vsel %vm71, %v4341, 0
    %v4682 = vsel %vm71, %v4346, 0
    %v4685 = vsel %vm71, %v4351, 0
    %v4688 = vsel %vm71, %v4356, 0
    %v4691 = vsel %vm71, %v4361, 0
    %v4694 = vsel %vm71, %v4366, 0
    %v4697 = vsel %vm71, %v4371, 0
    %v4700 = vsel %vm71, %v4376, 0
    %v4703 = vsel %vm71, %v4381, 0
    %v4706 = vsel %vm71, %v4386, 0
    %4708 = vmatpush.bf16.msra.mxu0 %v4610
    %4709 = vmatpush.bf16.msra.mxu0 %v4609
    %4710 = vmatpush.bf16.msra.mxu0 %v4608
    %4711 = vmatpush.bf16.msra.mxu0 %v4607
    %4712 = vmatpush.bf16.msra.mxu0 %v4606
    %4713 = vmatpush.bf16.msra.mxu0 %v4605
    %4714 = vmatpush.bf16.msra.mxu0 %v4604
    %4715 = vmatpush.bf16.msra.mxu0 %v4603
    %4716 = vmatmul.bf16.gmra.mxu0 %v4332
    %v4717 = vpop.f32.mrf.mxu0
    %v4718 = vadd.f32 0.0, %v4717
    %v4719 = vpop.f32.mrf.mxu0
    %v4720 = vadd.f32 0.0, %v4719
    %4721 = vmatmul.bf16.gmra.mxu0 %v4337
    %v4722 = vpop.f32.mrf.mxu0
    %v4723 = vadd.f32 0.0, %v4722
    %v4724 = vpop.f32.mrf.mxu0
    %v4725 = vadd.f32 0.0, %v4724
    %4726 = vmatmul.bf16.gmra.mxu0 %v4342
    %v4727 = vpop.f32.mrf.mxu0
    %v4728 = vadd.f32 0.0, %v4727
    %v4729 = vpop.f32.mrf.mxu0
    %v4730 = vadd.f32 0.0, %v4729
    %4731 = vmatmul.bf16.gmra.mxu0 %v4347
    %v4732 = vpop.f32.mrf.mxu0
    %v4733 = vadd.f32 0.0, %v4732
    %v4734 = vpop.f32.mrf.mxu0
    %v4735 = vadd.f32 0.0, %v4734
    %4736 = vmatmul.bf16.gmra.mxu0 %v4352
    %v4737 = vpop.f32.mrf.mxu0
    %v4738 = vadd.f32 0.0, %v4737
    %v4739 = vpop.f32.mrf.mxu0
    %v4740 = vadd.f32 0.0, %v4739
    %4741 = vmatmul.bf16.gmra.mxu0 %v4357
    %v4742 = vpop.f32.mrf.mxu0
    %v4743 = vadd.f32 0.0, %v4742
    %v4744 = vpop.f32.mrf.mxu0
    %v4745 = vadd.f32 0.0, %v4744
    %4746 = vmatmul.bf16.gmra.mxu0 %v4362
    %v4747 = vpop.f32.mrf.mxu0
    %v4748 = vadd.f32 0.0, %v4747
    %v4749 = vpop.f32.mrf.mxu0
    %v4750 = vadd.f32 0.0, %v4749
    %4751 = vmatmul.bf16.gmra.mxu0 %v4367
    %v4752 = vpop.f32.mrf.mxu0
    %v4753 = vadd.f32 0.0, %v4752
    %v4754 = vpop.f32.mrf.mxu0
    %v4755 = vadd.f32 0.0, %v4754
    %4756 = vmatmul.bf16.gmra.mxu0 %v4372
    %v4757 = vpop.f32.mrf.mxu0
    %v4758 = vadd.f32 0.0, %v4757
    %v4759 = vpop.f32.mrf.mxu0
    %v4760 = vadd.f32 0.0, %v4759
    %4761 = vmatmul.bf16.gmra.mxu0 %v4377
    %v4762 = vpop.f32.mrf.mxu0
    %v4763 = vadd.f32 0.0, %v4762
    %v4764 = vpop.f32.mrf.mxu0
    %v4765 = vadd.f32 0.0, %v4764
    %4766 = vmatmul.bf16.gmra.mxu0 %v4382
    %v4767 = vpop.f32.mrf.mxu0
    %v4768 = vadd.f32 0.0, %v4767
    %v4769 = vpop.f32.mrf.mxu0
    %4770 = vdwg.mxu0
    %4771 = vmatpush.bf16.msra.mxu0 %v4618
    %4772 = vmatpush.bf16.msra.mxu0 %v4617
    %4773 = vmatpush.bf16.msra.mxu0 %v4616
    %4774 = vmatpush.bf16.msra.mxu0 %v4615
    %4775 = vmatpush.bf16.msra.mxu0 %v4614
    %4776 = vmatpush.bf16.msra.mxu0 %v4613
    %4777 = vmatpush.bf16.msra.mxu0 %v4612
    %4778 = vmatpush.bf16.msra.mxu0 %v4611
    %4779 = vmatmul.bf16.gmra.mxu0 %v4333
    %v4780 = vpop.f32.mrf.mxu0
    %v4781 = vadd.f32 %v4718, %v4780
    %v4782 = vpop.f32.mrf.mxu0
    %v4783 = vadd.f32 %v4720, %v4782
    %4784 = vmatmul.bf16.gmra.mxu0 %v4338
    %v4785 = vpop.f32.mrf.mxu0
    %v4786 = vadd.f32 %v4723, %v4785
    %v4787 = vpop.f32.mrf.mxu0
    %v4788 = vadd.f32 %v4725, %v4787
    %4789 = vmatmul.bf16.gmra.mxu0 %v4343
    %v4790 = vpop.f32.mrf.mxu0
    %v4791 = vadd.f32 %v4728, %v4790
    %v4792 = vpop.f32.mrf.mxu0
    %v4793 = vadd.f32 %v4730, %v4792
    %4794 = vmatmul.bf16.gmra.mxu0 %v4348
    %v4795 = vpop.f32.mrf.mxu0
    %v4796 = vadd.f32 %v4733, %v4795
    %v4797 = vpop.f32.mrf.mxu0
    %v4798 = vadd.f32 %v4735, %v4797
    %4799 = vmatmul.bf16.gmra.mxu0 %v4353
    %v4800 = vpop.f32.mrf.mxu0
    %v4801 = vadd.f32 %v4738, %v4800
    %v4802 = vpop.f32.mrf.mxu0
    %v4803 = vadd.f32 %v4740, %v4802
    %4804 = vmatmul.bf16.gmra.mxu0 %v4358
    %v4805 = vpop.f32.mrf.mxu0
    %v4806 = vadd.f32 %v4743, %v4805
    %v4807 = vpop.f32.mrf.mxu0
    %v4808 = vadd.f32 %v4745, %v4807
    %4809 = vmatmul.bf16.gmra.mxu0 %v4363
    %v4810 = vpop.f32.mrf.mxu0
    %v4811 = vadd.f32 %v4748, %v4810
    %v4812 = vpop.f32.mrf.mxu0
    %v4813 = vadd.f32 %v4750, %v4812
    %4814 = vmatmul.bf16.gmra.mxu0 %v4368
    %v4815 = vpop.f32.mrf.mxu0
    %v4816 = vadd.f32 %v4753, %v4815
    %v4817 = vpop.f32.mrf.mxu0
    %v4818 = vadd.f32 %v4755, %v4817
    %4819 = vmatmul.bf16.gmra.mxu0 %v4373
    %v4820 = vpop.f32.mrf.mxu0
    %v4821 = vadd.f32 %v4758, %v4820
    %v4822 = vpop.f32.mrf.mxu0
    %v4823 = vadd.f32 %v4760, %v4822
    %4824 = vmatmul.bf16.gmra.mxu0 %v4378
    %v4825 = vpop.f32.mrf.mxu0
    %v4826 = vadd.f32 %v4763, %v4825
    %v4827 = vpop.f32.mrf.mxu0
    %v4828 = vadd.f32 %v4765, %v4827
    %4829 = vmatmul.bf16.gmra.mxu0 %v4383
    %v4830 = vpop.f32.mrf.mxu0
    %v4831 = vadd.f32 %v4768, %v4830
    %v4832 = vpop.f32.mrf.mxu0
    %4833 = vdwg.mxu0
    %4834 = vmatpush.bf16.msra.mxu0 %v4626
    %4835 = vmatpush.bf16.msra.mxu0 %v4625
    %4836 = vmatpush.bf16.msra.mxu0 %v4624
    %4837 = vmatpush.bf16.msra.mxu0 %v4623
    %4838 = vmatpush.bf16.msra.mxu0 %v4622
    %4839 = vmatpush.bf16.msra.mxu0 %v4621
    %4840 = vmatpush.bf16.msra.mxu0 %v4620
    %4841 = vmatpush.bf16.msra.mxu0 %v4619
    %4842 = vmatmul.bf16.gmra.mxu0 %v4334
    %v4843 = vpop.f32.mrf.mxu0
    %v4844 = vadd.f32 %v4781, %v4843
    %v4845 = vpop.f32.mrf.mxu0
    %v4846 = vadd.f32 %v4783, %v4845
    %4847 = vmatmul.bf16.gmra.mxu0 %v4339
    %v4848 = vpop.f32.mrf.mxu0
    %v4849 = vadd.f32 %v4786, %v4848
    %v4850 = vpop.f32.mrf.mxu0
    %v4851 = vadd.f32 %v4788, %v4850
    %4852 = vmatmul.bf16.gmra.mxu0 %v4344
    %v4853 = vpop.f32.mrf.mxu0
    %v4854 = vadd.f32 %v4791, %v4853
    %v4855 = vpop.f32.mrf.mxu0
    %v4856 = vadd.f32 %v4793, %v4855
    %4857 = vmatmul.bf16.gmra.mxu0 %v4349
    %v4858 = vpop.f32.mrf.mxu0
    %v4859 = vadd.f32 %v4796, %v4858
    %v4860 = vpop.f32.mrf.mxu0
    %v4861 = vadd.f32 %v4798, %v4860
    %4862 = vmatmul.bf16.gmra.mxu0 %v4354
    %v4863 = vpop.f32.mrf.mxu0
    %v4864 = vadd.f32 %v4801, %v4863
    %v4865 = vpop.f32.mrf.mxu0
    %v4866 = vadd.f32 %v4803, %v4865
    %4867 = vmatmul.bf16.gmra.mxu0 %v4359
    %v4868 = vpop.f32.mrf.mxu0
    %v4869 = vadd.f32 %v4806, %v4868
    %v4870 = vpop.f32.mrf.mxu0
    %v4871 = vadd.f32 %v4808, %v4870
    %4872 = vmatmul.bf16.gmra.mxu0 %v4364
    %v4873 = vpop.f32.mrf.mxu0
    %v4874 = vadd.f32 %v4811, %v4873
    %v4875 = vpop.f32.mrf.mxu0
    %v4876 = vadd.f32 %v4813, %v4875
    %4877 = vmatmul.bf16.gmra.mxu0 %v4369
    %v4878 = vpop.f32.mrf.mxu0
    %v4879 = vadd.f32 %v4816, %v4878
    %v4880 = vpop.f32.mrf.mxu0
    %v4881 = vadd.f32 %v4818, %v4880
    %4882 = vmatmul.bf16.gmra.mxu0 %v4374
    %v4883 = vpop.f32.mrf.mxu0
    %v4884 = vadd.f32 %v4821, %v4883
    %v4885 = vpop.f32.mrf.mxu0
    %v4886 = vadd.f32 %v4823, %v4885
    %4887 = vmatmul.bf16.gmra.mxu0 %v4379
    %v4888 = vpop.f32.mrf.mxu0
    %v4889 = vadd.f32 %v4826, %v4888
    %v4890 = vpop.f32.mrf.mxu0
    %v4891 = vadd.f32 %v4828, %v4890
    %4892 = vmatmul.bf16.gmra.mxu0 %v4384
    %v4893 = vpop.f32.mrf.mxu0
    %v4894 = vadd.f32 %v4831, %v4893
    %v4895 = vpop.f32.mrf.mxu0
    %4896 = vdwg.mxu0
    %4897 = vmatpush.bf16.msra.mxu0 %v4634
    %4898 = vmatpush.bf16.msra.mxu0 %v4633
    %4899 = vmatpush.bf16.msra.mxu0 %v4632
    %4900 = vmatpush.bf16.msra.mxu0 %v4631
    %4901 = vmatpush.bf16.msra.mxu0 %v4630
    %4902 = vmatpush.bf16.msra.mxu0 %v4629
    %4903 = vmatpush.bf16.msra.mxu0 %v4628
    %4904 = vmatpush.bf16.msra.mxu0 %v4627
    %4905 = vmatmul.bf16.gmra.mxu0 %v4335
    %v4906 = vpop.f32.mrf.mxu0
    %v4907 = vadd.f32 %v4844, %v4906
    %v4908 = vpop.f32.mrf.mxu0
    %v4909 = vadd.f32 %v4846, %v4908
    %4910 = vmatmul.bf16.gmra.mxu0 %v4340
    %v4911 = vpop.f32.mrf.mxu0
    %v4912 = vadd.f32 %v4849, %v4911
    %v4913 = vpop.f32.mrf.mxu0
    %v4914 = vadd.f32 %v4851, %v4913
    %4915 = vmatmul.bf16.gmra.mxu0 %v4345
    %v4916 = vpop.f32.mrf.mxu0
    %v4917 = vadd.f32 %v4854, %v4916
    %v4918 = vpop.f32.mrf.mxu0
    %v4919 = vadd.f32 %v4856, %v4918
    %4920 = vmatmul.bf16.gmra.mxu0 %v4350
    %v4921 = vpop.f32.mrf.mxu0
    %v4922 = vadd.f32 %v4859, %v4921
    %v4923 = vpop.f32.mrf.mxu0
    %v4924 = vadd.f32 %v4861, %v4923
    %4925 = vmatmul.bf16.gmra.mxu0 %v4355
    %v4926 = vpop.f32.mrf.mxu0
    %v4927 = vadd.f32 %v4864, %v4926
    %v4928 = vpop.f32.mrf.mxu0
    %v4929 = vadd.f32 %v4866, %v4928
    %4930 = vmatmul.bf16.gmra.mxu0 %v4360
    %v4931 = vpop.f32.mrf.mxu0
    %v4932 = vadd.f32 %v4869, %v4931
    %v4933 = vpop.f32.mrf.mxu0
    %v4934 = vadd.f32 %v4871, %v4933
    %4935 = vmatmul.bf16.gmra.mxu0 %v4365
    %v4936 = vpop.f32.mrf.mxu0
    %v4937 = vadd.f32 %v4874, %v4936
    %v4938 = vpop.f32.mrf.mxu0
    %v4939 = vadd.f32 %v4876, %v4938
    %4940 = vmatmul.bf16.gmra.mxu0 %v4370
    %v4941 = vpop.f32.mrf.mxu0
    %v4942 = vadd.f32 %v4879, %v4941
    %v4943 = vpop.f32.mrf.mxu0
    %v4944 = vadd.f32 %v4881, %v4943
    %4945 = vmatmul.bf16.gmra.mxu0 %v4375
    %v4946 = vpop.f32.mrf.mxu0
    %v4947 = vadd.f32 %v4884, %v4946
    %v4948 = vpop.f32.mrf.mxu0
    %v4949 = vadd.f32 %v4886, %v4948
    %4950 = vmatmul.bf16.gmra.mxu0 %v4380
    %v4951 = vpop.f32.mrf.mxu0
    %v4952 = vadd.f32 %v4889, %v4951
    %v4953 = vpop.f32.mrf.mxu0
    %v4954 = vadd.f32 %v4891, %v4953
    %4955 = vmatmul.bf16.gmra.mxu0 %v4385
    %v4956 = vpop.f32.mrf.mxu0
    %v4957 = vadd.f32 %v4894, %v4956
    %v4958 = vpop.f32.mrf.mxu0
    %4959 = vdwg.mxu0
    %4960 = vmatpush.bf16.msra.mxu0 0
    %4961 = vmatpush.bf16.msra.mxu0 0
    %4962 = vmatpush.bf16.msra.mxu0 0
    %4963 = vmatpush.bf16.msra.mxu0 0
    %4964 = vmatpush.bf16.msra.mxu0 %v4638
    %4965 = vmatpush.bf16.msra.mxu0 %v4637
    %4966 = vmatpush.bf16.msra.mxu0 %v4636
    %4967 = vmatpush.bf16.msra.mxu0 %v4635
    %4968 = vmatmul.bf16.gmra.mxu0 %v4676
    %v4969 = vpop.f32.mrf.mxu0
    %v4970 = vadd.f32 %v4907, %v4969
    %v4971 = vpop.f32.mrf.mxu0
    %v4972 = vadd.f32 %v4909, %v4971
    %4973 = vmatmul.bf16.gmra.mxu0 %v4679
    %v4974 = vpop.f32.mrf.mxu0
    %v4975 = vadd.f32 %v4912, %v4974
    %v4976 = vpop.f32.mrf.mxu0
    %v4977 = vadd.f32 %v4914, %v4976
    %4978 = vmatmul.bf16.gmra.mxu0 %v4682
    %v4979 = vpop.f32.mrf.mxu0
    %v4980 = vadd.f32 %v4917, %v4979
    %v4981 = vpop.f32.mrf.mxu0
    %v4982 = vadd.f32 %v4919, %v4981
    %4983 = vmatmul.bf16.gmra.mxu0 %v4685
    %v4984 = vpop.f32.mrf.mxu0
    %v4985 = vadd.f32 %v4922, %v4984
    %v4986 = vpop.f32.mrf.mxu0
    %v4987 = vadd.f32 %v4924, %v4986
    %4988 = vmatmul.bf16.gmra.mxu0 %v4688
    %v4989 = vpop.f32.mrf.mxu0
    %v4990 = vadd.f32 %v4927, %v4989
    %v4991 = vpop.f32.mrf.mxu0
    %v4992 = vadd.f32 %v4929, %v4991
    %4993 = vmatmul.bf16.gmra.mxu0 %v4691
    %v4994 = vpop.f32.mrf.mxu0
    %v4995 = vadd.f32 %v4932, %v4994
    %v4996 = vpop.f32.mrf.mxu0
    %v4997 = vadd.f32 %v4934, %v4996
    %4998 = vmatmul.bf16.gmra.mxu0 %v4694
    %v4999 = vpop.f32.mrf.mxu0
    %v5000 = vadd.f32 %v4937, %v4999
    %v5001 = vpop.f32.mrf.mxu0
    %v5002 = vadd.f32 %v4939, %v5001
    %5003 = vmatmul.bf16.gmra.mxu0 %v4697
    %v5004 = vpop.f32.mrf.mxu0
    %v5005 = vadd.f32 %v4942, %v5004
    %v5006 = vpop.f32.mrf.mxu0
    %v5007 = vadd.f32 %v4944, %v5006
    %5008 = vmatmul.bf16.gmra.mxu0 %v4700
    %v5009 = vpop.f32.mrf.mxu0
    %v5010 = vadd.f32 %v4947, %v5009
    %v5011 = vpop.f32.mrf.mxu0
    %v5012 = vadd.f32 %v4949, %v5011
    %5013 = vmatmul.bf16.gmra.mxu0 %v4703
    %v5014 = vpop.f32.mrf.mxu0
    %v5015 = vadd.f32 %v4952, %v5014
    %v5016 = vpop.f32.mrf.mxu0
    %v5017 = vadd.f32 %v4954, %v5016
    %5018 = vmatmul.bf16.gmra.mxu0 %v4706
    %v5019 = vpop.f32.mrf.mxu0
    %v5020 = vadd.f32 %v4957, %v5019
    %v5021 = vpop.f32.mrf.mxu0
    %5022 = vdwg.mxu0
    %v5023 = vtanh.pop %v4970
    %v5024 = vtanh.pop %v4972
    %v5025 = vtanh.pop %v4975
    %v5026 = vtanh.pop %v4977
    %v5027 = vtanh.pop %v4980
    %v5028 = vtanh.pop %v4982
    %v5029 = vtanh.pop %v4985
    %v5030 = vtanh.pop %v4987
    %v5031 = vtanh.pop %v4990
    %v5032 = vtanh.pop %v4992
    %v5033 = vtanh.pop %v4995
    %v5034 = vtanh.pop %v4997
    %v5035 = vtanh.pop %v5000
    %v5036 = vtanh.pop %v5002
    %v5037 = vtanh.pop %v5005
    %v5038 = vtanh.pop %v5007
    %v5039 = vtanh.pop %v5010
    %v5040 = vtanh.pop %v5012
    %v5041 = vtanh.pop %v5015
    %v5042 = vtanh.pop %v5017
    %v5043 = vtanh.pop %v5020
    %5044 = vst [vmem:[%s10] sm:$0xff] %v5023
    %5045 = vst [vmem:[%s10 + $0x8] sm:$0xff] %v5024
    %5046 = vst [vmem:[%s10 + $0x10] sm:$0xff] %v5025
    %5047 = vst [vmem:[%s10 + $0x18] sm:$0xff] %v5026
    %5048 = vst [vmem:[%s10 + $0x20] sm:$0xff] %v5027
    %5049 = vst [vmem:[%s10 + $0x28] sm:$0xff] %v5028
    %5050 = vst [vmem:[%s10 + $0x30] sm:$0xff] %v5029
    %5051 = vst [vmem:[%s10 + $0x38] sm:$0xff] %v5030
    %5052 = vst [vmem:[%s10 + $0x40] sm:$0xff] %v5031
    %5053 = vst [vmem:[%s10 + $0x48] sm:$0xff] %v5032
    %5054 = vst [vmem:[%s10 + $0x50] sm:$0xff] %v5033
    %5055 = vst [vmem:[%s10 + $0x58] sm:$0xff] %v5034
    %5056 = vst [vmem:[%s10 + $0x60] sm:$0xff] %v5035
    %5057 = vst [vmem:[%s10 + $0x68] sm:$0xff] %v5036
    %5058 = vst [vmem:[%s10 + $0x70] sm:$0xff] %v5037
    %5059 = vst [vmem:[%s10 + $0x78] sm:$0xff] %v5038
    %5060 = vst [vmem:[%s10 + $0x80] sm:$0xff] %v5039
    %5061 = vst [vmem:[%s10 + $0x88] sm:$0xff] %v5040
    %5062 = vst [vmem:[%s10 + $0x90] sm:$0xff] %v5041
    %5063 = vst [vmem:[%s10 + $0x98] sm:$0xff] %v5042
    %5064 = vst [vmem:[%s10 + $0xa0] sm:$0x3] %v5043
    // Predicated region
    $region46: #{generator_forward.1} parent=1 // pred_check
      _
    $region47: #{generator_forward.1} parent=1 // pred_check_branch
      %5066 = sbr.rel (0) target = $region49
    $region48: #{generator_forward.1} parent=1 // pred_region
      _
    $region49: #{generator_forward.1} parent=1 // pred_fallthru
      _
    // Predicated region
    $region50: #{generator_forward.1} parent=1 // pred_check
      _
    $region51: #{generator_forward.1} parent=1 // pred_check_branch
      %5068 = sbr.rel (0) target = $region53
    $region52: #{generator_forward.1} parent=1 // pred_region
      _
    $region53: #{generator_forward.1} parent=1 // pred_fallthru
      _
    %5069 = vsyncpa [#allocation5], 1

</llo_original>
